<compile_context>
chip_gen: v7x
topology: tpu7x:2x2x1
jax: 0.10.0
libtpu: 0.0.40
codegen_flags: <defaults>
</compile_context>

<pallas_src>
import functools

import jax
import jax.numpy as jnp
from jax.experimental import pallas as pl
from jax.experimental.pallas import tpu as pltpu


def _fused_add_conv1x1_bn_kernel(a_ref, b_ref, w_ref, gamma_ref, beta_ref, o_ref,
                                 *, p_valid):
    # a_ref, b_ref : (C_in, P_pad)  f32, columns >= p_valid are zero
    # w_ref        : (C_out, C_in)  bf16 (1x1 conv weight)
    # gamma/beta   : (C_out, 1)     f32
    # o_ref        : (C_out, P_pad) f32
    x = a_ref[...] + b_ref[...]                                  # residual add (VPU)
    inv_p = 1.0 / p_valid

    # BatchNorm mean commutes with the bias-free 1x1 conv: mean_y = W @ mean_x.
    # Center the small (C_in, P) input first -> the matmul output is already
    # centered, so only ONE reduction over the big (C_out, P) tensor (the
    # variance) remains.  Padded input columns are zero, so the sum below is
    # exact; the padded columns of xc are re-zeroed so they do not pollute the
    # matmul / variance (they would otherwise equal -mean_x).
    mean_x = jnp.sum(x, axis=1, keepdims=True) * inv_p           # (C_in, 1)
    col = jax.lax.broadcasted_iota(jnp.int32, x.shape, 1)
    xc = jnp.where(col < p_valid, x - mean_x, 0.0)

    yc = jnp.dot(w_ref[...], xc.astype(jnp.bfloat16),
                 preferred_element_type=jnp.float32)             # (C_out, P_pad), MXU, == y - mean_y
                                                                 # padded cols are exactly 0

    var = jnp.sum(yc * yc, axis=1, keepdims=True) * inv_p        # biased variance per out-channel
    scale = jax.lax.rsqrt(var + 1e-5) * gamma_ref[...]
    o_ref[...] = (yc * scale + beta_ref[...]).astype(o_ref.dtype)
    # TODO(synk): BatchNorm2d running_mean/running_var momentum updates are a
    # training-time stateful side effect, not part of the returned tensor; omitted.


def fused_add_conv1x1_bn(x366, x352, weight, gamma, beta):
    """x366, x352: (N, C_in, H, W); weight: (C_out, C_in, 1, 1); gamma/beta: (C_out,)."""
    n, c_in, h, w = x366.shape
    c_out = weight.shape[0]
    hw = h * w
    p = n * hw
    p_pad = ((p + 127) // 128) * 128        # lane-dense: 196 -> 256

    # Native-NCHW layout: (C_in, P).  For N == 1 the reshape/transpose below is
    # a free view; the zero-pad is a tiny (157 KB) copy done once in the wrapper.
    a2d = x366.reshape(n, c_in, hw).transpose(1, 0, 2).reshape(c_in, p).astype(jnp.float32)
    b2d = x352.reshape(n, c_in, hw).transpose(1, 0, 2).reshape(c_in, p).astype(jnp.float32)
    if p_pad != p:
        pad = ((0, 0), (0, p_pad - p))
        a2d = jnp.pad(a2d, pad)
        b2d = jnp.pad(b2d, pad)

    w2d = weight.reshape(c_out, c_in).astype(jnp.bfloat16)   # bf16 halves the dominant HBM stream
    g2d = gamma.reshape(c_out, 1).astype(jnp.float32)
    be2d = beta.reshape(c_out, 1).astype(jnp.float32)

    kernel = functools.partial(_fused_add_conv1x1_bn_kernel, p_valid=p)

    out2d = pl.pallas_call(
        kernel,
        out_shape=jax.ShapeDtypeStruct((c_out, p_pad), jnp.float32),
        grid=(1,),                                           # single step: overhead-bound kernel
        in_specs=[
            pl.BlockSpec((c_in, p_pad), lambda i: (0, 0)),   # a (full array, one DMA)
            pl.BlockSpec((c_in, p_pad), lambda i: (0, 0)),   # b
            pl.BlockSpec((c_out, c_in), lambda i: (0, 0)),   # W (full, contiguous DMA)
            pl.BlockSpec((c_out, 1), lambda i: (0, 0)),      # gamma
            pl.BlockSpec((c_out, 1), lambda i: (0, 0)),      # beta
        ],
        out_specs=pl.BlockSpec((c_out, p_pad), lambda i: (0, 0)),
    )(a2d, b2d, w2d, g2d, be2d)

    out2d = out2d[:, :p]                                     # drop lane padding
    # (C_out, N*HW) -> NCHW.  Free for N == 1.
    return out2d.reshape(c_out, n, hw).transpose(1, 0, 2).reshape(n, c_out, h, w)


if __name__ == "__main__":
    # Shapes implied by the module: inputs (1, 200, 14, 14), conv 200 -> 1200, 1x1.
    N, C_IN, H, W = 1, 200, 14, 14
    C_OUT = 1200

    key = jax.random.PRNGKey(0)
    k1, k2, k3 = jax.random.split(key, 3)

    x366 = jax.random.normal(k1, (N, C_IN, H, W), dtype=jnp.float32)
    x352 = jax.random.normal(k2, (N, C_IN, H, W), dtype=jnp.float32)

    # Deterministic parameter init (Conv2d weight ~ small normal; BN gamma=1, beta=0).
    conv_w = jax.random.normal(k3, (C_OUT, C_IN, 1, 1), dtype=jnp.float32) * 0.05
    bn_gamma = jnp.ones((C_OUT,), dtype=jnp.float32)
    bn_beta = jnp.zeros((C_OUT,), dtype=jnp.float32)

    out = jax.jit(fused_add_conv1x1_bn)(x366, x352, conv_w, bn_gamma, bn_beta)
    jax.block_until_ready(out)
    assert out.shape == (N, C_OUT, H, W), out.shape

    # Correctness check vs plain-JAX train-mode reference (f32, HIGHEST precision).
    # The kernel uses bf16 MXU operands, so allow a bf16-matmul-level tolerance.
    x = (x366 + x352).astype(jnp.float32)
    y = jnp.einsum("oc,nchw->nohw", conv_w.reshape(C_OUT, C_IN), x,
                   precision=jax.lax.Precision.HIGHEST)
    mean = y.mean(axis=(0, 2, 3), keepdims=True)
    var = ((y - mean) ** 2).mean(axis=(0, 2, 3), keepdims=True)
    ref = ((y - mean) * jax.lax.rsqrt(var + 1e-5)
           * bn_gamma.reshape(1, C_OUT, 1, 1) + bn_beta.reshape(1, C_OUT, 1, 1))
    max_err = jnp.max(jnp.abs(out - ref))
    assert max_err < 3e-2, max_err

    print("KERNEL_OK")
</pallas_src>

<mosaic_0001>
module attributes {stable_mosaic.version = 11 : i64} {
  func.func @_fused_add_conv1x1_bn_kernel(%arg0: i32, %arg1: memref<200x256xf32, #tpu.memory_space<vmem>>, %arg2: memref<200x256xf32, #tpu.memory_space<vmem>>, %arg3: memref<1200x200xbf16, #tpu.memory_space<vmem>>, %arg4: memref<1200x1xf32, #tpu.memory_space<vmem>>, %arg5: memref<1200x1xf32, #tpu.memory_space<vmem>>, %arg6: memref<1200x256xf32, #tpu.memory_space<vmem>>) attributes {dimension_semantics = [#tpu.dimension_semantics<arbitrary>], iteration_bounds = array<i64: 1>, scalar_prefetch = 0 : i64, scratch_operands = 0 : i64, tpu.core_type = #tpu.core_type<tc>, window_params = [{pipeline_mode = #tpu.pipeline_mode<synchronous>, transform_indices = @transform_0, window_bounds = array<i64: 200, 256>}, {pipeline_mode = #tpu.pipeline_mode<synchronous>, transform_indices = @transform_1, window_bounds = array<i64: 200, 256>}, {pipeline_mode = #tpu.pipeline_mode<synchronous>, transform_indices = @transform_2, window_bounds = array<i64: 1200, 200>}, {pipeline_mode = #tpu.pipeline_mode<synchronous>, transform_indices = @transform_3, window_bounds = array<i64: 1200, 1>}, {pipeline_mode = #tpu.pipeline_mode<synchronous>, transform_indices = @transform_4, window_bounds = array<i64: 1200, 1>}, {pipeline_mode = #tpu.pipeline_mode<synchronous>, transform_indices = @transform_5, window_bounds = array<i64: 1200, 256>}]} {
    %c0 = arith.constant 0 : index
    %c0_0 = arith.constant 0 : index
    %0 = vector.load %arg1[%c0, %c0_0] : memref<200x256xf32, #tpu.memory_space<vmem>>, vector<200x256xf32>
    %c0_1 = arith.constant 0 : index
    %c0_2 = arith.constant 0 : index
    %1 = vector.load %arg2[%c0_1, %c0_2] : memref<200x256xf32, #tpu.memory_space<vmem>>, vector<200x256xf32>
    %2 = arith.addf %0, %1 : vector<200x256xf32>
    %cst = arith.constant dense<0.000000e+00> : vector<200xf32>
    %3 = vector.multi_reduction <add>, %2, %cst [1] : vector<200x256xf32> to vector<200xf32>
    %4 = vector.shape_cast %3 : vector<200xf32> to vector<200x1xf32>
    %cst_3 = arith.constant 0.00510204071 : f32
    %5 = vector.broadcast %cst_3 : f32 to vector<200x1xf32>
    %6 = arith.mulf %4, %5 : vector<200x1xf32>
    %7 = tpu.iota {dimensions = array<i32: 1>} : vector<200x256xi32>
    %c196_i32 = arith.constant 196 : i32
    %8 = vector.broadcast %c196_i32 : i32 to vector<200x256xi32>
    %9 = arith.cmpi slt, %7, %8 : vector<200x256xi32>
    %10 = vector.broadcast %6 : vector<200x1xf32> to vector<200x256xf32>
    %11 = arith.subf %2, %10 : vector<200x256xf32>
    %cst_4 = arith.constant 0.000000e+00 : f32
    %12 = vector.broadcast %cst_4 : f32 to vector<200x256xf32>
    %13 = arith.select %9, %11, %12 : vector<200x256xi1>, vector<200x256xf32>
    %c0_5 = arith.constant 0 : index
    %c0_6 = arith.constant 0 : index
    %14 = vector.load %arg3[%c0_5, %c0_6] : memref<1200x200xbf16, #tpu.memory_space<vmem>>, vector<1200x200xbf16>
    %15 = arith.truncf %13 : vector<200x256xf32> to vector<200x256xbf16>
    %cst_7 = arith.constant dense<0.000000e+00> : vector<1200x256xf32>
    %16 = tpu.matmul %14, %15, %cst_7 {dimension_numbers = #tpu.dot_dimension_numbers<[1], [0], [0], [1], [0, 0, 1, 1], [], []>} : vector<1200x200xbf16>, vector<200x256xbf16>, vector<1200x256xf32> -> vector<1200x256xf32>
    %17 = arith.mulf %16, %16 : vector<1200x256xf32>
    %cst_8 = arith.constant dense<0.000000e+00> : vector<1200xf32>
    %18 = vector.multi_reduction <add>, %17, %cst_8 [1] : vector<1200x256xf32> to vector<1200xf32>
    %19 = vector.shape_cast %18 : vector<1200xf32> to vector<1200x1xf32>
    %cst_9 = arith.constant 0.00510204071 : f32
    %20 = vector.broadcast %cst_9 : f32 to vector<1200x1xf32>
    %21 = arith.mulf %19, %20 : vector<1200x1xf32>
    %cst_10 = arith.constant 9.99999974E-6 : f32
    %22 = vector.broadcast %cst_10 : f32 to vector<1200x1xf32>
    %23 = arith.addf %21, %22 : vector<1200x1xf32>
    %24 = math.rsqrt %23 : vector<1200x1xf32>
    %c0_11 = arith.constant 0 : index
    %c0_12 = arith.constant 0 : index
    %25 = vector.load %arg4[%c0_11, %c0_12] : memref<1200x1xf32, #tpu.memory_space<vmem>>, vector<1200x1xf32>
    %26 = arith.mulf %24, %25 : vector<1200x1xf32>
    %27 = vector.broadcast %26 : vector<1200x1xf32> to vector<1200x256xf32>
    %28 = arith.mulf %16, %27 : vector<1200x256xf32>
    %c0_13 = arith.constant 0 : index
    %c0_14 = arith.constant 0 : index
    %29 = vector.load %arg5[%c0_13, %c0_14] : memref<1200x1xf32, #tpu.memory_space<vmem>>, vector<1200x1xf32>
    %30 = vector.broadcast %29 : vector<1200x1xf32> to vector<1200x256xf32>
    %31 = arith.addf %28, %30 : vector<1200x256xf32>
    %c0_15 = arith.constant 0 : index
    %c0_16 = arith.constant 0 : index
    %32 = vector.load %arg6[%c0_15, %c0_16] : memref<1200x256xf32, #tpu.memory_space<vmem>>, vector<1200x256xf32>
    tpu.vector_store %arg6[%c0_15, %c0_16], %31 {strides = array<i32>} : memref<1200x256xf32, #tpu.memory_space<vmem>>, vector<1200x256xf32>,
    return
  }
  func.func @transform_0(%arg0: i32) -> (i32, i32) {
    %c0_i32 = arith.constant 0 : i32
    %c0_i32_0 = arith.constant 0 : i32
    %c0_i32_1 = arith.constant 0 : i32
    return %c0_i32, %c0_i32_0 : i32, i32
  }
  func.func @transform_1(%arg0: i32) -> (i32, i32) {
    %c0_i32 = arith.constant 0 : i32
    %c0_i32_0 = arith.constant 0 : i32
    %c0_i32_1 = arith.constant 0 : i32
    return %c0_i32, %c0_i32_0 : i32, i32
  }
  func.func @transform_2(%arg0: i32) -> (i32, i32) {
    %c0_i32 = arith.constant 0 : i32
    %c0_i32_0 = arith.constant 0 : i32
    %c0_i32_1 = arith.constant 0 : i32
    return %c0_i32, %c0_i32_0 : i32, i32
  }
  func.func @transform_3(%arg0: i32) -> (i32, i32) {
    %c0_i32 = arith.constant 0 : i32
    %c0_i32_0 = arith.constant 0 : i32
    %c0_i32_1 = arith.constant 0 : i32
    return %c0_i32, %c0_i32_0 : i32, i32
  }
  func.func @transform_4(%arg0: i32) -> (i32, i32) {
    %c0_i32 = arith.constant 0 : i32
    %c0_i32_0 = arith.constant 0 : i32
    %c0_i32_1 = arith.constant 0 : i32
    return %c0_i32, %c0_i32_0 : i32, i32
  }
  func.func @transform_5(%arg0: i32) -> (i32, i32) {
    %c0_i32 = arith.constant 0 : i32
    %c0_i32_0 = arith.constant 0 : i32
    %c0_i32_1 = arith.constant 0 : i32
    return %c0_i32, %c0_i32_0 : i32, i32
  }
}

</mosaic_0001>

<llo_original>
// kernel: fused_add_conv1x1_bn.1
$region0: #{fused_add_conv1x1_bn.1}
  #allocation0 [shape = 'u32[]', space=smem, size = 0x4, offset = 0x4, fixed_abs, tag = 'smem constant byte address 0x4 - core index']
  #allocation1 [shape = 'u32[144,128]{1,0:T(1,128)}', space=vmem, size = 0x12000, scoped, tag = 'internal scratch']
  %s0 = inlined_call_operand.vmem [shape: f32[200,256], index: 0, kind: input, shape index: {}]
  %s1 = inlined_call_operand.vmem [shape: f32[200,256], index: 1, kind: input, shape index: {}]
  %s2 = inlined_call_operand.vmem [shape: bf16[1200,200], index: 2, kind: input, shape index: {}]
  %s3 = inlined_call_operand.vmem [shape: f32[1200,1], index: 3, kind: input, shape index: {}]
  %s4 = inlined_call_operand.vmem [shape: f32[1200,1], index: 4, kind: input, shape index: {}]
  %s5 = inlined_call_operand.vmem [shape: f32[1200,256], index: 5, kind: output, shape index: {}]
  %s6 = sld [smem:[#allocation0]]
  $region30: #{fused_add_conv1x1_bn.1} parent=0
    _
  %s8 = ssub.s32 1, %s6
  %s9 = scalar_select 0, %s8, %s6
  // Predicated region
  $region2: #{fused_add_conv1x1_bn.1} parent=0 // pred_check
    _
  $region3: #{fused_add_conv1x1_bn.1} parent=0 // pred_check_branch
    %11 = sbr.rel (0) target = $region5
  $region4: #{fused_add_conv1x1_bn.1} parent=0 // pred_region
    _
  $region5: #{fused_add_conv1x1_bn.1} parent=0 // pred_fallthru
    _
  // Predicated region
  $region6: #{fused_add_conv1x1_bn.1} parent=0 // pred_check
    _
  $region7: #{fused_add_conv1x1_bn.1} parent=0 // pred_check_branch
    %13 = sbr.rel (0) target = $region9
  $region8: #{fused_add_conv1x1_bn.1} parent=0 // pred_region
    _
  $region9: #{fused_add_conv1x1_bn.1} parent=0 // pred_fallthru
    _
  // Predicated region
  $region10: #{fused_add_conv1x1_bn.1} parent=0 // pred_check
    _
  $region11: #{fused_add_conv1x1_bn.1} parent=0 // pred_check_branch
    %15 = sbr.rel (0) target = $region13
  $region12: #{fused_add_conv1x1_bn.1} parent=0 // pred_region
    _
  $region13: #{fused_add_conv1x1_bn.1} parent=0 // pred_fallthru
    _
  // Predicated region
  $region14: #{fused_add_conv1x1_bn.1} parent=0 // pred_check
    _
  $region15: #{fused_add_conv1x1_bn.1} parent=0 // pred_check_branch
    %17 = sbr.rel (0) target = $region17
  $region16: #{fused_add_conv1x1_bn.1} parent=0 // pred_region
    _
  $region17: #{fused_add_conv1x1_bn.1} parent=0 // pred_fallthru
    _
  // Predicated region
  $region18: #{fused_add_conv1x1_bn.1} parent=0 // pred_check
    _
  $region19: #{fused_add_conv1x1_bn.1} parent=0 // pred_check_branch
    %19 = sbr.rel (0) target = $region21
  $region20: #{fused_add_conv1x1_bn.1} parent=0 // pred_region
    _
  $region21: #{fused_add_conv1x1_bn.1} parent=0 // pred_fallthru
    _
  %v21 = vld [vmem:[%s0] sm:$0xff]
  %v22 = vld [vmem:[%s0 + $0x8] sm:$0xff]
  %v23 = vld [vmem:[%s0 + $0x10] sm:$0xff]
  %v24 = vld [vmem:[%s0 + $0x18] sm:$0xff]
  %v25 = vld [vmem:[%s0 + $0x20] sm:$0xff]
  %v26 = vld [vmem:[%s0 + $0x28] sm:$0xff]
  %v27 = vld [vmem:[%s0 + $0x30] sm:$0xff]
  %v28 = vld [vmem:[%s0 + $0x38] sm:$0xff]
  %v29 = vld [vmem:[%s0 + $0x40] sm:$0xff]
  %v30 = vld [vmem:[%s0 + $0x48] sm:$0xff]
  %v31 = vld [vmem:[%s0 + $0x50] sm:$0xff]
  %v32 = vld [vmem:[%s0 + $0x58] sm:$0xff]
  %v33 = vld [vmem:[%s0 + $0x60] sm:$0xff]
  %v34 = vld [vmem:[%s0 + $0x68] sm:$0xff]
  %v35 = vld [vmem:[%s0 + $0x70] sm:$0xff]
  %v36 = vld [vmem:[%s0 + $0x78] sm:$0xff]
  %v37 = vld [vmem:[%s0 + $0x80] sm:$0xff]
  %v38 = vld [vmem:[%s0 + $0x88] sm:$0xff]
  %v39 = vld [vmem:[%s0 + $0x90] sm:$0xff]
  %v40 = vld [vmem:[%s0 + $0x98] sm:$0xff]
  %v41 = vld [vmem:[%s0 + $0xa0] sm:$0xff]
  %v42 = vld [vmem:[%s0 + $0xa8] sm:$0xff]
  %v43 = vld [vmem:[%s0 + $0xb0] sm:$0xff]
  %v44 = vld [vmem:[%s0 + $0xb8] sm:$0xff]
  %v45 = vld [vmem:[%s0 + $0xc0] sm:$0xff]
  %v46 = vld [vmem:[%s0 + $0xc8] sm:$0xff]
  %v47 = vld [vmem:[%s0 + $0xd0] sm:$0xff]
  %v48 = vld [vmem:[%s0 + $0xd8] sm:$0xff]
  %v49 = vld [vmem:[%s0 + $0xe0] sm:$0xff]
  %v50 = vld [vmem:[%s0 + $0xe8] sm:$0xff]
  %v51 = vld [vmem:[%s0 + $0xf0] sm:$0xff]
  %v52 = vld [vmem:[%s0 + $0xf8] sm:$0xff]
  %v53 = vld [vmem:[%s0 + $0x100] sm:$0xff]
  %v54 = vld [vmem:[%s0 + $0x108] sm:$0xff]
  %v55 = vld [vmem:[%s0 + $0x110] sm:$0xff]
  %v56 = vld [vmem:[%s0 + $0x118] sm:$0xff]
  %v57 = vld [vmem:[%s0 + $0x120] sm:$0xff]
  %v58 = vld [vmem:[%s0 + $0x128] sm:$0xff]
  %v59 = vld [vmem:[%s0 + $0x130] sm:$0xff]
  %v60 = vld [vmem:[%s0 + $0x138] sm:$0xff]
  %v61 = vld [vmem:[%s0 + $0x140] sm:$0xff]
  %v62 = vld [vmem:[%s0 + $0x148] sm:$0xff]
  %v63 = vld [vmem:[%s0 + $0x150] sm:$0xff]
  %v64 = vld [vmem:[%s0 + $0x158] sm:$0xff]
  %v65 = vld [vmem:[%s0 + $0x160] sm:$0xff]
  %v66 = vld [vmem:[%s0 + $0x168] sm:$0xff]
  %v67 = vld [vmem:[%s0 + $0x170] sm:$0xff]
  %v68 = vld [vmem:[%s0 + $0x178] sm:$0xff]
  %v69 = vld [vmem:[%s0 + $0x180] sm:$0xff]
  %v70 = vld [vmem:[%s0 + $0x188] sm:$0xff]
  %v71 = vld [vmem:[%s1] sm:$0xff]
  %v72 = vld [vmem:[%s1 + $0x8] sm:$0xff]
  %v73 = vld [vmem:[%s1 + $0x10] sm:$0xff]
  %v74 = vld [vmem:[%s1 + $0x18] sm:$0xff]
  %v75 = vld [vmem:[%s1 + $0x20] sm:$0xff]
  %v76 = vld [vmem:[%s1 + $0x28] sm:$0xff]
  %v77 = vld [vmem:[%s1 + $0x30] sm:$0xff]
  %v78 = vld [vmem:[%s1 + $0x38] sm:$0xff]
  %v79 = vld [vmem:[%s1 + $0x40] sm:$0xff]
  %v80 = vld [vmem:[%s1 + $0x48] sm:$0xff]
  %v81 = vld [vmem:[%s1 + $0x50] sm:$0xff]
  %v82 = vld [vmem:[%s1 + $0x58] sm:$0xff]
  %v83 = vld [vmem:[%s1 + $0x60] sm:$0xff]
  %v84 = vld [vmem:[%s1 + $0x68] sm:$0xff]
  %v85 = vld [vmem:[%s1 + $0x70] sm:$0xff]
  %v86 = vld [vmem:[%s1 + $0x78] sm:$0xff]
  %v87 = vld [vmem:[%s1 + $0x80] sm:$0xff]
  %v88 = vld [vmem:[%s1 + $0x88] sm:$0xff]
  %v89 = vld [vmem:[%s1 + $0x90] sm:$0xff]
  %v90 = vld [vmem:[%s1 + $0x98] sm:$0xff]
  %v91 = vld [vmem:[%s1 + $0xa0] sm:$0xff]
  %v92 = vld [vmem:[%s1 + $0xa8] sm:$0xff]
  %v93 = vld [vmem:[%s1 + $0xb0] sm:$0xff]
  %v94 = vld [vmem:[%s1 + $0xb8] sm:$0xff]
  %v95 = vld [vmem:[%s1 + $0xc0] sm:$0xff]
  %v96 = vld [vmem:[%s1 + $0xc8] sm:$0xff]
  %v97 = vld [vmem:[%s1 + $0xd0] sm:$0xff]
  %v98 = vld [vmem:[%s1 + $0xd8] sm:$0xff]
  %v99 = vld [vmem:[%s1 + $0xe0] sm:$0xff]
  %v100 = vld [vmem:[%s1 + $0xe8] sm:$0xff]
  %v101 = vld [vmem:[%s1 + $0xf0] sm:$0xff]
  %v102 = vld [vmem:[%s1 + $0xf8] sm:$0xff]
  %v103 = vld [vmem:[%s1 + $0x100] sm:$0xff]
  %v104 = vld [vmem:[%s1 + $0x108] sm:$0xff]
  %v105 = vld [vmem:[%s1 + $0x110] sm:$0xff]
  %v106 = vld [vmem:[%s1 + $0x118] sm:$0xff]
  %v107 = vld [vmem:[%s1 + $0x120] sm:$0xff]
  %v108 = vld [vmem:[%s1 + $0x128] sm:$0xff]
  %v109 = vld [vmem:[%s1 + $0x130] sm:$0xff]
  %v110 = vld [vmem:[%s1 + $0x138] sm:$0xff]
  %v111 = vld [vmem:[%s1 + $0x140] sm:$0xff]
  %v112 = vld [vmem:[%s1 + $0x148] sm:$0xff]
  %v113 = vld [vmem:[%s1 + $0x150] sm:$0xff]
  %v114 = vld [vmem:[%s1 + $0x158] sm:$0xff]
  %v115 = vld [vmem:[%s1 + $0x160] sm:$0xff]
  %v116 = vld [vmem:[%s1 + $0x168] sm:$0xff]
  %v117 = vld [vmem:[%s1 + $0x170] sm:$0xff]
  %v118 = vld [vmem:[%s1 + $0x178] sm:$0xff]
  %v119 = vld [vmem:[%s1 + $0x180] sm:$0xff]
  %v120 = vld [vmem:[%s1 + $0x188] sm:$0xff]
  %v121 = vadd.f32 %v21, %v71
  %v122 = vadd.f32 %v22, %v72
  %v123 = vadd.f32 %v23, %v73
  %v124 = vadd.f32 %v24, %v74
  %v125 = vadd.f32 %v25, %v75
  %v126 = vadd.f32 %v26, %v76
  %v127 = vadd.f32 %v27, %v77
  %v128 = vadd.f32 %v28, %v78
  %v129 = vadd.f32 %v29, %v79
  %v130 = vadd.f32 %v30, %v80
  %v131 = vadd.f32 %v31, %v81
  %v132 = vadd.f32 %v32, %v82
  %v133 = vadd.f32 %v33, %v83
  %v134 = vadd.f32 %v34, %v84
  %v135 = vadd.f32 %v35, %v85
  %v136 = vadd.f32 %v36, %v86
  %v137 = vadd.f32 %v37, %v87
  %v138 = vadd.f32 %v38, %v88
  %v139 = vadd.f32 %v39, %v89
  %v140 = vadd.f32 %v40, %v90
  %v141 = vadd.f32 %v41, %v91
  %v142 = vadd.f32 %v42, %v92
  %v143 = vadd.f32 %v43, %v93
  %v144 = vadd.f32 %v44, %v94
  %v145 = vadd.f32 %v45, %v95
  %v146 = vadd.f32 %v46, %v96
  %v147 = vadd.f32 %v47, %v97
  %v148 = vadd.f32 %v48, %v98
  %v149 = vadd.f32 %v49, %v99
  %v150 = vadd.f32 %v50, %v100
  %v151 = vadd.f32 %v51, %v101
  %v152 = vadd.f32 %v52, %v102
  %v153 = vadd.f32 %v53, %v103
  %v154 = vadd.f32 %v54, %v104
  %v155 = vadd.f32 %v55, %v105
  %v156 = vadd.f32 %v56, %v106
  %v157 = vadd.f32 %v57, %v107
  %v158 = vadd.f32 %v58, %v108
  %v159 = vadd.f32 %v59, %v109
  %v160 = vadd.f32 %v60, %v110
  %v161 = vadd.f32 %v61, %v111
  %v162 = vadd.f32 %v62, %v112
  %v163 = vadd.f32 %v63, %v113
  %v164 = vadd.f32 %v64, %v114
  %v165 = vadd.f32 %v65, %v115
  %v166 = vadd.f32 %v66, %v116
  %v167 = vadd.f32 %v67, %v117
  %v168 = vadd.f32 %v68, %v118
  %v169 = vadd.f32 %v69, %v119
  %v170 = vadd.f32 %v70, %v120
  %v171 = vadd.f32 %v121, %v122
  %172 = vadd.xlane.f32.xlu0 %v171
  %v173 = vpop.xlane.xlu0 %172
  %v174 = vadd.f32 %v123, %v124
  %175 = vadd.xlane.f32.xlu0 %v174
  %v176 = vpop.xlane.xlu0 %175
  %v177 = vadd.f32 %v125, %v126
  %178 = vadd.xlane.f32.xlu0 %v177
  %v179 = vpop.xlane.xlu0 %178
  %v180 = vadd.f32 %v127, %v128
  %181 = vadd.xlane.f32.xlu0 %v180
  %v182 = vpop.xlane.xlu0 %181
  %v183 = vadd.f32 %v129, %v130
  %184 = vadd.xlane.f32.xlu0 %v183
  %v185 = vpop.xlane.xlu0 %184
  %v186 = vadd.f32 %v131, %v132
  %187 = vadd.xlane.f32.xlu0 %v186
  %v188 = vpop.xlane.xlu0 %187
  %v189 = vadd.f32 %v133, %v134
  %190 = vadd.xlane.f32.xlu0 %v189
  %v191 = vpop.xlane.xlu0 %190
  %v192 = vadd.f32 %v135, %v136
  %193 = vadd.xlane.f32.xlu0 %v192
  %v194 = vpop.xlane.xlu0 %193
  %v195 = vadd.f32 %v137, %v138
  %196 = vadd.xlane.f32.xlu0 %v195
  %v197 = vpop.xlane.xlu0 %196
  %v198 = vadd.f32 %v139, %v140
  %199 = vadd.xlane.f32.xlu0 %v198
  %v200 = vpop.xlane.xlu0 %199
  %v201 = vadd.f32 %v141, %v142
  %202 = vadd.xlane.f32.xlu0 %v201
  %v203 = vpop.xlane.xlu0 %202
  %v204 = vadd.f32 %v143, %v144
  %205 = vadd.xlane.f32.xlu0 %v204
  %v206 = vpop.xlane.xlu0 %205
  %v207 = vadd.f32 %v145, %v146
  %208 = vadd.xlane.f32.xlu0 %v207
  %v209 = vpop.xlane.xlu0 %208
  %v210 = vadd.f32 %v147, %v148
  %211 = vadd.xlane.f32.xlu0 %v210
  %v212 = vpop.xlane.xlu0 %211
  %v213 = vadd.f32 %v149, %v150
  %214 = vadd.xlane.f32.xlu0 %v213
  %v215 = vpop.xlane.xlu0 %214
  %v216 = vadd.f32 %v151, %v152
  %217 = vadd.xlane.f32.xlu0 %v216
  %v218 = vpop.xlane.xlu0 %217
  %v219 = vadd.f32 %v153, %v154
  %220 = vadd.xlane.f32.xlu0 %v219
  %v221 = vpop.xlane.xlu0 %220
  %v222 = vadd.f32 %v155, %v156
  %223 = vadd.xlane.f32.xlu0 %v222
  %v224 = vpop.xlane.xlu0 %223
  %v225 = vadd.f32 %v157, %v158
  %226 = vadd.xlane.f32.xlu0 %v225
  %v227 = vpop.xlane.xlu0 %226
  %v228 = vadd.f32 %v159, %v160
  %229 = vadd.xlane.f32.xlu0 %v228
  %v230 = vpop.xlane.xlu0 %229
  %v231 = vadd.f32 %v161, %v162
  %232 = vadd.xlane.f32.xlu0 %v231
  %v233 = vpop.xlane.xlu0 %232
  %v234 = vadd.f32 %v163, %v164
  %235 = vadd.xlane.f32.xlu0 %v234
  %v236 = vpop.xlane.xlu0 %235
  %v237 = vadd.f32 %v165, %v166
  %238 = vadd.xlane.f32.xlu0 %v237
  %v239 = vpop.xlane.xlu0 %238
  %v240 = vadd.f32 %v167, %v168
  %241 = vadd.xlane.f32.xlu0 %v240
  %v242 = vpop.xlane.xlu0 %241
  %v243 = vadd.f32 %v169, %v170
  %244 = vadd.xlane.f32.xlu0 %v243
  %v245 = vpop.xlane.xlu0 %244
  %v246 = vmul.f32 %v173, 0.0051020407
  %v247 = vmul.f32 %v176, 0.0051020407
  %v248 = vmul.f32 %v179, 0.0051020407
  %v249 = vmul.f32 %v182, 0.0051020407
  %v250 = vmul.f32 %v185, 0.0051020407
  %v251 = vmul.f32 %v188, 0.0051020407
  %v252 = vmul.f32 %v191, 0.0051020407
  %v253 = vmul.f32 %v194, 0.0051020407
  %v254 = vmul.f32 %v197, 0.0051020407
  %v255 = vmul.f32 %v200, 0.0051020407
  %v256 = vmul.f32 %v203, 0.0051020407
  %v257 = vmul.f32 %v206, 0.0051020407
  %v258 = vmul.f32 %v209, 0.0051020407
  %v259 = vmul.f32 %v212, 0.0051020407
  %v260 = vmul.f32 %v215, 0.0051020407
  %v261 = vmul.f32 %v218, 0.0051020407
  %v262 = vmul.f32 %v221, 0.0051020407
  %v263 = vmul.f32 %v224, 0.0051020407
  %v264 = vmul.f32 %v227, 0.0051020407
  %v265 = vmul.f32 %v230, 0.0051020407
  %v266 = vmul.f32 %v233, 0.0051020407
  %v267 = vmul.f32 %v236, 0.0051020407
  %v268 = vmul.f32 %v239, 0.0051020407
  %v269 = vmul.f32 %v242, 0.0051020407
  %v270 = vmul.f32 %v245, 0.0051020407
  %v271 = vlaneseq
  %v272 = vand.u32 %v271, 127
  %v273 = vadd.s32 %v272, 128
  %vm274 = vcmp.lt.s32.totalorder %v272, 196
  %vm275 = vcmp.lt.s32.totalorder %v273, 196
  %v276 = vsub.f32 %v121, %v246
  %v277 = vsub.f32 %v122, %v246
  %v278 = vsub.f32 %v123, %v247
  %v279 = vsub.f32 %v124, %v247
  %v280 = vsub.f32 %v125, %v248
  %v281 = vsub.f32 %v126, %v248
  %v282 = vsub.f32 %v127, %v249
  %v283 = vsub.f32 %v128, %v249
  %v284 = vsub.f32 %v129, %v250
  %v285 = vsub.f32 %v130, %v250
  %v286 = vsub.f32 %v131, %v251
  %v287 = vsub.f32 %v132, %v251
  %v288 = vsub.f32 %v133, %v252
  %v289 = vsub.f32 %v134, %v252
  %v290 = vsub.f32 %v135, %v253
  %v291 = vsub.f32 %v136, %v253
  %v292 = vsub.f32 %v137, %v254
  %v293 = vsub.f32 %v138, %v254
  %v294 = vsub.f32 %v139, %v255
  %v295 = vsub.f32 %v140, %v255
  %v296 = vsub.f32 %v141, %v256
  %v297 = vsub.f32 %v142, %v256
  %v298 = vsub.f32 %v143, %v257
  %v299 = vsub.f32 %v144, %v257
  %v300 = vsub.f32 %v145, %v258
  %v301 = vsub.f32 %v146, %v258
  %v302 = vsub.f32 %v147, %v259
  %v303 = vsub.f32 %v148, %v259
  %v304 = vsub.f32 %v149, %v260
  %v305 = vsub.f32 %v150, %v260
  %v306 = vsub.f32 %v151, %v261
  %v307 = vsub.f32 %v152, %v261
  %v308 = vsub.f32 %v153, %v262
  %v309 = vsub.f32 %v154, %v262
  %v310 = vsub.f32 %v155, %v263
  %v311 = vsub.f32 %v156, %v263
  %v312 = vsub.f32 %v157, %v264
  %v313 = vsub.f32 %v158, %v264
  %v314 = vsub.f32 %v159, %v265
  %v315 = vsub.f32 %v160, %v265
  %v316 = vsub.f32 %v161, %v266
  %v317 = vsub.f32 %v162, %v266
  %v318 = vsub.f32 %v163, %v267
  %v319 = vsub.f32 %v164, %v267
  %v320 = vsub.f32 %v165, %v268
  %v321 = vsub.f32 %v166, %v268
  %v322 = vsub.f32 %v167, %v269
  %v323 = vsub.f32 %v168, %v269
  %v324 = vsub.f32 %v169, %v270
  %v325 = vsub.f32 %v170, %v270
  %v326 = vsel %vm274, %v276, 0.0
  %v327 = vsel %vm275, %v277, 0.0
  %v328 = vsel %vm274, %v278, 0.0
  %v329 = vsel %vm275, %v279, 0.0
  %v330 = vsel %vm274, %v280, 0.0
  %v331 = vsel %vm275, %v281, 0.0
  %v332 = vsel %vm274, %v282, 0.0
  %v333 = vsel %vm275, %v283, 0.0
  %v334 = vsel %vm274, %v284, 0.0
  %v335 = vsel %vm275, %v285, 0.0
  %v336 = vsel %vm274, %v286, 0.0
  %v337 = vsel %vm275, %v287, 0.0
  %v338 = vsel %vm274, %v288, 0.0
  %v339 = vsel %vm275, %v289, 0.0
  %v340 = vsel %vm274, %v290, 0.0
  %v341 = vsel %vm275, %v291, 0.0
  %v342 = vsel %vm274, %v292, 0.0
  %v343 = vsel %vm275, %v293, 0.0
  %v344 = vsel %vm274, %v294, 0.0
  %v345 = vsel %vm275, %v295, 0.0
  %v346 = vsel %vm274, %v296, 0.0
  %v347 = vsel %vm275, %v297, 0.0
  %v348 = vsel %vm274, %v298, 0.0
  %v349 = vsel %vm275, %v299, 0.0
  %v350 = vsel %vm274, %v300, 0.0
  %v351 = vsel %vm275, %v301, 0.0
  %v352 = vsel %vm274, %v302, 0.0
  %v353 = vsel %vm275, %v303, 0.0
  %v354 = vsel %vm274, %v304, 0.0
  %v355 = vsel %vm275, %v305, 0.0
  %v356 = vsel %vm274, %v306, 0.0
  %v357 = vsel %vm275, %v307, 0.0
  %v358 = vsel %vm274, %v308, 0.0
  %v359 = vsel %vm275, %v309, 0.0
  %v360 = vsel %vm274, %v310, 0.0
  %v361 = vsel %vm275, %v311, 0.0
  %v362 = vsel %vm274, %v312, 0.0
  %v363 = vsel %vm275, %v313, 0.0
  %v364 = vsel %vm274, %v314, 0.0
  %v365 = vsel %vm275, %v315, 0.0
  %v366 = vsel %vm274, %v316, 0.0
  %v367 = vsel %vm275, %v317, 0.0
  %v368 = vsel %vm274, %v318, 0.0
  %v369 = vsel %vm275, %v319, 0.0
  %v370 = vsel %vm274, %v320, 0.0
  %v371 = vsel %vm275, %v321, 0.0
  %v372 = vsel %vm274, %v322, 0.0
  %v373 = vsel %vm275, %v323, 0.0
  %v374 = vsel %vm274, %v324, 0.0
  %v375 = vsel %vm275, %v325, 0.0
  %v376 = vld [vmem:[%s2] sm:$0xff]
  %v377 = vld [vmem:[%s2 + $0x8] sm:$0xff]
  %v378 = vld [vmem:[%s2 + $0x10] sm:$0xff]
  %v379 = vld [vmem:[%s2 + $0x18] sm:$0xff]
  %v380 = vld [vmem:[%s2 + $0x20] sm:$0xff]
  %v381 = vld [vmem:[%s2 + $0x28] sm:$0xff]
  %v382 = vld [vmem:[%s2 + $0x30] sm:$0xff]
  %v383 = vld [vmem:[%s2 + $0x38] sm:$0xff]
  %v384 = vld [vmem:[%s2 + $0x40] sm:$0xff]
  %v385 = vld [vmem:[%s2 + $0x48] sm:$0xff]
  %v386 = vld [vmem:[%s2 + $0x50] sm:$0xff]
  %v387 = vld [vmem:[%s2 + $0x58] sm:$0xff]
  %v388 = vld [vmem:[%s2 + $0x60] sm:$0xff]
  %v389 = vld [vmem:[%s2 + $0x68] sm:$0xff]
  %v390 = vld [vmem:[%s2 + $0x70] sm:$0xff]
  %v391 = vld [vmem:[%s2 + $0x78] sm:$0xff]
  %v392 = vld [vmem:[%s2 + $0x80] sm:$0xff]
  %v393 = vld [vmem:[%s2 + $0x88] sm:$0xff]
  %v394 = vld [vmem:[%s2 + $0x90] sm:$0xff]
  %v395 = vld [vmem:[%s2 + $0x98] sm:$0xff]
  %v396 = vld [vmem:[%s2 + $0xa0] sm:$0xff]
  %v397 = vld [vmem:[%s2 + $0xa8] sm:$0xff]
  %v398 = vld [vmem:[%s2 + $0xb0] sm:$0xff]
  %v399 = vld [vmem:[%s2 + $0xb8] sm:$0xff]
  %v400 = vld [vmem:[%s2 + $0xc0] sm:$0xff]
  %v401 = vld [vmem:[%s2 + $0xc8] sm:$0xff]
  %v402 = vld [vmem:[%s2 + $0xd0] sm:$0xff]
  %v403 = vld [vmem:[%s2 + $0xd8] sm:$0xff]
  %v404 = vld [vmem:[%s2 + $0xe0] sm:$0xff]
  %v405 = vld [vmem:[%s2 + $0xe8] sm:$0xff]
  %v406 = vld [vmem:[%s2 + $0xf0] sm:$0xff]
  %v407 = vld [vmem:[%s2 + $0xf8] sm:$0xff]
  %v408 = vld [vmem:[%s2 + $0x100] sm:$0xff]
  %v409 = vld [vmem:[%s2 + $0x108] sm:$0xff]
  %v410 = vld [vmem:[%s2 + $0x110] sm:$0xff]
  %v411 = vld [vmem:[%s2 + $0x118] sm:$0xff]
  %v412 = vld [vmem:[%s2 + $0x120] sm:$0xff]
  %v413 = vld [vmem:[%s2 + $0x128] sm:$0xff]
  %v414 = vld [vmem:[%s2 + $0x130] sm:$0xff]
  %v415 = vld [vmem:[%s2 + $0x138] sm:$0xff]
  %v416 = vld [vmem:[%s2 + $0x140] sm:$0xff]
  %v417 = vld [vmem:[%s2 + $0x148] sm:$0xff]
  %v418 = vld [vmem:[%s2 + $0x150] sm:$0xff]
  %v419 = vld [vmem:[%s2 + $0x158] sm:$0xff]
  %v420 = vld [vmem:[%s2 + $0x160] sm:$0xff]
  %v421 = vld [vmem:[%s2 + $0x168] sm:$0xff]
  %v422 = vld [vmem:[%s2 + $0x170] sm:$0xff]
  %v423 = vld [vmem:[%s2 + $0x178] sm:$0xff]
  %v424 = vld [vmem:[%s2 + $0x180] sm:$0xff]
  %v425 = vld [vmem:[%s2 + $0x188] sm:$0xff]
  %v426 = vld [vmem:[%s2 + $0x190] sm:$0xff]
  %v427 = vld [vmem:[%s2 + $0x198] sm:$0xff]
  %v428 = vld [vmem:[%s2 + $0x1a0] sm:$0xff]
  %v429 = vld [vmem:[%s2 + $0x1a8] sm:$0xff]
  %v430 = vld [vmem:[%s2 + $0x1b0] sm:$0xff]
  %v431 = vld [vmem:[%s2 + $0x1b8] sm:$0xff]
  %v432 = vld [vmem:[%s2 + $0x1c0] sm:$0xff]
  %v433 = vld [vmem:[%s2 + $0x1c8] sm:$0xff]
  %v434 = vld [vmem:[%s2 + $0x1d0] sm:$0xff]
  %v435 = vld [vmem:[%s2 + $0x1d8] sm:$0xff]
  %v436 = vld [vmem:[%s2 + $0x1e0] sm:$0xff]
  %v437 = vld [vmem:[%s2 + $0x1e8] sm:$0xff]
  %v438 = vld [vmem:[%s2 + $0x1f0] sm:$0xff]
  %v439 = vld [vmem:[%s2 + $0x1f8] sm:$0xff]
  %v440 = vld [vmem:[%s2 + $0x200] sm:$0xff]
  %v441 = vld [vmem:[%s2 + $0x208] sm:$0xff]
  %v442 = vld [vmem:[%s2 + $0x210] sm:$0xff]
  %v443 = vld [vmem:[%s2 + $0x218] sm:$0xff]
  %v444 = vld [vmem:[%s2 + $0x220] sm:$0xff]
  %v445 = vld [vmem:[%s2 + $0x228] sm:$0xff]
  %v446 = vld [vmem:[%s2 + $0x230] sm:$0xff]
  %v447 = vld [vmem:[%s2 + $0x238] sm:$0xff]
  %v448 = vld [vmem:[%s2 + $0x240] sm:$0xff]
  %v449 = vld [vmem:[%s2 + $0x248] sm:$0xff]
  %v450 = vld [vmem:[%s2 + $0x250] sm:$0xff]
  %v451 = vld [vmem:[%s2 + $0x258] sm:$0xff]
  %v452 = vld [vmem:[%s2 + $0x260] sm:$0xff]
  %v453 = vld [vmem:[%s2 + $0x268] sm:$0xff]
  %v454 = vld [vmem:[%s2 + $0x270] sm:$0xff]
  %v455 = vld [vmem:[%s2 + $0x278] sm:$0xff]
  %v456 = vld [vmem:[%s2 + $0x280] sm:$0xff]
  %v457 = vld [vmem:[%s2 + $0x288] sm:$0xff]
  %v458 = vld [vmem:[%s2 + $0x290] sm:$0xff]
  %v459 = vld [vmem:[%s2 + $0x298] sm:$0xff]
  %v460 = vld [vmem:[%s2 + $0x2a0] sm:$0xff]
  %v461 = vld [vmem:[%s2 + $0x2a8] sm:$0xff]
  %v462 = vld [vmem:[%s2 + $0x2b0] sm:$0xff]
  %v463 = vld [vmem:[%s2 + $0x2b8] sm:$0xff]
  %v464 = vld [vmem:[%s2 + $0x2c0] sm:$0xff]
  %v465 = vld [vmem:[%s2 + $0x2c8] sm:$0xff]
  %v466 = vld [vmem:[%s2 + $0x2d0] sm:$0xff]
  %v467 = vld [vmem:[%s2 + $0x2d8] sm:$0xff]
  %v468 = vld [vmem:[%s2 + $0x2e0] sm:$0xff]
  %v469 = vld [vmem:[%s2 + $0x2e8] sm:$0xff]
  %v470 = vld [vmem:[%s2 + $0x2f0] sm:$0xff]
  %v471 = vld [vmem:[%s2 + $0x2f8] sm:$0xff]
  %v472 = vld [vmem:[%s2 + $0x300] sm:$0xff]
  %v473 = vld [vmem:[%s2 + $0x308] sm:$0xff]
  %v474 = vld [vmem:[%s2 + $0x310] sm:$0xff]
  %v475 = vld [vmem:[%s2 + $0x318] sm:$0xff]
  %v476 = vld [vmem:[%s2 + $0x320] sm:$0xff]
  %v477 = vld [vmem:[%s2 + $0x328] sm:$0xff]
  %v478 = vld [vmem:[%s2 + $0x330] sm:$0xff]
  %v479 = vld [vmem:[%s2 + $0x338] sm:$0xff]
  %v480 = vld [vmem:[%s2 + $0x340] sm:$0xff]
  %v481 = vld [vmem:[%s2 + $0x348] sm:$0xff]
  %v482 = vld [vmem:[%s2 + $0x350] sm:$0xff]
  %v483 = vld [vmem:[%s2 + $0x358] sm:$0xff]
  %v484 = vld [vmem:[%s2 + $0x360] sm:$0xff]
  %v485 = vld [vmem:[%s2 + $0x368] sm:$0xff]
  %v486 = vld [vmem:[%s2 + $0x370] sm:$0xff]
  %v487 = vld [vmem:[%s2 + $0x378] sm:$0xff]
  %v488 = vld [vmem:[%s2 + $0x380] sm:$0xff]
  %v489 = vld [vmem:[%s2 + $0x388] sm:$0xff]
  %v490 = vld [vmem:[%s2 + $0x390] sm:$0xff]
  %v491 = vld [vmem:[%s2 + $0x398] sm:$0xff]
  %v492 = vld [vmem:[%s2 + $0x3a0] sm:$0xff]
  %v493 = vld [vmem:[%s2 + $0x3a8] sm:$0xff]
  %v494 = vld [vmem:[%s2 + $0x3b0] sm:$0xff]
  %v495 = vld [vmem:[%s2 + $0x3b8] sm:$0xff]
  %v496 = vld [vmem:[%s2 + $0x3c0] sm:$0xff]
  %v497 = vld [vmem:[%s2 + $0x3c8] sm:$0xff]
  %v498 = vld [vmem:[%s2 + $0x3d0] sm:$0xff]
  %v499 = vld [vmem:[%s2 + $0x3d8] sm:$0xff]
  %v500 = vld [vmem:[%s2 + $0x3e0] sm:$0xff]
  %v501 = vld [vmem:[%s2 + $0x3e8] sm:$0xff]
  %v502 = vld [vmem:[%s2 + $0x3f0] sm:$0xff]
  %v503 = vld [vmem:[%s2 + $0x3f8] sm:$0xff]
  %v504 = vld [vmem:[%s2 + $0x400] sm:$0xff]
  %v505 = vld [vmem:[%s2 + $0x408] sm:$0xff]
  %v506 = vld [vmem:[%s2 + $0x410] sm:$0xff]
  %v507 = vld [vmem:[%s2 + $0x418] sm:$0xff]
  %v508 = vld [vmem:[%s2 + $0x420] sm:$0xff]
  %v509 = vld [vmem:[%s2 + $0x428] sm:$0xff]
  %v510 = vld [vmem:[%s2 + $0x430] sm:$0xff]
  %v511 = vld [vmem:[%s2 + $0x438] sm:$0xff]
  %v512 = vld [vmem:[%s2 + $0x440] sm:$0xff]
  %v513 = vld [vmem:[%s2 + $0x448] sm:$0xff]
  %v514 = vld [vmem:[%s2 + $0x450] sm:$0xff]
  %v515 = vld [vmem:[%s2 + $0x458] sm:$0xff]
  %v516 = vld [vmem:[%s2 + $0x460] sm:$0xff]
  %v517 = vld [vmem:[%s2 + $0x468] sm:$0xff]
  %v518 = vld [vmem:[%s2 + $0x470] sm:$0xff]
  %v519 = vld [vmem:[%s2 + $0x478] sm:$0xff]
  %v520 = vld [vmem:[%s2 + $0x480] sm:$0xff]
  %v521 = vld [vmem:[%s2 + $0x488] sm:$0xff]
  %v522 = vld [vmem:[%s2 + $0x490] sm:$0xff]
  %v523 = vld [vmem:[%s2 + $0x498] sm:$0xff]
  %v524 = vld [vmem:[%s2 + $0x4a0] sm:$0xff]
  %v525 = vld [vmem:[%s2 + $0x4a8] sm:$0xff]
  %v526 = vpack.c.bf16 %v328, %v326
  %v527 = vpack.c.bf16 %v329, %v327
  %v528 = vpack.c.bf16 %v332, %v330
  %v529 = vpack.c.bf16 %v333, %v331
  %v530 = vpack.c.bf16 %v336, %v334
  %v531 = vpack.c.bf16 %v337, %v335
  %v532 = vpack.c.bf16 %v340, %v338
  %v533 = vpack.c.bf16 %v341, %v339
  %v534 = vpack.c.bf16 %v344, %v342
  %v535 = vpack.c.bf16 %v345, %v343
  %v536 = vpack.c.bf16 %v348, %v346
  %v537 = vpack.c.bf16 %v349, %v347
  %v538 = vpack.c.bf16 %v352, %v350
  %v539 = vpack.c.bf16 %v353, %v351
  %v540 = vpack.c.bf16 %v356, %v354
  %v541 = vpack.c.bf16 %v357, %v355
  %v542 = vpack.c.bf16 %v360, %v358
  %v543 = vpack.c.bf16 %v361, %v359
  %v544 = vpack.c.bf16 %v364, %v362
  %v545 = vpack.c.bf16 %v365, %v363
  %v546 = vpack.c.bf16 %v368, %v366
  %v547 = vpack.c.bf16 %v369, %v367
  %v548 = vpack.c.bf16 %v372, %v370
  %v549 = vpack.c.bf16 %v373, %v371
  %v550 = vpack.c.bf16 %v374, %v374
  %v551 = vpack.c.bf16 %v375, %v375
  %v702 = vunpack.c.l.b16 %v376
  %v703 = vunpack.c.h.b16 %v376
  %v704 = vunpack.c.l.b16 %v377
  %v705 = vunpack.c.h.b16 %v377
  %v706 = vunpack.c.l.b16 %v378
  %v707 = vunpack.c.h.b16 %v378
  %v708 = vunpack.c.l.b16 %v379
  %v709 = vunpack.c.h.b16 %v379
  %v710 = vunpack.c.l.b16 %v380
  %v711 = vunpack.c.h.b16 %v380
  %v712 = vunpack.c.l.b16 %v381
  %v713 = vunpack.c.h.b16 %v381
  %v714 = vunpack.c.l.b16 %v382
  %v715 = vunpack.c.h.b16 %v382
  %v716 = vunpack.c.l.b16 %v383
  %v717 = vunpack.c.h.b16 %v383
  %v718 = vunpack.c.l.b16 %v384
  %v719 = vunpack.c.h.b16 %v384
  %v720 = vunpack.c.l.b16 %v385
  %v721 = vunpack.c.h.b16 %v385
  %v722 = vunpack.c.l.b16 %v386
  %v723 = vunpack.c.h.b16 %v386
  %v724 = vunpack.c.l.b16 %v387
  %v725 = vunpack.c.h.b16 %v387
  %v726 = vunpack.c.l.b16 %v388
  %v727 = vunpack.c.h.b16 %v388
  %v728 = vunpack.c.l.b16 %v389
  %v729 = vunpack.c.h.b16 %v389
  %v730 = vunpack.c.l.b16 %v390
  %v731 = vunpack.c.h.b16 %v390
  %v732 = vunpack.c.l.b16 %v391
  %v733 = vunpack.c.h.b16 %v391
  %v734 = vunpack.c.l.b16 %v392
  %v735 = vunpack.c.h.b16 %v392
  %v736 = vunpack.c.l.b16 %v393
  %v737 = vunpack.c.h.b16 %v393
  %v738 = vunpack.c.l.b16 %v394
  %v739 = vunpack.c.h.b16 %v394
  %v740 = vunpack.c.l.b16 %v395
  %v741 = vunpack.c.h.b16 %v395
  %v742 = vunpack.c.l.b16 %v396
  %v743 = vunpack.c.h.b16 %v396
  %v744 = vunpack.c.l.b16 %v397
  %v745 = vunpack.c.h.b16 %v397
  %v746 = vunpack.c.l.b16 %v398
  %v747 = vunpack.c.h.b16 %v398
  %v748 = vunpack.c.l.b16 %v399
  %v749 = vunpack.c.h.b16 %v399
  %v750 = vunpack.c.l.b16 %v400
  %v751 = vunpack.c.h.b16 %v400
  %v752 = vunpack.c.l.b16 %v401
  %v753 = vunpack.c.h.b16 %v401
  %v754 = vunpack.c.l.b16 %v402
  %v755 = vunpack.c.h.b16 %v402
  %v756 = vunpack.c.l.b16 %v403
  %v757 = vunpack.c.h.b16 %v403
  %v758 = vunpack.c.l.b16 %v404
  %v759 = vunpack.c.h.b16 %v404
  %v760 = vunpack.c.l.b16 %v405
  %v761 = vunpack.c.h.b16 %v405
  %v762 = vunpack.c.l.b16 %v406
  %v763 = vunpack.c.h.b16 %v406
  %v764 = vunpack.c.l.b16 %v407
  %v765 = vunpack.c.h.b16 %v407
  %v766 = vunpack.c.l.b16 %v408
  %v767 = vunpack.c.h.b16 %v408
  %v768 = vunpack.c.l.b16 %v409
  %v769 = vunpack.c.h.b16 %v409
  %v770 = vunpack.c.l.b16 %v410
  %v771 = vunpack.c.h.b16 %v410
  %v772 = vunpack.c.l.b16 %v411
  %v773 = vunpack.c.h.b16 %v411
  %v774 = vunpack.c.l.b16 %v412
  %v775 = vunpack.c.h.b16 %v412
  %v776 = vunpack.c.l.b16 %v413
  %v777 = vunpack.c.h.b16 %v413
  %v778 = vunpack.c.l.b16 %v414
  %v779 = vunpack.c.h.b16 %v414
  %v780 = vunpack.c.l.b16 %v415
  %v781 = vunpack.c.h.b16 %v415
  %v782 = vunpack.c.l.b16 %v416
  %v783 = vunpack.c.h.b16 %v416
  %v784 = vunpack.c.l.b16 %v417
  %v785 = vunpack.c.h.b16 %v417
  %v786 = vunpack.c.l.b16 %v418
  %v787 = vunpack.c.h.b16 %v418
  %v788 = vunpack.c.l.b16 %v419
  %v789 = vunpack.c.h.b16 %v419
  %v790 = vunpack.c.l.b16 %v420
  %v791 = vunpack.c.h.b16 %v420
  %v792 = vunpack.c.l.b16 %v421
  %v793 = vunpack.c.h.b16 %v421
  %v794 = vunpack.c.l.b16 %v422
  %v795 = vunpack.c.h.b16 %v422
  %v796 = vunpack.c.l.b16 %v423
  %v797 = vunpack.c.h.b16 %v423
  %v798 = vunpack.c.l.b16 %v424
  %v799 = vunpack.c.h.b16 %v424
  %v800 = vunpack.c.l.b16 %v425
  %v801 = vunpack.c.h.b16 %v425
  %v802 = vunpack.c.l.b16 %v426
  %v803 = vunpack.c.h.b16 %v426
  %v804 = vunpack.c.l.b16 %v427
  %v805 = vunpack.c.h.b16 %v427
  %v806 = vunpack.c.l.b16 %v428
  %v807 = vunpack.c.h.b16 %v428
  %v808 = vunpack.c.l.b16 %v429
  %v809 = vunpack.c.h.b16 %v429
  %v810 = vunpack.c.l.b16 %v430
  %v811 = vunpack.c.h.b16 %v430
  %v812 = vunpack.c.l.b16 %v431
  %v813 = vunpack.c.h.b16 %v431
  %v814 = vunpack.c.l.b16 %v432
  %v815 = vunpack.c.h.b16 %v432
  %v816 = vunpack.c.l.b16 %v433
  %v817 = vunpack.c.h.b16 %v433
  %v818 = vunpack.c.l.b16 %v434
  %v819 = vunpack.c.h.b16 %v434
  %v820 = vunpack.c.l.b16 %v435
  %v821 = vunpack.c.h.b16 %v435
  %v822 = vunpack.c.l.b16 %v436
  %v823 = vunpack.c.h.b16 %v436
  %v824 = vunpack.c.l.b16 %v437
  %v825 = vunpack.c.h.b16 %v437
  %v826 = vunpack.c.l.b16 %v438
  %v827 = vunpack.c.h.b16 %v438
  %v828 = vunpack.c.l.b16 %v439
  %v829 = vunpack.c.h.b16 %v439
  %v830 = vunpack.c.l.b16 %v440
  %v831 = vunpack.c.h.b16 %v440
  %v832 = vunpack.c.l.b16 %v441
  %v833 = vunpack.c.h.b16 %v441
  %v834 = vunpack.c.l.b16 %v442
  %v835 = vunpack.c.h.b16 %v442
  %v836 = vunpack.c.l.b16 %v443
  %v837 = vunpack.c.h.b16 %v443
  %v838 = vunpack.c.l.b16 %v444
  %v839 = vunpack.c.h.b16 %v444
  %v840 = vunpack.c.l.b16 %v445
  %v841 = vunpack.c.h.b16 %v445
  %v842 = vunpack.c.l.b16 %v446
  %v843 = vunpack.c.h.b16 %v446
  %v844 = vunpack.c.l.b16 %v447
  %v845 = vunpack.c.h.b16 %v447
  %v846 = vunpack.c.l.b16 %v448
  %v847 = vunpack.c.h.b16 %v448
  %v848 = vunpack.c.l.b16 %v449
  %v849 = vunpack.c.h.b16 %v449
  %v850 = vunpack.c.l.b16 %v450
  %v851 = vunpack.c.h.b16 %v450
  %v852 = vunpack.c.l.b16 %v451
  %v853 = vunpack.c.h.b16 %v451
  %v854 = vunpack.c.l.b16 %v452
  %v855 = vunpack.c.h.b16 %v452
  %v856 = vunpack.c.l.b16 %v453
  %v857 = vunpack.c.h.b16 %v453
  %v858 = vunpack.c.l.b16 %v454
  %v859 = vunpack.c.h.b16 %v454
  %v860 = vunpack.c.l.b16 %v455
  %v861 = vunpack.c.h.b16 %v455
  %v862 = vunpack.c.l.b16 %v456
  %v863 = vunpack.c.h.b16 %v456
  %v864 = vunpack.c.l.b16 %v457
  %v865 = vunpack.c.h.b16 %v457
  %v866 = vunpack.c.l.b16 %v458
  %v867 = vunpack.c.h.b16 %v458
  %v868 = vunpack.c.l.b16 %v459
  %v869 = vunpack.c.h.b16 %v459
  %v870 = vunpack.c.l.b16 %v460
  %v871 = vunpack.c.h.b16 %v460
  %v872 = vunpack.c.l.b16 %v461
  %v873 = vunpack.c.h.b16 %v461
  %v874 = vunpack.c.l.b16 %v462
  %v875 = vunpack.c.h.b16 %v462
  %v876 = vunpack.c.l.b16 %v463
  %v877 = vunpack.c.h.b16 %v463
  %v878 = vunpack.c.l.b16 %v464
  %v879 = vunpack.c.h.b16 %v464
  %v880 = vunpack.c.l.b16 %v465
  %v881 = vunpack.c.h.b16 %v465
  %v882 = vunpack.c.l.b16 %v466
  %v883 = vunpack.c.h.b16 %v466
  %v884 = vunpack.c.l.b16 %v467
  %v885 = vunpack.c.h.b16 %v467
  %v886 = vunpack.c.l.b16 %v468
  %v887 = vunpack.c.h.b16 %v468
  %v888 = vunpack.c.l.b16 %v469
  %v889 = vunpack.c.h.b16 %v469
  %v890 = vunpack.c.l.b16 %v470
  %v891 = vunpack.c.h.b16 %v470
  %v892 = vunpack.c.l.b16 %v471
  %v893 = vunpack.c.h.b16 %v471
  %v894 = vunpack.c.l.b16 %v472
  %v895 = vunpack.c.h.b16 %v472
  %v896 = vunpack.c.l.b16 %v473
  %v897 = vunpack.c.h.b16 %v473
  %v898 = vunpack.c.l.b16 %v474
  %v899 = vunpack.c.h.b16 %v474
  %v900 = vunpack.c.l.b16 %v475
  %v901 = vunpack.c.h.b16 %v475
  %v902 = vunpack.c.l.b16 %v476
  %v903 = vunpack.c.h.b16 %v476
  %v904 = vunpack.c.l.b16 %v477
  %v905 = vunpack.c.h.b16 %v477
  %v906 = vunpack.c.l.b16 %v478
  %v907 = vunpack.c.h.b16 %v478
  %v908 = vunpack.c.l.b16 %v479
  %v909 = vunpack.c.h.b16 %v479
  %v910 = vunpack.c.l.b16 %v480
  %v911 = vunpack.c.h.b16 %v480
  %v912 = vunpack.c.l.b16 %v481
  %v913 = vunpack.c.h.b16 %v481
  %v914 = vunpack.c.l.b16 %v482
  %v915 = vunpack.c.h.b16 %v482
  %v916 = vunpack.c.l.b16 %v483
  %v917 = vunpack.c.h.b16 %v483
  %v918 = vunpack.c.l.b16 %v484
  %v919 = vunpack.c.h.b16 %v484
  %v920 = vunpack.c.l.b16 %v485
  %v921 = vunpack.c.h.b16 %v485
  %v922 = vunpack.c.l.b16 %v486
  %v923 = vunpack.c.h.b16 %v486
  %v924 = vunpack.c.l.b16 %v487
  %v925 = vunpack.c.h.b16 %v487
  %v926 = vunpack.c.l.b16 %v488
  %v927 = vunpack.c.h.b16 %v488
  %v928 = vunpack.c.l.b16 %v489
  %v929 = vunpack.c.h.b16 %v489
  %v930 = vunpack.c.l.b16 %v490
  %v931 = vunpack.c.h.b16 %v490
  %v932 = vunpack.c.l.b16 %v491
  %v933 = vunpack.c.h.b16 %v491
  %v934 = vunpack.c.l.b16 %v492
  %v935 = vunpack.c.h.b16 %v492
  %v936 = vunpack.c.l.b16 %v493
  %v937 = vunpack.c.h.b16 %v493
  %v938 = vunpack.c.l.b16 %v494
  %v939 = vunpack.c.h.b16 %v494
  %v940 = vunpack.c.l.b16 %v495
  %v941 = vunpack.c.h.b16 %v495
  %v942 = vunpack.c.l.b16 %v496
  %v943 = vunpack.c.h.b16 %v496
  %v944 = vunpack.c.l.b16 %v497
  %v945 = vunpack.c.h.b16 %v497
  %v946 = vunpack.c.l.b16 %v498
  %v947 = vunpack.c.h.b16 %v498
  %v948 = vunpack.c.l.b16 %v499
  %v949 = vunpack.c.h.b16 %v499
  %v950 = vunpack.c.l.b16 %v500
  %v951 = vunpack.c.h.b16 %v500
  %v952 = vunpack.c.l.b16 %v501
  %v953 = vunpack.c.h.b16 %v501
  %v954 = vunpack.c.l.b16 %v502
  %v955 = vunpack.c.h.b16 %v502
  %v956 = vunpack.c.l.b16 %v503
  %v957 = vunpack.c.h.b16 %v503
  %v958 = vunpack.c.l.b16 %v504
  %v959 = vunpack.c.h.b16 %v504
  %v960 = vunpack.c.l.b16 %v505
  %v961 = vunpack.c.h.b16 %v505
  %v962 = vunpack.c.l.b16 %v506
  %v963 = vunpack.c.h.b16 %v506
  %v964 = vunpack.c.l.b16 %v507
  %v965 = vunpack.c.h.b16 %v507
  %v966 = vunpack.c.l.b16 %v508
  %v967 = vunpack.c.h.b16 %v508
  %v968 = vunpack.c.l.b16 %v509
  %v969 = vunpack.c.h.b16 %v509
  %v970 = vunpack.c.l.b16 %v510
  %v971 = vunpack.c.h.b16 %v510
  %v972 = vunpack.c.l.b16 %v511
  %v973 = vunpack.c.h.b16 %v511
  %v974 = vunpack.c.l.b16 %v512
  %v975 = vunpack.c.h.b16 %v512
  %v976 = vunpack.c.l.b16 %v513
  %v977 = vunpack.c.h.b16 %v513
  %v978 = vunpack.c.l.b16 %v514
  %v979 = vunpack.c.h.b16 %v514
  %v980 = vunpack.c.l.b16 %v515
  %v981 = vunpack.c.h.b16 %v515
  %v982 = vunpack.c.l.b16 %v516
  %v983 = vunpack.c.h.b16 %v516
  %v984 = vunpack.c.l.b16 %v517
  %v985 = vunpack.c.h.b16 %v517
  %v986 = vunpack.c.l.b16 %v518
  %v987 = vunpack.c.h.b16 %v518
  %v988 = vunpack.c.l.b16 %v519
  %v989 = vunpack.c.h.b16 %v519
  %v990 = vunpack.c.l.b16 %v520
  %v991 = vunpack.c.h.b16 %v520
  %v992 = vunpack.c.l.b16 %v521
  %v993 = vunpack.c.h.b16 %v521
  %v994 = vunpack.c.l.b16 %v522
  %v995 = vunpack.c.h.b16 %v522
  %v996 = vunpack.c.l.b16 %v523
  %v997 = vunpack.c.h.b16 %v523
  %v998 = vunpack.c.l.b16 %v524
  %v999 = vunpack.c.h.b16 %v524
  %v1000 = vunpack.c.l.b16 %v525
  %v1001 = vunpack.c.h.b16 %v525
  %v1002 = vpack.c.b16 %v704, %v702
  %v1003 = vpack.c.b16 %v705, %v703
  %v1004 = vpack.c.b16 %v708, %v706
  %v1005 = vpack.c.b16 %v709, %v707
  %v1006 = vpack.c.b16 %v712, %v710
  %v1007 = vpack.c.b16 %v713, %v711
  %v1008 = vpack.c.b16 %v716, %v714
  %v1009 = vpack.c.b16 %v717, %v715
  %v1010 = vpack.c.b16 %v720, %v718
  %v1011 = vpack.c.b16 %v721, %v719
  %v1012 = vpack.c.b16 %v724, %v722
  %v1013 = vpack.c.b16 %v725, %v723
  %v1014 = vpack.c.b16 %v728, %v726
  %v1015 = vpack.c.b16 %v729, %v727
  %v1016 = vpack.c.b16 %v732, %v730
  %v1017 = vpack.c.b16 %v733, %v731
  %v1018 = vpack.c.b16 %v736, %v734
  %v1019 = vpack.c.b16 %v737, %v735
  %v1020 = vpack.c.b16 %v740, %v738
  %v1021 = vpack.c.b16 %v741, %v739
  %v1022 = vpack.c.b16 %v744, %v742
  %v1023 = vpack.c.b16 %v745, %v743
  %v1024 = vpack.c.b16 %v748, %v746
  %v1025 = vpack.c.b16 %v749, %v747
  %v1026 = vpack.c.b16 %v752, %v750
  %v1027 = vpack.c.b16 %v753, %v751
  %v1028 = vpack.c.b16 %v756, %v754
  %v1029 = vpack.c.b16 %v757, %v755
  %v1030 = vpack.c.b16 %v760, %v758
  %v1031 = vpack.c.b16 %v761, %v759
  %v1032 = vpack.c.b16 %v764, %v762
  %v1033 = vpack.c.b16 %v765, %v763
  %v1034 = vpack.c.b16 %v768, %v766
  %v1035 = vpack.c.b16 %v769, %v767
  %v1036 = vpack.c.b16 %v772, %v770
  %v1037 = vpack.c.b16 %v773, %v771
  %v1038 = vpack.c.b16 %v776, %v774
  %v1039 = vpack.c.b16 %v777, %v775
  %v1040 = vpack.c.b16 %v780, %v778
  %v1041 = vpack.c.b16 %v781, %v779
  %v1042 = vpack.c.b16 %v784, %v782
  %v1043 = vpack.c.b16 %v785, %v783
  %v1044 = vpack.c.b16 %v788, %v786
  %v1045 = vpack.c.b16 %v789, %v787
  %v1046 = vpack.c.b16 %v792, %v790
  %v1047 = vpack.c.b16 %v793, %v791
  %v1048 = vpack.c.b16 %v796, %v794
  %v1049 = vpack.c.b16 %v797, %v795
  %v1050 = vpack.c.b16 %v800, %v798
  %v1051 = vpack.c.b16 %v801, %v799
  %v1052 = vpack.c.b16 %v804, %v802
  %v1053 = vpack.c.b16 %v805, %v803
  %v1054 = vpack.c.b16 %v808, %v806
  %v1055 = vpack.c.b16 %v809, %v807
  %v1056 = vpack.c.b16 %v812, %v810
  %v1057 = vpack.c.b16 %v813, %v811
  %v1058 = vpack.c.b16 %v816, %v814
  %v1059 = vpack.c.b16 %v817, %v815
  %v1060 = vpack.c.b16 %v820, %v818
  %v1061 = vpack.c.b16 %v821, %v819
  %v1062 = vpack.c.b16 %v824, %v822
  %v1063 = vpack.c.b16 %v825, %v823
  %v1064 = vpack.c.b16 %v828, %v826
  %v1065 = vpack.c.b16 %v829, %v827
  %v1066 = vpack.c.b16 %v832, %v830
  %v1067 = vpack.c.b16 %v833, %v831
  %v1068 = vpack.c.b16 %v836, %v834
  %v1069 = vpack.c.b16 %v837, %v835
  %v1070 = vpack.c.b16 %v840, %v838
  %v1071 = vpack.c.b16 %v841, %v839
  %v1072 = vpack.c.b16 %v844, %v842
  %v1073 = vpack.c.b16 %v845, %v843
  %v1074 = vpack.c.b16 %v848, %v846
  %v1075 = vpack.c.b16 %v849, %v847
  %v1076 = vpack.c.b16 %v852, %v850
  %v1077 = vpack.c.b16 %v853, %v851
  %v1078 = vpack.c.b16 %v856, %v854
  %v1079 = vpack.c.b16 %v857, %v855
  %v1080 = vpack.c.b16 %v860, %v858
  %v1081 = vpack.c.b16 %v861, %v859
  %v1082 = vpack.c.b16 %v864, %v862
  %v1083 = vpack.c.b16 %v865, %v863
  %v1084 = vpack.c.b16 %v868, %v866
  %v1085 = vpack.c.b16 %v869, %v867
  %v1086 = vpack.c.b16 %v872, %v870
  %v1087 = vpack.c.b16 %v873, %v871
  %v1088 = vpack.c.b16 %v876, %v874
  %v1089 = vpack.c.b16 %v877, %v875
  %v1090 = vpack.c.b16 %v880, %v878
  %v1091 = vpack.c.b16 %v881, %v879
  %v1092 = vpack.c.b16 %v884, %v882
  %v1093 = vpack.c.b16 %v885, %v883
  %v1094 = vpack.c.b16 %v888, %v886
  %v1095 = vpack.c.b16 %v889, %v887
  %v1096 = vpack.c.b16 %v892, %v890
  %v1097 = vpack.c.b16 %v893, %v891
  %v1098 = vpack.c.b16 %v896, %v894
  %v1099 = vpack.c.b16 %v897, %v895
  %v1100 = vpack.c.b16 %v900, %v898
  %v1101 = vpack.c.b16 %v901, %v899
  %v1102 = vpack.c.b16 %v904, %v902
  %v1103 = vpack.c.b16 %v905, %v903
  %v1104 = vpack.c.b16 %v908, %v906
  %v1105 = vpack.c.b16 %v909, %v907
  %v1106 = vpack.c.b16 %v912, %v910
  %v1107 = vpack.c.b16 %v913, %v911
  %v1108 = vpack.c.b16 %v916, %v914
  %v1109 = vpack.c.b16 %v917, %v915
  %v1110 = vpack.c.b16 %v920, %v918
  %v1111 = vpack.c.b16 %v921, %v919
  %v1112 = vpack.c.b16 %v924, %v922
  %v1113 = vpack.c.b16 %v925, %v923
  %v1114 = vpack.c.b16 %v928, %v926
  %v1115 = vpack.c.b16 %v929, %v927
  %v1116 = vpack.c.b16 %v932, %v930
  %v1117 = vpack.c.b16 %v933, %v931
  %v1118 = vpack.c.b16 %v936, %v934
  %v1119 = vpack.c.b16 %v937, %v935
  %v1120 = vpack.c.b16 %v940, %v938
  %v1121 = vpack.c.b16 %v941, %v939
  %v1122 = vpack.c.b16 %v944, %v942
  %v1123 = vpack.c.b16 %v945, %v943
  %v1124 = vpack.c.b16 %v948, %v946
  %v1125 = vpack.c.b16 %v949, %v947
  %v1126 = vpack.c.b16 %v952, %v950
  %v1127 = vpack.c.b16 %v953, %v951
  %v1128 = vpack.c.b16 %v956, %v954
  %v1129 = vpack.c.b16 %v957, %v955
  %v1130 = vpack.c.b16 %v960, %v958
  %v1131 = vpack.c.b16 %v961, %v959
  %v1132 = vpack.c.b16 %v964, %v962
  %v1133 = vpack.c.b16 %v965, %v963
  %v1134 = vpack.c.b16 %v968, %v966
  %v1135 = vpack.c.b16 %v969, %v967
  %v1136 = vpack.c.b16 %v972, %v970
  %v1137 = vpack.c.b16 %v973, %v971
  %v1138 = vpack.c.b16 %v976, %v974
  %v1139 = vpack.c.b16 %v977, %v975
  %v1140 = vpack.c.b16 %v980, %v978
  %v1141 = vpack.c.b16 %v981, %v979
  %v1142 = vpack.c.b16 %v984, %v982
  %v1143 = vpack.c.b16 %v985, %v983
  %v1144 = vpack.c.b16 %v988, %v986
  %v1145 = vpack.c.b16 %v989, %v987
  %v1146 = vpack.c.b16 %v992, %v990
  %v1147 = vpack.c.b16 %v993, %v991
  %v1148 = vpack.c.b16 %v996, %v994
  %v1149 = vpack.c.b16 %v997, %v995
  %v1150 = vpack.c.b16 %v1000, %v998
  %v1151 = vpack.c.b16 %v1001, %v999
  %vm1227 = vcmask 588800
  %v1229 = vsel %vm1227, %v1003, 0
  %v1232 = vsel %vm1227, %v1005, 0
  %v1235 = vsel %vm1227, %v1007, 0
  %v1238 = vsel %vm1227, %v1009, 0
  %v1241 = vsel %vm1227, %v1011, 0
  %v1244 = vsel %vm1227, %v1013, 0
  %v1247 = vsel %vm1227, %v1015, 0
  %v1250 = vsel %vm1227, %v1017, 0
  %v1253 = vsel %vm1227, %v1019, 0
  %v1256 = vsel %vm1227, %v1021, 0
  %v1259 = vsel %vm1227, %v1023, 0
  %v1262 = vsel %vm1227, %v1025, 0
  %v1265 = vsel %vm1227, %v1027, 0
  %v1268 = vsel %vm1227, %v1029, 0
  %v1271 = vsel %vm1227, %v1031, 0
  %v1274 = vsel %vm1227, %v1033, 0
  %v1277 = vsel %vm1227, %v1035, 0
  %v1280 = vsel %vm1227, %v1037, 0
  %v1283 = vsel %vm1227, %v1039, 0
  %v1286 = vsel %vm1227, %v1041, 0
  %v1289 = vsel %vm1227, %v1043, 0
  %v1292 = vsel %vm1227, %v1045, 0
  %v1295 = vsel %vm1227, %v1047, 0
  %v1298 = vsel %vm1227, %v1049, 0
  %v1301 = vsel %vm1227, %v1051, 0
  %v1304 = vsel %vm1227, %v1053, 0
  %v1307 = vsel %vm1227, %v1055, 0
  %v1310 = vsel %vm1227, %v1057, 0
  %v1313 = vsel %vm1227, %v1059, 0
  %v1316 = vsel %vm1227, %v1061, 0
  %v1319 = vsel %vm1227, %v1063, 0
  %v1322 = vsel %vm1227, %v1065, 0
  %v1325 = vsel %vm1227, %v1067, 0
  %v1328 = vsel %vm1227, %v1069, 0
  %v1331 = vsel %vm1227, %v1071, 0
  %v1334 = vsel %vm1227, %v1073, 0
  %v1337 = vsel %vm1227, %v1075, 0
  %v1340 = vsel %vm1227, %v1077, 0
  %v1343 = vsel %vm1227, %v1079, 0
  %v1346 = vsel %vm1227, %v1081, 0
  %v1349 = vsel %vm1227, %v1083, 0
  %v1352 = vsel %vm1227, %v1085, 0
  %v1355 = vsel %vm1227, %v1087, 0
  %v1358 = vsel %vm1227, %v1089, 0
  %v1361 = vsel %vm1227, %v1091, 0
  %v1364 = vsel %vm1227, %v1093, 0
  %v1367 = vsel %vm1227, %v1095, 0
  %v1370 = vsel %vm1227, %v1097, 0
  %v1373 = vsel %vm1227, %v1099, 0
  %v1376 = vsel %vm1227, %v1101, 0
  %v1379 = vsel %vm1227, %v1103, 0
  %v1382 = vsel %vm1227, %v1105, 0
  %v1385 = vsel %vm1227, %v1107, 0
  %v1388 = vsel %vm1227, %v1109, 0
  %v1391 = vsel %vm1227, %v1111, 0
  %v1394 = vsel %vm1227, %v1113, 0
  %v1397 = vsel %vm1227, %v1115, 0
  %v1400 = vsel %vm1227, %v1117, 0
  %v1403 = vsel %vm1227, %v1119, 0
  %v1406 = vsel %vm1227, %v1121, 0
  %v1409 = vsel %vm1227, %v1123, 0
  %v1412 = vsel %vm1227, %v1125, 0
  %v1415 = vsel %vm1227, %v1127, 0
  %v1418 = vsel %vm1227, %v1129, 0
  %v1421 = vsel %vm1227, %v1131, 0
  %v1424 = vsel %vm1227, %v1133, 0
  %v1427 = vsel %vm1227, %v1135, 0
  %v1430 = vsel %vm1227, %v1137, 0
  %v1433 = vsel %vm1227, %v1139, 0
  %v1436 = vsel %vm1227, %v1141, 0
  %v1439 = vsel %vm1227, %v1143, 0
  %v1442 = vsel %vm1227, %v1145, 0
  %v1445 = vsel %vm1227, %v1147, 0
  %v1448 = vsel %vm1227, %v1149, 0
  %v1451 = vsel %vm1227, %v1151, 0
  %vm1453 = vcmask 1043456
  %v1455 = vsel %vm1453, %v550, 0
  %v1458 = vsel %vm1453, %v551, 0
  %1460 = vmatprep.subr.bf16.mxu0 %v527
  %1461 = vmatpush1.bf16.msra.mxu0 %v526
  %1462 = vmatprep.subr.bf16.mxu0 %v529
  %1463 = vmatpush1.bf16.msra.mxu0 %v528
  %1464 = vmatprep.subr.bf16.mxu0 %v531
  %1465 = vmatpush1.bf16.msra.mxu0 %v530
  %1466 = vmatprep.subr.bf16.mxu0 %v533
  %1467 = vmatpush1.bf16.msra.mxu0 %v532
  %1468 = vmatprep.subr.bf16.mxu0 %v535
  %1469 = vmatpush1.bf16.msra.mxu0 %v534
  %1470 = vmatprep.subr.bf16.mxu0 %v537
  %1471 = vmatpush1.bf16.msra.mxu0 %v536
  %1472 = vmatprep.subr.bf16.mxu0 %v539
  %1473 = vmatpush1.bf16.msra.mxu0 %v538
  %1474 = vmatprep.subr.bf16.mxu0 %v541
  %1475 = vmatpush1.bf16.msra.mxu0 %v540
  %1476 = vmatprep.subr.bf16.mxu0 %v543
  %1477 = vmatpush1.bf16.msra.mxu0 %v542
  %1478 = vmatprep.subr.bf16.mxu0 %v545
  %1479 = vmatpush1.bf16.msra.mxu0 %v544
  %1480 = vmatprep.subr.bf16.mxu0 %v547
  %1481 = vmatpush1.bf16.msra.mxu0 %v546
  %1482 = vmatprep.subr.bf16.mxu0 %v549
  %1483 = vmatpush1.bf16.msra.mxu0 %v548
  %1484 = vmatprep.subr.bf16.mxu0 %v1458
  %1485 = vmatpush1.bf16.msra.mxu0 %v1455
  %1486 = vmatprep.subr.bf16.mxu0 0
  %1487 = vmatpush1.bf16.msra.mxu0 0
  %1488 = vmatprep.subr.bf16.mxu0 0
  %1489 = vmatpush1.bf16.msra.mxu0 0
  %1490 = vmatprep.subr.bf16.mxu0 0
  %1491 = vmatpush1.bf16.msra.mxu0 0
  %1492 = vmatprep.mubr.bf16.mxu0 %v1229
  %1493 = vmatmul.mubr.bf16.gmra.mrb[0].mxu0 %v1002
  %v1494 = vpop.f32.mrb[0].mxu0
  %v1495 = vadd.f32 0.0, %v1494
  %v1496 = vpop.f32.mrb[0].mxu0
  %v1497 = vadd.f32 0.0, %v1496
  %v1498 = vpop.f32.mrb[0].mxu0
  %v1499 = vadd.f32 0.0, %v1498
  %v1500 = vpop.f32.mrb[0].mxu0
  %v1501 = vadd.f32 0.0, %v1500
  %1502 = vmatprep.mubr.bf16.mxu0 %v1232
  %1503 = vmatmul.mubr.bf16.gmra.mrb[0].mxu0 %v1004
  %v1504 = vpop.f32.mrb[0].mxu0
  %v1505 = vadd.f32 0.0, %v1504
  %v1506 = vpop.f32.mrb[0].mxu0
  %v1507 = vadd.f32 0.0, %v1506
  %v1508 = vpop.f32.mrb[0].mxu0
  %v1509 = vadd.f32 0.0, %v1508
  %v1510 = vpop.f32.mrb[0].mxu0
  %v1511 = vadd.f32 0.0, %v1510
  %1512 = vmatprep.mubr.bf16.mxu0 %v1235
  %1513 = vmatmul.mubr.bf16.gmra.mrb[0].mxu0 %v1006
  %v1514 = vpop.f32.mrb[0].mxu0
  %v1515 = vadd.f32 0.0, %v1514
  %v1516 = vpop.f32.mrb[0].mxu0
  %v1517 = vadd.f32 0.0, %v1516
  %v1518 = vpop.f32.mrb[0].mxu0
  %v1519 = vadd.f32 0.0, %v1518
  %v1520 = vpop.f32.mrb[0].mxu0
  %v1521 = vadd.f32 0.0, %v1520
  %1522 = vmatprep.mubr.bf16.mxu0 %v1238
  %1523 = vmatmul.mubr.bf16.gmra.mrb[0].mxu0 %v1008
  %v1524 = vpop.f32.mrb[0].mxu0
  %v1525 = vadd.f32 0.0, %v1524
  %v1526 = vpop.f32.mrb[0].mxu0
  %v1527 = vadd.f32 0.0, %v1526
  %v1528 = vpop.f32.mrb[0].mxu0
  %v1529 = vadd.f32 0.0, %v1528
  %v1530 = vpop.f32.mrb[0].mxu0
  %v1531 = vadd.f32 0.0, %v1530
  %1532 = vmatprep.mubr.bf16.mxu0 %v1241
  %1533 = vmatmul.mubr.bf16.gmra.mrb[0].mxu0 %v1010
  %v1534 = vpop.f32.mrb[0].mxu0
  %v1535 = vadd.f32 0.0, %v1534
  %v1536 = vpop.f32.mrb[0].mxu0
  %v1537 = vadd.f32 0.0, %v1536
  %v1538 = vpop.f32.mrb[0].mxu0
  %v1539 = vadd.f32 0.0, %v1538
  %v1540 = vpop.f32.mrb[0].mxu0
  %v1541 = vadd.f32 0.0, %v1540
  %1542 = vmatprep.mubr.bf16.mxu0 %v1244
  %1543 = vmatmul.mubr.bf16.gmra.mrb[0].mxu0 %v1012
  %v1544 = vpop.f32.mrb[0].mxu0
  %v1545 = vadd.f32 0.0, %v1544
  %v1546 = vpop.f32.mrb[0].mxu0
  %v1547 = vadd.f32 0.0, %v1546
  %v1548 = vpop.f32.mrb[0].mxu0
  %v1549 = vadd.f32 0.0, %v1548
  %v1550 = vpop.f32.mrb[0].mxu0
  %v1551 = vadd.f32 0.0, %v1550
  %1552 = vmatprep.mubr.bf16.mxu0 %v1247
  %1553 = vmatmul.mubr.bf16.gmra.mrb[0].mxu0 %v1014
  %v1554 = vpop.f32.mrb[0].mxu0
  %v1555 = vadd.f32 0.0, %v1554
  %v1556 = vpop.f32.mrb[0].mxu0
  %v1557 = vadd.f32 0.0, %v1556
  %v1558 = vpop.f32.mrb[0].mxu0
  %v1559 = vadd.f32 0.0, %v1558
  %v1560 = vpop.f32.mrb[0].mxu0
  %v1561 = vadd.f32 0.0, %v1560
  %1562 = vmatprep.mubr.bf16.mxu0 %v1250
  %1563 = vmatmul.mubr.bf16.gmra.mrb[0].mxu0 %v1016
  %v1564 = vpop.f32.mrb[0].mxu0
  %v1565 = vadd.f32 0.0, %v1564
  %v1566 = vpop.f32.mrb[0].mxu0
  %v1567 = vadd.f32 0.0, %v1566
  %v1568 = vpop.f32.mrb[0].mxu0
  %v1569 = vadd.f32 0.0, %v1568
  %v1570 = vpop.f32.mrb[0].mxu0
  %v1571 = vadd.f32 0.0, %v1570
  %1572 = vmatprep.mubr.bf16.mxu0 %v1253
  %1573 = vmatmul.mubr.bf16.gmra.mrb[0].mxu0 %v1018
  %v1574 = vpop.f32.mrb[0].mxu0
  %v1575 = vadd.f32 0.0, %v1574
  %v1576 = vpop.f32.mrb[0].mxu0
  %v1577 = vadd.f32 0.0, %v1576
  %v1578 = vpop.f32.mrb[0].mxu0
  %v1579 = vadd.f32 0.0, %v1578
  %v1580 = vpop.f32.mrb[0].mxu0
  %v1581 = vadd.f32 0.0, %v1580
  %1582 = vmatprep.mubr.bf16.mxu0 %v1256
  %1583 = vmatmul.mubr.bf16.gmra.mrb[0].mxu0 %v1020
  %v1584 = vpop.f32.mrb[0].mxu0
  %v1585 = vadd.f32 0.0, %v1584
  %v1586 = vpop.f32.mrb[0].mxu0
  %v1587 = vadd.f32 0.0, %v1586
  %v1588 = vpop.f32.mrb[0].mxu0
  %v1589 = vadd.f32 0.0, %v1588
  %v1590 = vpop.f32.mrb[0].mxu0
  %v1591 = vadd.f32 0.0, %v1590
  %1592 = vmatprep.mubr.bf16.mxu0 %v1259
  %1593 = vmatmul.mubr.bf16.gmra.mrb[0].mxu0 %v1022
  %v1594 = vpop.f32.mrb[0].mxu0
  %v1595 = vadd.f32 0.0, %v1594
  %v1596 = vpop.f32.mrb[0].mxu0
  %v1597 = vadd.f32 0.0, %v1596
  %v1598 = vpop.f32.mrb[0].mxu0
  %v1599 = vadd.f32 0.0, %v1598
  %v1600 = vpop.f32.mrb[0].mxu0
  %v1601 = vadd.f32 0.0, %v1600
  %1602 = vmatprep.mubr.bf16.mxu0 %v1262
  %1603 = vmatmul.mubr.bf16.gmra.mrb[0].mxu0 %v1024
  %v1604 = vpop.f32.mrb[0].mxu0
  %v1605 = vadd.f32 0.0, %v1604
  %v1606 = vpop.f32.mrb[0].mxu0
  %v1607 = vadd.f32 0.0, %v1606
  %v1608 = vpop.f32.mrb[0].mxu0
  %v1609 = vadd.f32 0.0, %v1608
  %v1610 = vpop.f32.mrb[0].mxu0
  %v1611 = vadd.f32 0.0, %v1610
  %1612 = vmatprep.mubr.bf16.mxu0 %v1265
  %1613 = vmatmul.mubr.bf16.gmra.mrb[0].mxu0 %v1026
  %v1614 = vpop.f32.mrb[0].mxu0
  %v1615 = vadd.f32 0.0, %v1614
  %v1616 = vpop.f32.mrb[0].mxu0
  %v1617 = vadd.f32 0.0, %v1616
  %v1618 = vpop.f32.mrb[0].mxu0
  %v1619 = vadd.f32 0.0, %v1618
  %v1620 = vpop.f32.mrb[0].mxu0
  %v1621 = vadd.f32 0.0, %v1620
  %1622 = vmatprep.mubr.bf16.mxu0 %v1268
  %1623 = vmatmul.mubr.bf16.gmra.mrb[0].mxu0 %v1028
  %v1624 = vpop.f32.mrb[0].mxu0
  %v1625 = vadd.f32 0.0, %v1624
  %v1626 = vpop.f32.mrb[0].mxu0
  %v1627 = vadd.f32 0.0, %v1626
  %v1628 = vpop.f32.mrb[0].mxu0
  %v1629 = vadd.f32 0.0, %v1628
  %v1630 = vpop.f32.mrb[0].mxu0
  %v1631 = vadd.f32 0.0, %v1630
  %1632 = vmatprep.mubr.bf16.mxu0 %v1271
  %1633 = vmatmul.mubr.bf16.gmra.mrb[0].mxu0 %v1030
  %v1634 = vpop.f32.mrb[0].mxu0
  %v1635 = vadd.f32 0.0, %v1634
  %v1636 = vpop.f32.mrb[0].mxu0
  %v1637 = vadd.f32 0.0, %v1636
  %v1638 = vpop.f32.mrb[0].mxu0
  %v1639 = vadd.f32 0.0, %v1638
  %v1640 = vpop.f32.mrb[0].mxu0
  %v1641 = vadd.f32 0.0, %v1640
  %1642 = vmatprep.mubr.bf16.mxu0 %v1274
  %1643 = vmatmul.mubr.bf16.gmra.mrb[0].mxu0 %v1032
  %v1644 = vpop.f32.mrb[0].mxu0
  %v1645 = vadd.f32 0.0, %v1644
  %v1646 = vpop.f32.mrb[0].mxu0
  %v1647 = vadd.f32 0.0, %v1646
  %v1648 = vpop.f32.mrb[0].mxu0
  %v1649 = vadd.f32 0.0, %v1648
  %v1650 = vpop.f32.mrb[0].mxu0
  %v1651 = vadd.f32 0.0, %v1650
  %1652 = vmatprep.mubr.bf16.mxu0 %v1277
  %1653 = vmatmul.mubr.bf16.gmra.mrb[0].mxu0 %v1034
  %v1654 = vpop.f32.mrb[0].mxu0
  %v1655 = vadd.f32 0.0, %v1654
  %v1656 = vpop.f32.mrb[0].mxu0
  %v1657 = vadd.f32 0.0, %v1656
  %v1658 = vpop.f32.mrb[0].mxu0
  %v1659 = vadd.f32 0.0, %v1658
  %v1660 = vpop.f32.mrb[0].mxu0
  %v1661 = vadd.f32 0.0, %v1660
  %1662 = vmatprep.mubr.bf16.mxu0 %v1280
  %1663 = vmatmul.mubr.bf16.gmra.mrb[0].mxu0 %v1036
  %v1664 = vpop.f32.mrb[0].mxu0
  %v1665 = vadd.f32 0.0, %v1664
  %v1666 = vpop.f32.mrb[0].mxu0
  %v1667 = vadd.f32 0.0, %v1666
  %v1668 = vpop.f32.mrb[0].mxu0
  %v1669 = vadd.f32 0.0, %v1668
  %v1670 = vpop.f32.mrb[0].mxu0
  %v1671 = vadd.f32 0.0, %v1670
  %1672 = vmatprep.mubr.bf16.mxu0 %v1283
  %1673 = vmatmul.mubr.bf16.gmra.mrb[0].mxu0 %v1038
  %v1674 = vpop.f32.mrb[0].mxu0
  %v1675 = vadd.f32 0.0, %v1674
  %v1676 = vpop.f32.mrb[0].mxu0
  %v1677 = vadd.f32 0.0, %v1676
  %v1678 = vpop.f32.mrb[0].mxu0
  %v1679 = vadd.f32 0.0, %v1678
  %v1680 = vpop.f32.mrb[0].mxu0
  %v1681 = vadd.f32 0.0, %v1680
  %1682 = vmatprep.mubr.bf16.mxu0 %v1286
  %1683 = vmatmul.mubr.bf16.gmra.mrb[0].mxu0 %v1040
  %v1684 = vpop.f32.mrb[0].mxu0
  %v1685 = vadd.f32 0.0, %v1684
  %v1686 = vpop.f32.mrb[0].mxu0
  %v1687 = vadd.f32 0.0, %v1686
  %v1688 = vpop.f32.mrb[0].mxu0
  %v1689 = vadd.f32 0.0, %v1688
  %v1690 = vpop.f32.mrb[0].mxu0
  %v1691 = vadd.f32 0.0, %v1690
  %1692 = vmatprep.mubr.bf16.mxu0 %v1289
  %1693 = vmatmul.mubr.bf16.gmra.mrb[0].mxu0 %v1042
  %v1694 = vpop.f32.mrb[0].mxu0
  %v1695 = vadd.f32 0.0, %v1694
  %v1696 = vpop.f32.mrb[0].mxu0
  %v1697 = vadd.f32 0.0, %v1696
  %v1698 = vpop.f32.mrb[0].mxu0
  %v1699 = vadd.f32 0.0, %v1698
  %v1700 = vpop.f32.mrb[0].mxu0
  %v1701 = vadd.f32 0.0, %v1700
  %1702 = vmatprep.mubr.bf16.mxu0 %v1292
  %1703 = vmatmul.mubr.bf16.gmra.mrb[0].mxu0 %v1044
  %v1704 = vpop.f32.mrb[0].mxu0
  %v1705 = vadd.f32 0.0, %v1704
  %v1706 = vpop.f32.mrb[0].mxu0
  %v1707 = vadd.f32 0.0, %v1706
  %v1708 = vpop.f32.mrb[0].mxu0
  %v1709 = vadd.f32 0.0, %v1708
  %v1710 = vpop.f32.mrb[0].mxu0
  %v1711 = vadd.f32 0.0, %v1710
  %1712 = vmatprep.mubr.bf16.mxu0 %v1295
  %1713 = vmatmul.mubr.bf16.gmra.mrb[0].mxu0 %v1046
  %v1714 = vpop.f32.mrb[0].mxu0
  %v1715 = vadd.f32 0.0, %v1714
  %v1716 = vpop.f32.mrb[0].mxu0
  %v1717 = vadd.f32 0.0, %v1716
  %v1718 = vpop.f32.mrb[0].mxu0
  %v1719 = vadd.f32 0.0, %v1718
  %v1720 = vpop.f32.mrb[0].mxu0
  %v1721 = vadd.f32 0.0, %v1720
  %1722 = vmatprep.mubr.bf16.mxu0 %v1298
  %1723 = vmatmul.mubr.bf16.gmra.mrb[0].mxu0 %v1048
  %v1724 = vpop.f32.mrb[0].mxu0
  %v1725 = vadd.f32 0.0, %v1724
  %v1726 = vpop.f32.mrb[0].mxu0
  %v1727 = vadd.f32 0.0, %v1726
  %v1728 = vpop.f32.mrb[0].mxu0
  %v1729 = vadd.f32 0.0, %v1728
  %v1730 = vpop.f32.mrb[0].mxu0
  %v1731 = vadd.f32 0.0, %v1730
  %1732 = vmatprep.mubr.bf16.mxu0 %v1301
  %1733 = vmatmul.mubr.bf16.gmra.mrb[0].mxu0 %v1050
  %v1734 = vpop.f32.mrb[0].mxu0
  %v1735 = vadd.f32 0.0, %v1734
  %v1736 = vpop.f32.mrb[0].mxu0
  %v1737 = vadd.f32 0.0, %v1736
  %v1738 = vpop.f32.mrb[0].mxu0
  %v1739 = vadd.f32 0.0, %v1738
  %v1740 = vpop.f32.mrb[0].mxu0
  %v1741 = vadd.f32 0.0, %v1740
  %1742 = vmatprep.mubr.bf16.mxu0 %v1304
  %1743 = vmatmul.mubr.bf16.gmra.mrb[0].mxu0 %v1052
  %v1744 = vpop.f32.mrb[0].mxu0
  %v1745 = vadd.f32 0.0, %v1744
  %v1746 = vpop.f32.mrb[0].mxu0
  %v1747 = vadd.f32 0.0, %v1746
  %v1748 = vpop.f32.mrb[0].mxu0
  %v1749 = vadd.f32 0.0, %v1748
  %v1750 = vpop.f32.mrb[0].mxu0
  %v1751 = vadd.f32 0.0, %v1750
  %1752 = vmatprep.mubr.bf16.mxu0 %v1307
  %1753 = vmatmul.mubr.bf16.gmra.mrb[0].mxu0 %v1054
  %v1754 = vpop.f32.mrb[0].mxu0
  %v1755 = vadd.f32 0.0, %v1754
  %v1756 = vpop.f32.mrb[0].mxu0
  %v1757 = vadd.f32 0.0, %v1756
  %v1758 = vpop.f32.mrb[0].mxu0
  %v1759 = vadd.f32 0.0, %v1758
  %v1760 = vpop.f32.mrb[0].mxu0
  %v1761 = vadd.f32 0.0, %v1760
  %1762 = vmatprep.mubr.bf16.mxu0 %v1310
  %1763 = vmatmul.mubr.bf16.gmra.mrb[0].mxu0 %v1056
  %v1764 = vpop.f32.mrb[0].mxu0
  %v1765 = vadd.f32 0.0, %v1764
  %v1766 = vpop.f32.mrb[0].mxu0
  %v1767 = vadd.f32 0.0, %v1766
  %v1768 = vpop.f32.mrb[0].mxu0
  %v1769 = vadd.f32 0.0, %v1768
  %v1770 = vpop.f32.mrb[0].mxu0
  %v1771 = vadd.f32 0.0, %v1770
  %1772 = vmatprep.mubr.bf16.mxu0 %v1313
  %1773 = vmatmul.mubr.bf16.gmra.mrb[0].mxu0 %v1058
  %v1774 = vpop.f32.mrb[0].mxu0
  %v1775 = vadd.f32 0.0, %v1774
  %v1776 = vpop.f32.mrb[0].mxu0
  %v1777 = vadd.f32 0.0, %v1776
  %v1778 = vpop.f32.mrb[0].mxu0
  %v1779 = vadd.f32 0.0, %v1778
  %v1780 = vpop.f32.mrb[0].mxu0
  %v1781 = vadd.f32 0.0, %v1780
  %1782 = vmatprep.mubr.bf16.mxu0 %v1316
  %1783 = vmatmul.mubr.bf16.gmra.mrb[0].mxu0 %v1060
  %v1784 = vpop.f32.mrb[0].mxu0
  %v1785 = vadd.f32 0.0, %v1784
  %v1786 = vpop.f32.mrb[0].mxu0
  %v1787 = vadd.f32 0.0, %v1786
  %v1788 = vpop.f32.mrb[0].mxu0
  %v1789 = vadd.f32 0.0, %v1788
  %v1790 = vpop.f32.mrb[0].mxu0
  %v1791 = vadd.f32 0.0, %v1790
  %1792 = vmatprep.mubr.bf16.mxu0 %v1319
  %1793 = vmatmul.mubr.bf16.gmra.mrb[0].mxu0 %v1062
  %v1794 = vpop.f32.mrb[0].mxu0
  %v1795 = vadd.f32 0.0, %v1794
  %v1796 = vpop.f32.mrb[0].mxu0
  %v1797 = vadd.f32 0.0, %v1796
  %v1798 = vpop.f32.mrb[0].mxu0
  %v1799 = vadd.f32 0.0, %v1798
  %v1800 = vpop.f32.mrb[0].mxu0
  %v1801 = vadd.f32 0.0, %v1800
  %1802 = vmatprep.mubr.bf16.mxu0 %v1322
  %1803 = vmatmul.mubr.bf16.gmra.mrb[0].mxu0 %v1064
  %v1804 = vpop.f32.mrb[0].mxu0
  %v1805 = vadd.f32 0.0, %v1804
  %v1806 = vpop.f32.mrb[0].mxu0
  %v1807 = vadd.f32 0.0, %v1806
  %v1808 = vpop.f32.mrb[0].mxu0
  %v1809 = vadd.f32 0.0, %v1808
  %v1810 = vpop.f32.mrb[0].mxu0
  %v1811 = vadd.f32 0.0, %v1810
  %1812 = vmatprep.mubr.bf16.mxu0 %v1325
  %1813 = vmatmul.mubr.bf16.gmra.mrb[0].mxu0 %v1066
  %v1814 = vpop.f32.mrb[0].mxu0
  %v1815 = vadd.f32 0.0, %v1814
  %v1816 = vpop.f32.mrb[0].mxu0
  %v1817 = vadd.f32 0.0, %v1816
  %v1818 = vpop.f32.mrb[0].mxu0
  %v1819 = vadd.f32 0.0, %v1818
  %v1820 = vpop.f32.mrb[0].mxu0
  %v1821 = vadd.f32 0.0, %v1820
  %1822 = vmatprep.mubr.bf16.mxu0 %v1328
  %1823 = vmatmul.mubr.bf16.gmra.mrb[0].mxu0 %v1068
  %v1824 = vpop.f32.mrb[0].mxu0
  %v1825 = vadd.f32 0.0, %v1824
  %v1826 = vpop.f32.mrb[0].mxu0
  %v1827 = vadd.f32 0.0, %v1826
  %v1828 = vpop.f32.mrb[0].mxu0
  %v1829 = vadd.f32 0.0, %v1828
  %v1830 = vpop.f32.mrb[0].mxu0
  %v1831 = vadd.f32 0.0, %v1830
  %1832 = vmatprep.mubr.bf16.mxu0 %v1331
  %1833 = vmatmul.mubr.bf16.gmra.mrb[0].mxu0 %v1070
  %v1834 = vpop.f32.mrb[0].mxu0
  %v1835 = vadd.f32 0.0, %v1834
  %v1836 = vpop.f32.mrb[0].mxu0
  %v1837 = vadd.f32 0.0, %v1836
  %v1838 = vpop.f32.mrb[0].mxu0
  %v1839 = vadd.f32 0.0, %v1838
  %v1840 = vpop.f32.mrb[0].mxu0
  %v1841 = vadd.f32 0.0, %v1840
  %1842 = vmatprep.mubr.bf16.mxu0 %v1334
  %1843 = vmatmul.mubr.bf16.gmra.mrb[0].mxu0 %v1072
  %v1844 = vpop.f32.mrb[0].mxu0
  %v1845 = vadd.f32 0.0, %v1844
  %v1846 = vpop.f32.mrb[0].mxu0
  %v1847 = vadd.f32 0.0, %v1846
  %v1848 = vpop.f32.mrb[0].mxu0
  %v1849 = vadd.f32 0.0, %v1848
  %v1850 = vpop.f32.mrb[0].mxu0
  %v1851 = vadd.f32 0.0, %v1850
  %1852 = vmatprep.mubr.bf16.mxu0 %v1337
  %1853 = vmatmul.mubr.bf16.gmra.mrb[0].mxu0 %v1074
  %v1854 = vpop.f32.mrb[0].mxu0
  %v1855 = vadd.f32 0.0, %v1854
  %v1856 = vpop.f32.mrb[0].mxu0
  %v1857 = vadd.f32 0.0, %v1856
  %v1858 = vpop.f32.mrb[0].mxu0
  %v1859 = vadd.f32 0.0, %v1858
  %v1860 = vpop.f32.mrb[0].mxu0
  %v1861 = vadd.f32 0.0, %v1860
  %1862 = vmatprep.mubr.bf16.mxu0 %v1340
  %1863 = vmatmul.mubr.bf16.gmra.mrb[0].mxu0 %v1076
  %v1864 = vpop.f32.mrb[0].mxu0
  %v1865 = vadd.f32 0.0, %v1864
  %v1866 = vpop.f32.mrb[0].mxu0
  %v1867 = vadd.f32 0.0, %v1866
  %v1868 = vpop.f32.mrb[0].mxu0
  %v1869 = vadd.f32 0.0, %v1868
  %v1870 = vpop.f32.mrb[0].mxu0
  %v1871 = vadd.f32 0.0, %v1870
  %1872 = vmatprep.mubr.bf16.mxu0 %v1343
  %1873 = vmatmul.mubr.bf16.gmra.mrb[0].mxu0 %v1078
  %v1874 = vpop.f32.mrb[0].mxu0
  %v1875 = vadd.f32 0.0, %v1874
  %v1876 = vpop.f32.mrb[0].mxu0
  %v1877 = vadd.f32 0.0, %v1876
  %v1878 = vpop.f32.mrb[0].mxu0
  %v1879 = vadd.f32 0.0, %v1878
  %v1880 = vpop.f32.mrb[0].mxu0
  %v1881 = vadd.f32 0.0, %v1880
  %1882 = vmatprep.mubr.bf16.mxu0 %v1346
  %1883 = vmatmul.mubr.bf16.gmra.mrb[0].mxu0 %v1080
  %v1884 = vpop.f32.mrb[0].mxu0
  %v1885 = vadd.f32 0.0, %v1884
  %v1886 = vpop.f32.mrb[0].mxu0
  %v1887 = vadd.f32 0.0, %v1886
  %v1888 = vpop.f32.mrb[0].mxu0
  %v1889 = vadd.f32 0.0, %v1888
  %v1890 = vpop.f32.mrb[0].mxu0
  %v1891 = vadd.f32 0.0, %v1890
  %1892 = vmatprep.mubr.bf16.mxu0 %v1349
  %1893 = vmatmul.mubr.bf16.gmra.mrb[0].mxu0 %v1082
  %v1894 = vpop.f32.mrb[0].mxu0
  %v1895 = vadd.f32 0.0, %v1894
  %v1896 = vpop.f32.mrb[0].mxu0
  %v1897 = vadd.f32 0.0, %v1896
  %v1898 = vpop.f32.mrb[0].mxu0
  %v1899 = vadd.f32 0.0, %v1898
  %v1900 = vpop.f32.mrb[0].mxu0
  %v1901 = vadd.f32 0.0, %v1900
  %1902 = vmatprep.mubr.bf16.mxu0 %v1352
  %1903 = vmatmul.mubr.bf16.gmra.mrb[0].mxu0 %v1084
  %v1904 = vpop.f32.mrb[0].mxu0
  %v1905 = vadd.f32 0.0, %v1904
  %v1906 = vpop.f32.mrb[0].mxu0
  %v1907 = vadd.f32 0.0, %v1906
  %v1908 = vpop.f32.mrb[0].mxu0
  %v1909 = vadd.f32 0.0, %v1908
  %v1910 = vpop.f32.mrb[0].mxu0
  %v1911 = vadd.f32 0.0, %v1910
  %1912 = vmatprep.mubr.bf16.mxu0 %v1355
  %1913 = vmatmul.mubr.bf16.gmra.mrb[0].mxu0 %v1086
  %v1914 = vpop.f32.mrb[0].mxu0
  %v1915 = vadd.f32 0.0, %v1914
  %v1916 = vpop.f32.mrb[0].mxu0
  %v1917 = vadd.f32 0.0, %v1916
  %v1918 = vpop.f32.mrb[0].mxu0
  %v1919 = vadd.f32 0.0, %v1918
  %v1920 = vpop.f32.mrb[0].mxu0
  %v1921 = vadd.f32 0.0, %v1920
  %1922 = vmatprep.mubr.bf16.mxu0 %v1358
  %1923 = vmatmul.mubr.bf16.gmra.mrb[0].mxu0 %v1088
  %v1924 = vpop.f32.mrb[0].mxu0
  %v1925 = vadd.f32 0.0, %v1924
  %v1926 = vpop.f32.mrb[0].mxu0
  %v1927 = vadd.f32 0.0, %v1926
  %v1928 = vpop.f32.mrb[0].mxu0
  %v1929 = vadd.f32 0.0, %v1928
  %v1930 = vpop.f32.mrb[0].mxu0
  %v1931 = vadd.f32 0.0, %v1930
  %1932 = vmatprep.mubr.bf16.mxu0 %v1361
  %1933 = vmatmul.mubr.bf16.gmra.mrb[0].mxu0 %v1090
  %v1934 = vpop.f32.mrb[0].mxu0
  %v1935 = vadd.f32 0.0, %v1934
  %v1936 = vpop.f32.mrb[0].mxu0
  %v1937 = vadd.f32 0.0, %v1936
  %v1938 = vpop.f32.mrb[0].mxu0
  %v1939 = vadd.f32 0.0, %v1938
  %v1940 = vpop.f32.mrb[0].mxu0
  %v1941 = vadd.f32 0.0, %v1940
  %1942 = vmatprep.mubr.bf16.mxu0 %v1364
  %1943 = vmatmul.mubr.bf16.gmra.mrb[0].mxu0 %v1092
  %v1944 = vpop.f32.mrb[0].mxu0
  %v1945 = vadd.f32 0.0, %v1944
  %v1946 = vpop.f32.mrb[0].mxu0
  %v1947 = vadd.f32 0.0, %v1946
  %v1948 = vpop.f32.mrb[0].mxu0
  %v1949 = vadd.f32 0.0, %v1948
  %v1950 = vpop.f32.mrb[0].mxu0
  %v1951 = vadd.f32 0.0, %v1950
  %1952 = vmatprep.mubr.bf16.mxu0 %v1367
  %1953 = vmatmul.mubr.bf16.gmra.mrb[0].mxu0 %v1094
  %v1954 = vpop.f32.mrb[0].mxu0
  %v1955 = vadd.f32 0.0, %v1954
  %v1956 = vpop.f32.mrb[0].mxu0
  %v1957 = vadd.f32 0.0, %v1956
  %v1958 = vpop.f32.mrb[0].mxu0
  %v1959 = vadd.f32 0.0, %v1958
  %v1960 = vpop.f32.mrb[0].mxu0
  %v1961 = vadd.f32 0.0, %v1960
  %1962 = vmatprep.mubr.bf16.mxu0 %v1370
  %1963 = vmatmul.mubr.bf16.gmra.mrb[0].mxu0 %v1096
  %v1964 = vpop.f32.mrb[0].mxu0
  %v1965 = vadd.f32 0.0, %v1964
  %v1966 = vpop.f32.mrb[0].mxu0
  %v1967 = vadd.f32 0.0, %v1966
  %v1968 = vpop.f32.mrb[0].mxu0
  %v1969 = vadd.f32 0.0, %v1968
  %v1970 = vpop.f32.mrb[0].mxu0
  %v1971 = vadd.f32 0.0, %v1970
  %1972 = vmatprep.mubr.bf16.mxu0 %v1373
  %1973 = vmatmul.mubr.bf16.gmra.mrb[0].mxu0 %v1098
  %v1974 = vpop.f32.mrb[0].mxu0
  %v1975 = vadd.f32 0.0, %v1974
  %v1976 = vpop.f32.mrb[0].mxu0
  %v1977 = vadd.f32 0.0, %v1976
  %v1978 = vpop.f32.mrb[0].mxu0
  %v1979 = vadd.f32 0.0, %v1978
  %v1980 = vpop.f32.mrb[0].mxu0
  %v1981 = vadd.f32 0.0, %v1980
  %1982 = vmatprep.mubr.bf16.mxu0 %v1376
  %1983 = vmatmul.mubr.bf16.gmra.mrb[0].mxu0 %v1100
  %v1984 = vpop.f32.mrb[0].mxu0
  %v1985 = vadd.f32 0.0, %v1984
  %v1986 = vpop.f32.mrb[0].mxu0
  %v1987 = vadd.f32 0.0, %v1986
  %v1988 = vpop.f32.mrb[0].mxu0
  %v1989 = vadd.f32 0.0, %v1988
  %v1990 = vpop.f32.mrb[0].mxu0
  %v1991 = vadd.f32 0.0, %v1990
  %1992 = vmatprep.mubr.bf16.mxu0 %v1379
  %1993 = vmatmul.mubr.bf16.gmra.mrb[0].mxu0 %v1102
  %v1994 = vpop.f32.mrb[0].mxu0
  %v1995 = vadd.f32 0.0, %v1994
  %v1996 = vpop.f32.mrb[0].mxu0
  %v1997 = vadd.f32 0.0, %v1996
  %v1998 = vpop.f32.mrb[0].mxu0
  %v1999 = vadd.f32 0.0, %v1998
  %v2000 = vpop.f32.mrb[0].mxu0
  %v2001 = vadd.f32 0.0, %v2000
  %2002 = vmatprep.mubr.bf16.mxu0 %v1382
  %2003 = vmatmul.mubr.bf16.gmra.mrb[0].mxu0 %v1104
  %v2004 = vpop.f32.mrb[0].mxu0
  %v2005 = vadd.f32 0.0, %v2004
  %v2006 = vpop.f32.mrb[0].mxu0
  %v2007 = vadd.f32 0.0, %v2006
  %v2008 = vpop.f32.mrb[0].mxu0
  %v2009 = vadd.f32 0.0, %v2008
  %v2010 = vpop.f32.mrb[0].mxu0
  %v2011 = vadd.f32 0.0, %v2010
  %2012 = vmatprep.mubr.bf16.mxu0 %v1385
  %2013 = vmatmul.mubr.bf16.gmra.mrb[0].mxu0 %v1106
  %v2014 = vpop.f32.mrb[0].mxu0
  %v2015 = vadd.f32 0.0, %v2014
  %v2016 = vpop.f32.mrb[0].mxu0
  %v2017 = vadd.f32 0.0, %v2016
  %v2018 = vpop.f32.mrb[0].mxu0
  %v2019 = vadd.f32 0.0, %v2018
  %v2020 = vpop.f32.mrb[0].mxu0
  %v2021 = vadd.f32 0.0, %v2020
  %2022 = vmatprep.mubr.bf16.mxu0 %v1388
  %2023 = vmatmul.mubr.bf16.gmra.mrb[0].mxu0 %v1108
  %v2024 = vpop.f32.mrb[0].mxu0
  %v2025 = vadd.f32 0.0, %v2024
  %v2026 = vpop.f32.mrb[0].mxu0
  %v2027 = vadd.f32 0.0, %v2026
  %v2028 = vpop.f32.mrb[0].mxu0
  %v2029 = vadd.f32 0.0, %v2028
  %v2030 = vpop.f32.mrb[0].mxu0
  %v2031 = vadd.f32 0.0, %v2030
  %2032 = vmatprep.mubr.bf16.mxu0 %v1391
  %2033 = vmatmul.mubr.bf16.gmra.mrb[0].mxu0 %v1110
  %v2034 = vpop.f32.mrb[0].mxu0
  %v2035 = vadd.f32 0.0, %v2034
  %v2036 = vpop.f32.mrb[0].mxu0
  %v2037 = vadd.f32 0.0, %v2036
  %v2038 = vpop.f32.mrb[0].mxu0
  %v2039 = vadd.f32 0.0, %v2038
  %v2040 = vpop.f32.mrb[0].mxu0
  %v2041 = vadd.f32 0.0, %v2040
  %2042 = vmatprep.mubr.bf16.mxu0 %v1394
  %2043 = vmatmul.mubr.bf16.gmra.mrb[0].mxu0 %v1112
  %v2044 = vpop.f32.mrb[0].mxu0
  %v2045 = vadd.f32 0.0, %v2044
  %v2046 = vpop.f32.mrb[0].mxu0
  %v2047 = vadd.f32 0.0, %v2046
  %v2048 = vpop.f32.mrb[0].mxu0
  %v2049 = vadd.f32 0.0, %v2048
  %v2050 = vpop.f32.mrb[0].mxu0
  %v2051 = vadd.f32 0.0, %v2050
  %2052 = vmatprep.mubr.bf16.mxu0 %v1397
  %2053 = vmatmul.mubr.bf16.gmra.mrb[0].mxu0 %v1114
  %v2054 = vpop.f32.mrb[0].mxu0
  %v2055 = vadd.f32 0.0, %v2054
  %v2056 = vpop.f32.mrb[0].mxu0
  %v2057 = vadd.f32 0.0, %v2056
  %v2058 = vpop.f32.mrb[0].mxu0
  %v2059 = vadd.f32 0.0, %v2058
  %v2060 = vpop.f32.mrb[0].mxu0
  %v2061 = vadd.f32 0.0, %v2060
  %2062 = vmatprep.mubr.bf16.mxu0 %v1400
  %2063 = vmatmul.mubr.bf16.gmra.mrb[0].mxu0 %v1116
  %v2064 = vpop.f32.mrb[0].mxu0
  %v2065 = vadd.f32 0.0, %v2064
  %v2066 = vpop.f32.mrb[0].mxu0
  %v2067 = vadd.f32 0.0, %v2066
  %v2068 = vpop.f32.mrb[0].mxu0
  %v2069 = vadd.f32 0.0, %v2068
  %v2070 = vpop.f32.mrb[0].mxu0
  %v2071 = vadd.f32 0.0, %v2070
  %2072 = vmatprep.mubr.bf16.mxu0 %v1403
  %2073 = vmatmul.mubr.bf16.gmra.mrb[0].mxu0 %v1118
  %v2074 = vpop.f32.mrb[0].mxu0
  %v2075 = vadd.f32 0.0, %v2074
  %v2076 = vpop.f32.mrb[0].mxu0
  %v2077 = vadd.f32 0.0, %v2076
  %v2078 = vpop.f32.mrb[0].mxu0
  %v2079 = vadd.f32 0.0, %v2078
  %v2080 = vpop.f32.mrb[0].mxu0
  %v2081 = vadd.f32 0.0, %v2080
  %2082 = vmatprep.mubr.bf16.mxu0 %v1406
  %2083 = vmatmul.mubr.bf16.gmra.mrb[0].mxu0 %v1120
  %v2084 = vpop.f32.mrb[0].mxu0
  %v2085 = vadd.f32 0.0, %v2084
  %v2086 = vpop.f32.mrb[0].mxu0
  %v2087 = vadd.f32 0.0, %v2086
  %v2088 = vpop.f32.mrb[0].mxu0
  %v2089 = vadd.f32 0.0, %v2088
  %v2090 = vpop.f32.mrb[0].mxu0
  %v2091 = vadd.f32 0.0, %v2090
  %2092 = vmatprep.mubr.bf16.mxu0 %v1409
  %2093 = vmatmul.mubr.bf16.gmra.mrb[0].mxu0 %v1122
  %v2094 = vpop.f32.mrb[0].mxu0
  %v2095 = vadd.f32 0.0, %v2094
  %v2096 = vpop.f32.mrb[0].mxu0
  %v2097 = vadd.f32 0.0, %v2096
  %v2098 = vpop.f32.mrb[0].mxu0
  %v2099 = vadd.f32 0.0, %v2098
  %v2100 = vpop.f32.mrb[0].mxu0
  %v2101 = vadd.f32 0.0, %v2100
  %2102 = vmatprep.mubr.bf16.mxu0 %v1412
  %2103 = vmatmul.mubr.bf16.gmra.mrb[0].mxu0 %v1124
  %v2104 = vpop.f32.mrb[0].mxu0
  %v2105 = vadd.f32 0.0, %v2104
  %v2106 = vpop.f32.mrb[0].mxu0
  %v2107 = vadd.f32 0.0, %v2106
  %v2108 = vpop.f32.mrb[0].mxu0
  %v2109 = vadd.f32 0.0, %v2108
  %v2110 = vpop.f32.mrb[0].mxu0
  %v2111 = vadd.f32 0.0, %v2110
  %2112 = vmatprep.mubr.bf16.mxu0 %v1415
  %2113 = vmatmul.mubr.bf16.gmra.mrb[0].mxu0 %v1126
  %v2114 = vpop.f32.mrb[0].mxu0
  %v2115 = vadd.f32 0.0, %v2114
  %v2116 = vpop.f32.mrb[0].mxu0
  %v2117 = vadd.f32 0.0, %v2116
  %v2118 = vpop.f32.mrb[0].mxu0
  %v2119 = vadd.f32 0.0, %v2118
  %v2120 = vpop.f32.mrb[0].mxu0
  %v2121 = vadd.f32 0.0, %v2120
  %2122 = vmatprep.mubr.bf16.mxu0 %v1418
  %2123 = vmatmul.mubr.bf16.gmra.mrb[0].mxu0 %v1128
  %v2124 = vpop.f32.mrb[0].mxu0
  %v2125 = vadd.f32 0.0, %v2124
  %v2126 = vpop.f32.mrb[0].mxu0
  %v2127 = vadd.f32 0.0, %v2126
  %v2128 = vpop.f32.mrb[0].mxu0
  %v2129 = vadd.f32 0.0, %v2128
  %v2130 = vpop.f32.mrb[0].mxu0
  %v2131 = vadd.f32 0.0, %v2130
  %2132 = vmatprep.mubr.bf16.mxu0 %v1421
  %2133 = vmatmul.mubr.bf16.gmra.mrb[0].mxu0 %v1130
  %v2134 = vpop.f32.mrb[0].mxu0
  %v2135 = vadd.f32 0.0, %v2134
  %v2136 = vpop.f32.mrb[0].mxu0
  %v2137 = vadd.f32 0.0, %v2136
  %v2138 = vpop.f32.mrb[0].mxu0
  %v2139 = vadd.f32 0.0, %v2138
  %v2140 = vpop.f32.mrb[0].mxu0
  %v2141 = vadd.f32 0.0, %v2140
  %2142 = vmatprep.mubr.bf16.mxu0 %v1424
  %2143 = vmatmul.mubr.bf16.gmra.mrb[0].mxu0 %v1132
  %v2144 = vpop.f32.mrb[0].mxu0
  %v2145 = vadd.f32 0.0, %v2144
  %v2146 = vpop.f32.mrb[0].mxu0
  %v2147 = vadd.f32 0.0, %v2146
  %v2148 = vpop.f32.mrb[0].mxu0
  %v2149 = vadd.f32 0.0, %v2148
  %v2150 = vpop.f32.mrb[0].mxu0
  %v2151 = vadd.f32 0.0, %v2150
  %2152 = vmatprep.mubr.bf16.mxu0 %v1427
  %2153 = vmatmul.mubr.bf16.gmra.mrb[0].mxu0 %v1134
  %v2154 = vpop.f32.mrb[0].mxu0
  %v2155 = vadd.f32 0.0, %v2154
  %v2156 = vpop.f32.mrb[0].mxu0
  %v2157 = vadd.f32 0.0, %v2156
  %v2158 = vpop.f32.mrb[0].mxu0
  %v2159 = vadd.f32 0.0, %v2158
  %v2160 = vpop.f32.mrb[0].mxu0
  %v2161 = vadd.f32 0.0, %v2160
  %2162 = vmatprep.mubr.bf16.mxu0 %v1430
  %2163 = vmatmul.mubr.bf16.gmra.mrb[0].mxu0 %v1136
  %v2164 = vpop.f32.mrb[0].mxu0
  %v2165 = vadd.f32 0.0, %v2164
  %v2166 = vpop.f32.mrb[0].mxu0
  %v2167 = vadd.f32 0.0, %v2166
  %v2168 = vpop.f32.mrb[0].mxu0
  %v2169 = vadd.f32 0.0, %v2168
  %v2170 = vpop.f32.mrb[0].mxu0
  %v2171 = vadd.f32 0.0, %v2170
  %2172 = vmatprep.mubr.bf16.mxu0 %v1433
  %2173 = vmatmul.mubr.bf16.gmra.mrb[0].mxu0 %v1138
  %v2174 = vpop.f32.mrb[0].mxu0
  %v2175 = vadd.f32 0.0, %v2174
  %v2176 = vpop.f32.mrb[0].mxu0
  %v2177 = vadd.f32 0.0, %v2176
  %v2178 = vpop.f32.mrb[0].mxu0
  %v2179 = vadd.f32 0.0, %v2178
  %v2180 = vpop.f32.mrb[0].mxu0
  %v2181 = vadd.f32 0.0, %v2180
  %2182 = vmatprep.mubr.bf16.mxu0 %v1436
  %2183 = vmatmul.mubr.bf16.gmra.mrb[0].mxu0 %v1140
  %v2184 = vpop.f32.mrb[0].mxu0
  %v2185 = vadd.f32 0.0, %v2184
  %v2186 = vpop.f32.mrb[0].mxu0
  %v2187 = vadd.f32 0.0, %v2186
  %v2188 = vpop.f32.mrb[0].mxu0
  %v2189 = vadd.f32 0.0, %v2188
  %v2190 = vpop.f32.mrb[0].mxu0
  %v2191 = vadd.f32 0.0, %v2190
  %2192 = vmatprep.mubr.bf16.mxu0 %v1439
  %2193 = vmatmul.mubr.bf16.gmra.mrb[0].mxu0 %v1142
  %v2194 = vpop.f32.mrb[0].mxu0
  %v2195 = vadd.f32 0.0, %v2194
  %v2196 = vpop.f32.mrb[0].mxu0
  %v2197 = vadd.f32 0.0, %v2196
  %v2198 = vpop.f32.mrb[0].mxu0
  %v2199 = vadd.f32 0.0, %v2198
  %v2200 = vpop.f32.mrb[0].mxu0
  %v2201 = vadd.f32 0.0, %v2200
  %2202 = vmatprep.mubr.bf16.mxu0 %v1442
  %2203 = vmatmul.mubr.bf16.gmra.mrb[0].mxu0 %v1144
  %v2204 = vpop.f32.mrb[0].mxu0
  %v2205 = vadd.f32 0.0, %v2204
  %v2206 = vpop.f32.mrb[0].mxu0
  %v2207 = vadd.f32 0.0, %v2206
  %v2208 = vpop.f32.mrb[0].mxu0
  %v2209 = vadd.f32 0.0, %v2208
  %v2210 = vpop.f32.mrb[0].mxu0
  %v2211 = vadd.f32 0.0, %v2210
  %2212 = vmatprep.mubr.bf16.mxu0 %v1445
  %2213 = vmatmul.mubr.bf16.gmra.mrb[0].mxu0 %v1146
  %v2214 = vpop.f32.mrb[0].mxu0
  %v2215 = vadd.f32 0.0, %v2214
  %v2216 = vpop.f32.mrb[0].mxu0
  %v2217 = vadd.f32 0.0, %v2216
  %v2218 = vpop.f32.mrb[0].mxu0
  %v2219 = vadd.f32 0.0, %v2218
  %v2220 = vpop.f32.mrb[0].mxu0
  %v2221 = vadd.f32 0.0, %v2220
  %2222 = vmatprep.mubr.bf16.mxu0 %v1448
  %2223 = vmatmul.mubr.bf16.gmra.mrb[0].mxu0 %v1148
  %v2224 = vpop.f32.mrb[0].mxu0
  %v2225 = vadd.f32 0.0, %v2224
  %v2226 = vpop.f32.mrb[0].mxu0
  %v2227 = vadd.f32 0.0, %v2226
  %v2228 = vpop.f32.mrb[0].mxu0
  %v2229 = vadd.f32 0.0, %v2228
  %v2230 = vpop.f32.mrb[0].mxu0
  %v2231 = vadd.f32 0.0, %v2230
  %2232 = vmatprep.mubr.bf16.mxu0 %v1451
  %2233 = vmatmul.mubr.bf16.gmra.mrb[0].mxu0 %v1150
  %v2234 = vpop.f32.mrb[0].mxu0
  %v2235 = vadd.f32 0.0, %v2234
  %v2236 = vpop.f32.mrb[0].mxu0
  %v2237 = vadd.f32 0.0, %v2236
  %v2238 = vpop.f32.mrb[0].mxu0
  %v2239 = vadd.f32 0.0, %v2238
  %v2240 = vpop.f32.mrb[0].mxu0
  %v2241 = vadd.f32 0.0, %v2240
  %2242 = vdwg.mxu0
  %v2243 = vmul.f32 %v1495, %v1495
  %v2244 = vmul.f32 %v1497, %v1497
  %v2245 = vmul.f32 %v1499, %v1499
  %v2246 = vmul.f32 %v1501, %v1501
  %v2247 = vmul.f32 %v1505, %v1505
  %v2248 = vmul.f32 %v1507, %v1507
  %v2249 = vmul.f32 %v1509, %v1509
  %v2250 = vmul.f32 %v1511, %v1511
  %v2251 = vmul.f32 %v1515, %v1515
  %v2252 = vmul.f32 %v1517, %v1517
  %v2253 = vmul.f32 %v1519, %v1519
  %v2254 = vmul.f32 %v1521, %v1521
  %v2255 = vmul.f32 %v1525, %v1525
  %v2256 = vmul.f32 %v1527, %v1527
  %v2257 = vmul.f32 %v1529, %v1529
  %v2258 = vmul.f32 %v1531, %v1531
  %v2259 = vmul.f32 %v1535, %v1535
  %v2260 = vmul.f32 %v1537, %v1537
  %v2261 = vmul.f32 %v1539, %v1539
  %v2262 = vmul.f32 %v1541, %v1541
  %v2263 = vmul.f32 %v1545, %v1545
  %v2264 = vmul.f32 %v1547, %v1547
  %v2265 = vmul.f32 %v1549, %v1549
  %v2266 = vmul.f32 %v1551, %v1551
  %v2267 = vmul.f32 %v1555, %v1555
  %v2268 = vmul.f32 %v1557, %v1557
  %v2269 = vmul.f32 %v1559, %v1559
  %v2270 = vmul.f32 %v1561, %v1561
  %v2271 = vmul.f32 %v1565, %v1565
  %v2272 = vmul.f32 %v1567, %v1567
  %v2273 = vmul.f32 %v1569, %v1569
  %v2274 = vmul.f32 %v1571, %v1571
  %v2275 = vmul.f32 %v1575, %v1575
  %v2276 = vmul.f32 %v1577, %v1577
  %v2277 = vmul.f32 %v1579, %v1579
  %v2278 = vmul.f32 %v1581, %v1581
  %v2279 = vmul.f32 %v1585, %v1585
  %v2280 = vmul.f32 %v1587, %v1587
  %v2281 = vmul.f32 %v1589, %v1589
  %v2282 = vmul.f32 %v1591, %v1591
  %v2283 = vmul.f32 %v1595, %v1595
  %v2284 = vmul.f32 %v1597, %v1597
  %v2285 = vmul.f32 %v1599, %v1599
  %v2286 = vmul.f32 %v1601, %v1601
  %v2287 = vmul.f32 %v1605, %v1605
  %v2288 = vmul.f32 %v1607, %v1607
  %v2289 = vmul.f32 %v1609, %v1609
  %v2290 = vmul.f32 %v1611, %v1611
  %v2291 = vmul.f32 %v1615, %v1615
  %v2292 = vmul.f32 %v1617, %v1617
  %v2293 = vmul.f32 %v1619, %v1619
  %v2294 = vmul.f32 %v1621, %v1621
  %v2295 = vmul.f32 %v1625, %v1625
  %v2296 = vmul.f32 %v1627, %v1627
  %v2297 = vmul.f32 %v1629, %v1629
  %v2298 = vmul.f32 %v1631, %v1631
  %v2299 = vmul.f32 %v1635, %v1635
  %v2300 = vmul.f32 %v1637, %v1637
  %v2301 = vmul.f32 %v1639, %v1639
  %v2302 = vmul.f32 %v1641, %v1641
  %v2303 = vmul.f32 %v1645, %v1645
  %v2304 = vmul.f32 %v1647, %v1647
  %v2305 = vmul.f32 %v1649, %v1649
  %v2306 = vmul.f32 %v1651, %v1651
  %v2307 = vmul.f32 %v1655, %v1655
  %v2308 = vmul.f32 %v1657, %v1657
  %v2309 = vmul.f32 %v1659, %v1659
  %v2310 = vmul.f32 %v1661, %v1661
  %v2311 = vmul.f32 %v1665, %v1665
  %v2312 = vmul.f32 %v1667, %v1667
  %v2313 = vmul.f32 %v1669, %v1669
  %v2314 = vmul.f32 %v1671, %v1671
  %v2315 = vmul.f32 %v1675, %v1675
  %v2316 = vmul.f32 %v1677, %v1677
  %v2317 = vmul.f32 %v1679, %v1679
  %v2318 = vmul.f32 %v1681, %v1681
  %v2319 = vmul.f32 %v1685, %v1685
  %v2320 = vmul.f32 %v1687, %v1687
  %v2321 = vmul.f32 %v1689, %v1689
  %v2322 = vmul.f32 %v1691, %v1691
  %v2323 = vmul.f32 %v1695, %v1695
  %v2324 = vmul.f32 %v1697, %v1697
  %v2325 = vmul.f32 %v1699, %v1699
  %v2326 = vmul.f32 %v1701, %v1701
  %v2327 = vmul.f32 %v1705, %v1705
  %v2328 = vmul.f32 %v1707, %v1707
  %v2329 = vmul.f32 %v1709, %v1709
  %v2330 = vmul.f32 %v1711, %v1711
  %v2331 = vmul.f32 %v1715, %v1715
  %v2332 = vmul.f32 %v1717, %v1717
  %v2333 = vmul.f32 %v1719, %v1719
  %v2334 = vmul.f32 %v1721, %v1721
  %v2335 = vmul.f32 %v1725, %v1725
  %v2336 = vmul.f32 %v1727, %v1727
  %v2337 = vmul.f32 %v1729, %v1729
  %v2338 = vmul.f32 %v1731, %v1731
  %v2339 = vmul.f32 %v1735, %v1735
  %v2340 = vmul.f32 %v1737, %v1737
  %v2341 = vmul.f32 %v1739, %v1739
  %v2342 = vmul.f32 %v1741, %v1741
  %v2343 = vmul.f32 %v1745, %v1745
  %v2344 = vmul.f32 %v1747, %v1747
  %v2345 = vmul.f32 %v1749, %v1749
  %v2346 = vmul.f32 %v1751, %v1751
  %v2347 = vmul.f32 %v1755, %v1755
  %v2348 = vmul.f32 %v1757, %v1757
  %v2349 = vmul.f32 %v1759, %v1759
  %v2350 = vmul.f32 %v1761, %v1761
  %v2351 = vmul.f32 %v1765, %v1765
  %v2352 = vmul.f32 %v1767, %v1767
  %v2353 = vmul.f32 %v1769, %v1769
  %v2354 = vmul.f32 %v1771, %v1771
  %v2355 = vmul.f32 %v1775, %v1775
  %v2356 = vmul.f32 %v1777, %v1777
  %v2357 = vmul.f32 %v1779, %v1779
  %v2358 = vmul.f32 %v1781, %v1781
  %v2359 = vmul.f32 %v1785, %v1785
  %v2360 = vmul.f32 %v1787, %v1787
  %v2361 = vmul.f32 %v1789, %v1789
  %v2362 = vmul.f32 %v1791, %v1791
  %v2363 = vmul.f32 %v1795, %v1795
  %v2364 = vmul.f32 %v1797, %v1797
  %v2365 = vmul.f32 %v1799, %v1799
  %v2366 = vmul.f32 %v1801, %v1801
  %v2367 = vmul.f32 %v1805, %v1805
  %v2368 = vmul.f32 %v1807, %v1807
  %v2369 = vmul.f32 %v1809, %v1809
  %v2370 = vmul.f32 %v1811, %v1811
  %v2371 = vmul.f32 %v1815, %v1815
  %v2372 = vmul.f32 %v1817, %v1817
  %v2373 = vmul.f32 %v1819, %v1819
  %v2374 = vmul.f32 %v1821, %v1821
  %v2375 = vmul.f32 %v1825, %v1825
  %v2376 = vmul.f32 %v1827, %v1827
  %v2377 = vmul.f32 %v1829, %v1829
  %v2378 = vmul.f32 %v1831, %v1831
  %v2379 = vmul.f32 %v1835, %v1835
  %v2380 = vmul.f32 %v1837, %v1837
  %v2381 = vmul.f32 %v1839, %v1839
  %v2382 = vmul.f32 %v1841, %v1841
  %v2383 = vmul.f32 %v1845, %v1845
  %v2384 = vmul.f32 %v1847, %v1847
  %v2385 = vmul.f32 %v1849, %v1849
  %v2386 = vmul.f32 %v1851, %v1851
  %v2387 = vmul.f32 %v1855, %v1855
  %v2388 = vmul.f32 %v1857, %v1857
  %v2389 = vmul.f32 %v1859, %v1859
  %v2390 = vmul.f32 %v1861, %v1861
  %v2391 = vmul.f32 %v1865, %v1865
  %v2392 = vmul.f32 %v1867, %v1867
  %v2393 = vmul.f32 %v1869, %v1869
  %v2394 = vmul.f32 %v1871, %v1871
  %v2395 = vmul.f32 %v1875, %v1875
  %v2396 = vmul.f32 %v1877, %v1877
  %v2397 = vmul.f32 %v1879, %v1879
  %v2398 = vmul.f32 %v1881, %v1881
  %v2399 = vmul.f32 %v1885, %v1885
  %v2400 = vmul.f32 %v1887, %v1887
  %v2401 = vmul.f32 %v1889, %v1889
  %v2402 = vmul.f32 %v1891, %v1891
  %v2403 = vmul.f32 %v1895, %v1895
  %v2404 = vmul.f32 %v1897, %v1897
  %v2405 = vmul.f32 %v1899, %v1899
  %v2406 = vmul.f32 %v1901, %v1901
  %v2407 = vmul.f32 %v1905, %v1905
  %v2408 = vmul.f32 %v1907, %v1907
  %v2409 = vmul.f32 %v1909, %v1909
  %v2410 = vmul.f32 %v1911, %v1911
  %v2411 = vmul.f32 %v1915, %v1915
  %v2412 = vmul.f32 %v1917, %v1917
  %v2413 = vmul.f32 %v1919, %v1919
  %v2414 = vmul.f32 %v1921, %v1921
  %v2415 = vmul.f32 %v1925, %v1925
  %v2416 = vmul.f32 %v1927, %v1927
  %v2417 = vmul.f32 %v1929, %v1929
  %v2418 = vmul.f32 %v1931, %v1931
  %v2419 = vmul.f32 %v1935, %v1935
  %v2420 = vmul.f32 %v1937, %v1937
  %v2421 = vmul.f32 %v1939, %v1939
  %v2422 = vmul.f32 %v1941, %v1941
  %v2423 = vmul.f32 %v1945, %v1945
  %v2424 = vmul.f32 %v1947, %v1947
  %v2425 = vmul.f32 %v1949, %v1949
  %v2426 = vmul.f32 %v1951, %v1951
  %v2427 = vmul.f32 %v1955, %v1955
  %v2428 = vmul.f32 %v1957, %v1957
  %v2429 = vmul.f32 %v1959, %v1959
  %v2430 = vmul.f32 %v1961, %v1961
  %v2431 = vmul.f32 %v1965, %v1965
  %v2432 = vmul.f32 %v1967, %v1967
  %v2433 = vmul.f32 %v1969, %v1969
  %v2434 = vmul.f32 %v1971, %v1971
  %v2435 = vmul.f32 %v1975, %v1975
  %v2436 = vmul.f32 %v1977, %v1977
  %v2437 = vmul.f32 %v1979, %v1979
  %v2438 = vmul.f32 %v1981, %v1981
  %v2439 = vmul.f32 %v1985, %v1985
  %v2440 = vmul.f32 %v1987, %v1987
  %v2441 = vmul.f32 %v1989, %v1989
  %v2442 = vmul.f32 %v1991, %v1991
  %v2443 = vmul.f32 %v1995, %v1995
  %v2444 = vmul.f32 %v1997, %v1997
  %v2445 = vmul.f32 %v1999, %v1999
  %v2446 = vmul.f32 %v2001, %v2001
  %v2447 = vmul.f32 %v2005, %v2005
  %v2448 = vmul.f32 %v2007, %v2007
  %v2449 = vmul.f32 %v2009, %v2009
  %v2450 = vmul.f32 %v2011, %v2011
  %v2451 = vmul.f32 %v2015, %v2015
  %v2452 = vmul.f32 %v2017, %v2017
  %v2453 = vmul.f32 %v2019, %v2019
  %v2454 = vmul.f32 %v2021, %v2021
  %v2455 = vmul.f32 %v2025, %v2025
  %v2456 = vmul.f32 %v2027, %v2027
  %v2457 = vmul.f32 %v2029, %v2029
  %v2458 = vmul.f32 %v2031, %v2031
  %v2459 = vmul.f32 %v2035, %v2035
  %v2460 = vmul.f32 %v2037, %v2037
  %v2461 = vmul.f32 %v2039, %v2039
  %v2462 = vmul.f32 %v2041, %v2041
  %v2463 = vmul.f32 %v2045, %v2045
  %v2464 = vmul.f32 %v2047, %v2047
  %v2465 = vmul.f32 %v2049, %v2049
  %v2466 = vmul.f32 %v2051, %v2051
  %v2467 = vmul.f32 %v2055, %v2055
  %v2468 = vmul.f32 %v2057, %v2057
  %v2469 = vmul.f32 %v2059, %v2059
  %v2470 = vmul.f32 %v2061, %v2061
  %v2471 = vmul.f32 %v2065, %v2065
  %v2472 = vmul.f32 %v2067, %v2067
  %v2473 = vmul.f32 %v2069, %v2069
  %v2474 = vmul.f32 %v2071, %v2071
  %v2475 = vmul.f32 %v2075, %v2075
  %v2476 = vmul.f32 %v2077, %v2077
  %v2477 = vmul.f32 %v2079, %v2079
  %v2478 = vmul.f32 %v2081, %v2081
  %v2479 = vmul.f32 %v2085, %v2085
  %v2480 = vmul.f32 %v2087, %v2087
  %v2481 = vmul.f32 %v2089, %v2089
  %v2482 = vmul.f32 %v2091, %v2091
  %v2483 = vmul.f32 %v2095, %v2095
  %v2484 = vmul.f32 %v2097, %v2097
  %v2485 = vmul.f32 %v2099, %v2099
  %v2486 = vmul.f32 %v2101, %v2101
  %v2487 = vmul.f32 %v2105, %v2105
  %v2488 = vmul.f32 %v2107, %v2107
  %v2489 = vmul.f32 %v2109, %v2109
  %v2490 = vmul.f32 %v2111, %v2111
  %v2491 = vmul.f32 %v2115, %v2115
  %v2492 = vmul.f32 %v2117, %v2117
  %v2493 = vmul.f32 %v2119, %v2119
  %v2494 = vmul.f32 %v2121, %v2121
  %v2495 = vmul.f32 %v2125, %v2125
  %v2496 = vmul.f32 %v2127, %v2127
  %v2497 = vmul.f32 %v2129, %v2129
  %v2498 = vmul.f32 %v2131, %v2131
  %v2499 = vmul.f32 %v2135, %v2135
  %v2500 = vmul.f32 %v2137, %v2137
  %v2501 = vmul.f32 %v2139, %v2139
  %v2502 = vmul.f32 %v2141, %v2141
  %v2503 = vmul.f32 %v2145, %v2145
  %v2504 = vmul.f32 %v2147, %v2147
  %v2505 = vmul.f32 %v2149, %v2149
  %v2506 = vmul.f32 %v2151, %v2151
  %v2507 = vmul.f32 %v2155, %v2155
  %v2508 = vmul.f32 %v2157, %v2157
  %v2509 = vmul.f32 %v2159, %v2159
  %v2510 = vmul.f32 %v2161, %v2161
  %v2511 = vmul.f32 %v2165, %v2165
  %v2512 = vmul.f32 %v2167, %v2167
  %v2513 = vmul.f32 %v2169, %v2169
  %v2514 = vmul.f32 %v2171, %v2171
  %v2515 = vmul.f32 %v2175, %v2175
  %v2516 = vmul.f32 %v2177, %v2177
  %v2517 = vmul.f32 %v2179, %v2179
  %v2518 = vmul.f32 %v2181, %v2181
  %v2519 = vmul.f32 %v2185, %v2185
  %v2520 = vmul.f32 %v2187, %v2187
  %v2521 = vmul.f32 %v2189, %v2189
  %v2522 = vmul.f32 %v2191, %v2191
  %v2523 = vmul.f32 %v2195, %v2195
  %v2524 = vmul.f32 %v2197, %v2197
  %v2525 = vmul.f32 %v2199, %v2199
  %v2526 = vmul.f32 %v2201, %v2201
  %v2527 = vmul.f32 %v2205, %v2205
  %v2528 = vmul.f32 %v2207, %v2207
  %v2529 = vmul.f32 %v2209, %v2209
  %v2530 = vmul.f32 %v2211, %v2211
  %v2531 = vmul.f32 %v2215, %v2215
  %v2532 = vmul.f32 %v2217, %v2217
  %v2533 = vmul.f32 %v2219, %v2219
  %v2534 = vmul.f32 %v2221, %v2221
  %v2535 = vmul.f32 %v2225, %v2225
  %v2536 = vmul.f32 %v2227, %v2227
  %v2537 = vmul.f32 %v2229, %v2229
  %v2538 = vmul.f32 %v2231, %v2231
  %v2539 = vmul.f32 %v2235, %v2235
  %v2540 = vmul.f32 %v2237, %v2237
  %v2541 = vmul.f32 %v2239, %v2239
  %v2542 = vmul.f32 %v2241, %v2241
  %v2543 = vadd.f32 %v2243, %v2244
  %2544 = vadd.xlane.f32.xlu0 %v2543
  %v2545 = vpop.xlane.xlu0 %2544
  %v2546 = vadd.f32 %v2245, %v2246
  %2547 = vadd.xlane.f32.xlu0 %v2546
  %v2548 = vpop.xlane.xlu0 %2547
  %v2549 = vadd.f32 %v2247, %v2248
  %2550 = vadd.xlane.f32.xlu0 %v2549
  %v2551 = vpop.xlane.xlu0 %2550
  %v2552 = vadd.f32 %v2249, %v2250
  %2553 = vadd.xlane.f32.xlu0 %v2552
  %v2554 = vpop.xlane.xlu0 %2553
  %v2555 = vadd.f32 %v2251, %v2252
  %2556 = vadd.xlane.f32.xlu0 %v2555
  %v2557 = vpop.xlane.xlu0 %2556
  %v2558 = vadd.f32 %v2253, %v2254
  %2559 = vadd.xlane.f32.xlu0 %v2558
  %v2560 = vpop.xlane.xlu0 %2559
  %v2561 = vadd.f32 %v2255, %v2256
  %2562 = vadd.xlane.f32.xlu0 %v2561
  %v2563 = vpop.xlane.xlu0 %2562
  %v2564 = vadd.f32 %v2257, %v2258
  %2565 = vadd.xlane.f32.xlu0 %v2564
  %v2566 = vpop.xlane.xlu0 %2565
  %v2567 = vadd.f32 %v2259, %v2260
  %2568 = vadd.xlane.f32.xlu0 %v2567
  %v2569 = vpop.xlane.xlu0 %2568
  %v2570 = vadd.f32 %v2261, %v2262
  %2571 = vadd.xlane.f32.xlu0 %v2570
  %v2572 = vpop.xlane.xlu0 %2571
  %v2573 = vadd.f32 %v2263, %v2264
  %2574 = vadd.xlane.f32.xlu0 %v2573
  %v2575 = vpop.xlane.xlu0 %2574
  %v2576 = vadd.f32 %v2265, %v2266
  %2577 = vadd.xlane.f32.xlu0 %v2576
  %v2578 = vpop.xlane.xlu0 %2577
  %v2579 = vadd.f32 %v2267, %v2268
  %2580 = vadd.xlane.f32.xlu0 %v2579
  %v2581 = vpop.xlane.xlu0 %2580
  %v2582 = vadd.f32 %v2269, %v2270
  %2583 = vadd.xlane.f32.xlu0 %v2582
  %v2584 = vpop.xlane.xlu0 %2583
  %v2585 = vadd.f32 %v2271, %v2272
  %2586 = vadd.xlane.f32.xlu0 %v2585
  %v2587 = vpop.xlane.xlu0 %2586
  %v2588 = vadd.f32 %v2273, %v2274
  %2589 = vadd.xlane.f32.xlu0 %v2588
  %v2590 = vpop.xlane.xlu0 %2589
  %v2591 = vadd.f32 %v2275, %v2276
  %2592 = vadd.xlane.f32.xlu0 %v2591
  %v2593 = vpop.xlane.xlu0 %2592
  %v2594 = vadd.f32 %v2277, %v2278
  %2595 = vadd.xlane.f32.xlu0 %v2594
  %v2596 = vpop.xlane.xlu0 %2595
  %v2597 = vadd.f32 %v2279, %v2280
  %2598 = vadd.xlane.f32.xlu0 %v2597
  %v2599 = vpop.xlane.xlu0 %2598
  %v2600 = vadd.f32 %v2281, %v2282
  %2601 = vadd.xlane.f32.xlu0 %v2600
  %v2602 = vpop.xlane.xlu0 %2601
  %v2603 = vadd.f32 %v2283, %v2284
  %2604 = vadd.xlane.f32.xlu0 %v2603
  %v2605 = vpop.xlane.xlu0 %2604
  %v2606 = vadd.f32 %v2285, %v2286
  %2607 = vadd.xlane.f32.xlu0 %v2606
  %v2608 = vpop.xlane.xlu0 %2607
  %v2609 = vadd.f32 %v2287, %v2288
  %2610 = vadd.xlane.f32.xlu0 %v2609
  %v2611 = vpop.xlane.xlu0 %2610
  %v2612 = vadd.f32 %v2289, %v2290
  %2613 = vadd.xlane.f32.xlu0 %v2612
  %v2614 = vpop.xlane.xlu0 %2613
  %v2615 = vadd.f32 %v2291, %v2292
  %2616 = vadd.xlane.f32.xlu0 %v2615
  %v2617 = vpop.xlane.xlu0 %2616
  %v2618 = vadd.f32 %v2293, %v2294
  %2619 = vadd.xlane.f32.xlu0 %v2618
  %v2620 = vpop.xlane.xlu0 %2619
  %v2621 = vadd.f32 %v2295, %v2296
  %2622 = vadd.xlane.f32.xlu0 %v2621
  %v2623 = vpop.xlane.xlu0 %2622
  %v2624 = vadd.f32 %v2297, %v2298
  %2625 = vadd.xlane.f32.xlu0 %v2624
  %v2626 = vpop.xlane.xlu0 %2625
  %v2627 = vadd.f32 %v2299, %v2300
  %2628 = vadd.xlane.f32.xlu0 %v2627
  %v2629 = vpop.xlane.xlu0 %2628
  %v2630 = vadd.f32 %v2301, %v2302
  %2631 = vadd.xlane.f32.xlu0 %v2630
  %v2632 = vpop.xlane.xlu0 %2631
  %v2633 = vadd.f32 %v2303, %v2304
  %2634 = vadd.xlane.f32.xlu0 %v2633
  %v2635 = vpop.xlane.xlu0 %2634
  %v2636 = vadd.f32 %v2305, %v2306
  %2637 = vadd.xlane.f32.xlu0 %v2636
  %v2638 = vpop.xlane.xlu0 %2637
  %v2639 = vadd.f32 %v2307, %v2308
  %2640 = vadd.xlane.f32.xlu0 %v2639
  %v2641 = vpop.xlane.xlu0 %2640
  %v2642 = vadd.f32 %v2309, %v2310
  %2643 = vadd.xlane.f32.xlu0 %v2642
  %v2644 = vpop.xlane.xlu0 %2643
  %v2645 = vadd.f32 %v2311, %v2312
  %2646 = vadd.xlane.f32.xlu0 %v2645
  %v2647 = vpop.xlane.xlu0 %2646
  %v2648 = vadd.f32 %v2313, %v2314
  %2649 = vadd.xlane.f32.xlu0 %v2648
  %v2650 = vpop.xlane.xlu0 %2649
  %v2651 = vadd.f32 %v2315, %v2316
  %2652 = vadd.xlane.f32.xlu0 %v2651
  %v2653 = vpop.xlane.xlu0 %2652
  %v2654 = vadd.f32 %v2317, %v2318
  %2655 = vadd.xlane.f32.xlu0 %v2654
  %v2656 = vpop.xlane.xlu0 %2655
  %v2657 = vadd.f32 %v2319, %v2320
  %2658 = vadd.xlane.f32.xlu0 %v2657
  %v2659 = vpop.xlane.xlu0 %2658
  %v2660 = vadd.f32 %v2321, %v2322
  %2661 = vadd.xlane.f32.xlu0 %v2660
  %v2662 = vpop.xlane.xlu0 %2661
  %v2663 = vadd.f32 %v2323, %v2324
  %2664 = vadd.xlane.f32.xlu0 %v2663
  %v2665 = vpop.xlane.xlu0 %2664
  %v2666 = vadd.f32 %v2325, %v2326
  %2667 = vadd.xlane.f32.xlu0 %v2666
  %v2668 = vpop.xlane.xlu0 %2667
  %v2669 = vadd.f32 %v2327, %v2328
  %2670 = vadd.xlane.f32.xlu0 %v2669
  %v2671 = vpop.xlane.xlu0 %2670
  %v2672 = vadd.f32 %v2329, %v2330
  %2673 = vadd.xlane.f32.xlu0 %v2672
  %v2674 = vpop.xlane.xlu0 %2673
  %v2675 = vadd.f32 %v2331, %v2332
  %2676 = vadd.xlane.f32.xlu0 %v2675
  %v2677 = vpop.xlane.xlu0 %2676
  %v2678 = vadd.f32 %v2333, %v2334
  %2679 = vadd.xlane.f32.xlu0 %v2678
  %v2680 = vpop.xlane.xlu0 %2679
  %v2681 = vadd.f32 %v2335, %v2336
  %2682 = vadd.xlane.f32.xlu0 %v2681
  %v2683 = vpop.xlane.xlu0 %2682
  %v2684 = vadd.f32 %v2337, %v2338
  %2685 = vadd.xlane.f32.xlu0 %v2684
  %v2686 = vpop.xlane.xlu0 %2685
  %v2687 = vadd.f32 %v2339, %v2340
  %2688 = vadd.xlane.f32.xlu0 %v2687
  %v2689 = vpop.xlane.xlu0 %2688
  %v2690 = vadd.f32 %v2341, %v2342
  %2691 = vadd.xlane.f32.xlu0 %v2690
  %v2692 = vpop.xlane.xlu0 %2691
  %v2693 = vadd.f32 %v2343, %v2344
  %2694 = vadd.xlane.f32.xlu0 %v2693
  %v2695 = vpop.xlane.xlu0 %2694
  %v2696 = vadd.f32 %v2345, %v2346
  %2697 = vadd.xlane.f32.xlu0 %v2696
  %v2698 = vpop.xlane.xlu0 %2697
  %v2699 = vadd.f32 %v2347, %v2348
  %2700 = vadd.xlane.f32.xlu0 %v2699
  %v2701 = vpop.xlane.xlu0 %2700
  %v2702 = vadd.f32 %v2349, %v2350
  %2703 = vadd.xlane.f32.xlu0 %v2702
  %v2704 = vpop.xlane.xlu0 %2703
  %v2705 = vadd.f32 %v2351, %v2352
  %2706 = vadd.xlane.f32.xlu0 %v2705
  %v2707 = vpop.xlane.xlu0 %2706
  %v2708 = vadd.f32 %v2353, %v2354
  %2709 = vadd.xlane.f32.xlu0 %v2708
  %v2710 = vpop.xlane.xlu0 %2709
  %v2711 = vadd.f32 %v2355, %v2356
  %2712 = vadd.xlane.f32.xlu0 %v2711
  %v2713 = vpop.xlane.xlu0 %2712
  %v2714 = vadd.f32 %v2357, %v2358
  %2715 = vadd.xlane.f32.xlu0 %v2714
  %v2716 = vpop.xlane.xlu0 %2715
  %v2717 = vadd.f32 %v2359, %v2360
  %2718 = vadd.xlane.f32.xlu0 %v2717
  %v2719 = vpop.xlane.xlu0 %2718
  %v2720 = vadd.f32 %v2361, %v2362
  %2721 = vadd.xlane.f32.xlu0 %v2720
  %v2722 = vpop.xlane.xlu0 %2721
  %v2723 = vadd.f32 %v2363, %v2364
  %2724 = vadd.xlane.f32.xlu0 %v2723
  %v2725 = vpop.xlane.xlu0 %2724
  %v2726 = vadd.f32 %v2365, %v2366
  %2727 = vadd.xlane.f32.xlu0 %v2726
  %v2728 = vpop.xlane.xlu0 %2727
  %v2729 = vadd.f32 %v2367, %v2368
  %2730 = vadd.xlane.f32.xlu0 %v2729
  %v2731 = vpop.xlane.xlu0 %2730
  %v2732 = vadd.f32 %v2369, %v2370
  %2733 = vadd.xlane.f32.xlu0 %v2732
  %v2734 = vpop.xlane.xlu0 %2733
  %v2735 = vadd.f32 %v2371, %v2372
  %2736 = vadd.xlane.f32.xlu0 %v2735
  %v2737 = vpop.xlane.xlu0 %2736
  %v2738 = vadd.f32 %v2373, %v2374
  %2739 = vadd.xlane.f32.xlu0 %v2738
  %v2740 = vpop.xlane.xlu0 %2739
  %v2741 = vadd.f32 %v2375, %v2376
  %2742 = vadd.xlane.f32.xlu0 %v2741
  %v2743 = vpop.xlane.xlu0 %2742
  %v2744 = vadd.f32 %v2377, %v2378
  %2745 = vadd.xlane.f32.xlu0 %v2744
  %v2746 = vpop.xlane.xlu0 %2745
  %v2747 = vadd.f32 %v2379, %v2380
  %2748 = vadd.xlane.f32.xlu0 %v2747
  %v2749 = vpop.xlane.xlu0 %2748
  %v2750 = vadd.f32 %v2381, %v2382
  %2751 = vadd.xlane.f32.xlu0 %v2750
  %v2752 = vpop.xlane.xlu0 %2751
  %v2753 = vadd.f32 %v2383, %v2384
  %2754 = vadd.xlane.f32.xlu0 %v2753
  %v2755 = vpop.xlane.xlu0 %2754
  %v2756 = vadd.f32 %v2385, %v2386
  %2757 = vadd.xlane.f32.xlu0 %v2756
  %v2758 = vpop.xlane.xlu0 %2757
  %v2759 = vadd.f32 %v2387, %v2388
  %2760 = vadd.xlane.f32.xlu0 %v2759
  %v2761 = vpop.xlane.xlu0 %2760
  %v2762 = vadd.f32 %v2389, %v2390
  %2763 = vadd.xlane.f32.xlu0 %v2762
  %v2764 = vpop.xlane.xlu0 %2763
  %v2765 = vadd.f32 %v2391, %v2392
  %2766 = vadd.xlane.f32.xlu0 %v2765
  %v2767 = vpop.xlane.xlu0 %2766
  %v2768 = vadd.f32 %v2393, %v2394
  %2769 = vadd.xlane.f32.xlu0 %v2768
  %v2770 = vpop.xlane.xlu0 %2769
  %v2771 = vadd.f32 %v2395, %v2396
  %2772 = vadd.xlane.f32.xlu0 %v2771
  %v2773 = vpop.xlane.xlu0 %2772
  %v2774 = vadd.f32 %v2397, %v2398
  %2775 = vadd.xlane.f32.xlu0 %v2774
  %v2776 = vpop.xlane.xlu0 %2775
  %v2777 = vadd.f32 %v2399, %v2400
  %2778 = vadd.xlane.f32.xlu0 %v2777
  %v2779 = vpop.xlane.xlu0 %2778
  %v2780 = vadd.f32 %v2401, %v2402
  %2781 = vadd.xlane.f32.xlu0 %v2780
  %v2782 = vpop.xlane.xlu0 %2781
  %v2783 = vadd.f32 %v2403, %v2404
  %2784 = vadd.xlane.f32.xlu0 %v2783
  %v2785 = vpop.xlane.xlu0 %2784
  %v2786 = vadd.f32 %v2405, %v2406
  %2787 = vadd.xlane.f32.xlu0 %v2786
  %v2788 = vpop.xlane.xlu0 %2787
  %v2789 = vadd.f32 %v2407, %v2408
  %2790 = vadd.xlane.f32.xlu0 %v2789
  %v2791 = vpop.xlane.xlu0 %2790
  %v2792 = vadd.f32 %v2409, %v2410
  %2793 = vadd.xlane.f32.xlu0 %v2792
  %v2794 = vpop.xlane.xlu0 %2793
  %v2795 = vadd.f32 %v2411, %v2412
  %2796 = vadd.xlane.f32.xlu0 %v2795
  %v2797 = vpop.xlane.xlu0 %2796
  %v2798 = vadd.f32 %v2413, %v2414
  %2799 = vadd.xlane.f32.xlu0 %v2798
  %v2800 = vpop.xlane.xlu0 %2799
  %v2801 = vadd.f32 %v2415, %v2416
  %2802 = vadd.xlane.f32.xlu0 %v2801
  %v2803 = vpop.xlane.xlu0 %2802
  %v2804 = vadd.f32 %v2417, %v2418
  %2805 = vadd.xlane.f32.xlu0 %v2804
  %v2806 = vpop.xlane.xlu0 %2805
  %v2807 = vadd.f32 %v2419, %v2420
  %2808 = vadd.xlane.f32.xlu0 %v2807
  %v2809 = vpop.xlane.xlu0 %2808
  %v2810 = vadd.f32 %v2421, %v2422
  %2811 = vadd.xlane.f32.xlu0 %v2810
  %v2812 = vpop.xlane.xlu0 %2811
  %v2813 = vadd.f32 %v2423, %v2424
  %2814 = vadd.xlane.f32.xlu0 %v2813
  %v2815 = vpop.xlane.xlu0 %2814
  %v2816 = vadd.f32 %v2425, %v2426
  %2817 = vadd.xlane.f32.xlu0 %v2816
  %v2818 = vpop.xlane.xlu0 %2817
  %v2819 = vadd.f32 %v2427, %v2428
  %2820 = vadd.xlane.f32.xlu0 %v2819
  %v2821 = vpop.xlane.xlu0 %2820
  %v2822 = vadd.f32 %v2429, %v2430
  %2823 = vadd.xlane.f32.xlu0 %v2822
  %v2824 = vpop.xlane.xlu0 %2823
  %v2825 = vadd.f32 %v2431, %v2432
  %2826 = vadd.xlane.f32.xlu0 %v2825
  %v2827 = vpop.xlane.xlu0 %2826
  %v2828 = vadd.f32 %v2433, %v2434
  %2829 = vadd.xlane.f32.xlu0 %v2828
  %v2830 = vpop.xlane.xlu0 %2829
  %v2831 = vadd.f32 %v2435, %v2436
  %2832 = vadd.xlane.f32.xlu0 %v2831
  %v2833 = vpop.xlane.xlu0 %2832
  %v2834 = vadd.f32 %v2437, %v2438
  %2835 = vadd.xlane.f32.xlu0 %v2834
  %v2836 = vpop.xlane.xlu0 %2835
  %v2837 = vadd.f32 %v2439, %v2440
  %2838 = vadd.xlane.f32.xlu0 %v2837
  %v2839 = vpop.xlane.xlu0 %2838
  %v2840 = vadd.f32 %v2441, %v2442
  %2841 = vadd.xlane.f32.xlu0 %v2840
  %v2842 = vpop.xlane.xlu0 %2841
  %v2843 = vadd.f32 %v2443, %v2444
  %2844 = vadd.xlane.f32.xlu0 %v2843
  %v2845 = vpop.xlane.xlu0 %2844
  %v2846 = vadd.f32 %v2445, %v2446
  %2847 = vadd.xlane.f32.xlu0 %v2846
  %v2848 = vpop.xlane.xlu0 %2847
  %v2849 = vadd.f32 %v2447, %v2448
  %2850 = vadd.xlane.f32.xlu0 %v2849
  %v2851 = vpop.xlane.xlu0 %2850
  %v2852 = vadd.f32 %v2449, %v2450
  %2853 = vadd.xlane.f32.xlu0 %v2852
  %v2854 = vpop.xlane.xlu0 %2853
  %v2855 = vadd.f32 %v2451, %v2452
  %2856 = vadd.xlane.f32.xlu0 %v2855
  %v2857 = vpop.xlane.xlu0 %2856
  %v2858 = vadd.f32 %v2453, %v2454
  %2859 = vadd.xlane.f32.xlu0 %v2858
  %v2860 = vpop.xlane.xlu0 %2859
  %v2861 = vadd.f32 %v2455, %v2456
  %2862 = vadd.xlane.f32.xlu0 %v2861
  %v2863 = vpop.xlane.xlu0 %2862
  %v2864 = vadd.f32 %v2457, %v2458
  %2865 = vadd.xlane.f32.xlu0 %v2864
  %v2866 = vpop.xlane.xlu0 %2865
  %v2867 = vadd.f32 %v2459, %v2460
  %2868 = vadd.xlane.f32.xlu0 %v2867
  %v2869 = vpop.xlane.xlu0 %2868
  %v2870 = vadd.f32 %v2461, %v2462
  %2871 = vadd.xlane.f32.xlu0 %v2870
  %v2872 = vpop.xlane.xlu0 %2871
  %v2873 = vadd.f32 %v2463, %v2464
  %2874 = vadd.xlane.f32.xlu0 %v2873
  %v2875 = vpop.xlane.xlu0 %2874
  %v2876 = vadd.f32 %v2465, %v2466
  %2877 = vadd.xlane.f32.xlu0 %v2876
  %v2878 = vpop.xlane.xlu0 %2877
  %v2879 = vadd.f32 %v2467, %v2468
  %2880 = vadd.xlane.f32.xlu0 %v2879
  %v2881 = vpop.xlane.xlu0 %2880
  %v2882 = vadd.f32 %v2469, %v2470
  %2883 = vadd.xlane.f32.xlu0 %v2882
  %v2884 = vpop.xlane.xlu0 %2883
  %v2885 = vadd.f32 %v2471, %v2472
  %2886 = vadd.xlane.f32.xlu0 %v2885
  %v2887 = vpop.xlane.xlu0 %2886
  %v2888 = vadd.f32 %v2473, %v2474
  %2889 = vadd.xlane.f32.xlu0 %v2888
  %v2890 = vpop.xlane.xlu0 %2889
  %v2891 = vadd.f32 %v2475, %v2476
  %2892 = vadd.xlane.f32.xlu0 %v2891
  %v2893 = vpop.xlane.xlu0 %2892
  %v2894 = vadd.f32 %v2477, %v2478
  %2895 = vadd.xlane.f32.xlu0 %v2894
  %v2896 = vpop.xlane.xlu0 %2895
  %v2897 = vadd.f32 %v2479, %v2480
  %2898 = vadd.xlane.f32.xlu0 %v2897
  %v2899 = vpop.xlane.xlu0 %2898
  %v2900 = vadd.f32 %v2481, %v2482
  %2901 = vadd.xlane.f32.xlu0 %v2900
  %v2902 = vpop.xlane.xlu0 %2901
  %v2903 = vadd.f32 %v2483, %v2484
  %2904 = vadd.xlane.f32.xlu0 %v2903
  %v2905 = vpop.xlane.xlu0 %2904
  %v2906 = vadd.f32 %v2485, %v2486
  %2907 = vadd.xlane.f32.xlu0 %v2906
  %v2908 = vpop.xlane.xlu0 %2907
  %v2909 = vadd.f32 %v2487, %v2488
  %2910 = vadd.xlane.f32.xlu0 %v2909
  %v2911 = vpop.xlane.xlu0 %2910
  %v2912 = vadd.f32 %v2489, %v2490
  %2913 = vadd.xlane.f32.xlu0 %v2912
  %v2914 = vpop.xlane.xlu0 %2913
  %v2915 = vadd.f32 %v2491, %v2492
  %2916 = vadd.xlane.f32.xlu0 %v2915
  %v2917 = vpop.xlane.xlu0 %2916
  %v2918 = vadd.f32 %v2493, %v2494
  %2919 = vadd.xlane.f32.xlu0 %v2918
  %v2920 = vpop.xlane.xlu0 %2919
  %v2921 = vadd.f32 %v2495, %v2496
  %2922 = vadd.xlane.f32.xlu0 %v2921
  %v2923 = vpop.xlane.xlu0 %2922
  %v2924 = vadd.f32 %v2497, %v2498
  %2925 = vadd.xlane.f32.xlu0 %v2924
  %v2926 = vpop.xlane.xlu0 %2925
  %v2927 = vadd.f32 %v2499, %v2500
  %2928 = vadd.xlane.f32.xlu0 %v2927
  %v2929 = vpop.xlane.xlu0 %2928
  %v2930 = vadd.f32 %v2501, %v2502
  %2931 = vadd.xlane.f32.xlu0 %v2930
  %v2932 = vpop.xlane.xlu0 %2931
  %v2933 = vadd.f32 %v2503, %v2504
  %2934 = vadd.xlane.f32.xlu0 %v2933
  %v2935 = vpop.xlane.xlu0 %2934
  %v2936 = vadd.f32 %v2505, %v2506
  %2937 = vadd.xlane.f32.xlu0 %v2936
  %v2938 = vpop.xlane.xlu0 %2937
  %v2939 = vadd.f32 %v2507, %v2508
  %2940 = vadd.xlane.f32.xlu0 %v2939
  %v2941 = vpop.xlane.xlu0 %2940
  %v2942 = vadd.f32 %v2509, %v2510
  %2943 = vadd.xlane.f32.xlu0 %v2942
  %v2944 = vpop.xlane.xlu0 %2943
  %v2945 = vadd.f32 %v2511, %v2512
  %2946 = vadd.xlane.f32.xlu0 %v2945
  %v2947 = vpop.xlane.xlu0 %2946
  %v2948 = vadd.f32 %v2513, %v2514
  %2949 = vadd.xlane.f32.xlu0 %v2948
  %v2950 = vpop.xlane.xlu0 %2949
  %v2951 = vadd.f32 %v2515, %v2516
  %2952 = vadd.xlane.f32.xlu0 %v2951
  %v2953 = vpop.xlane.xlu0 %2952
  %v2954 = vadd.f32 %v2517, %v2518
  %2955 = vadd.xlane.f32.xlu0 %v2954
  %v2956 = vpop.xlane.xlu0 %2955
  %v2957 = vadd.f32 %v2519, %v2520
  %2958 = vadd.xlane.f32.xlu0 %v2957
  %v2959 = vpop.xlane.xlu0 %2958
  %v2960 = vadd.f32 %v2521, %v2522
  %2961 = vadd.xlane.f32.xlu0 %v2960
  %v2962 = vpop.xlane.xlu0 %2961
  %v2963 = vadd.f32 %v2523, %v2524
  %2964 = vadd.xlane.f32.xlu0 %v2963
  %v2965 = vpop.xlane.xlu0 %2964
  %v2966 = vadd.f32 %v2525, %v2526
  %2967 = vadd.xlane.f32.xlu0 %v2966
  %v2968 = vpop.xlane.xlu0 %2967
  %v2969 = vadd.f32 %v2527, %v2528
  %2970 = vadd.xlane.f32.xlu0 %v2969
  %v2971 = vpop.xlane.xlu0 %2970
  %v2972 = vadd.f32 %v2529, %v2530
  %2973 = vadd.xlane.f32.xlu0 %v2972
  %v2974 = vpop.xlane.xlu0 %2973
  %v2975 = vadd.f32 %v2531, %v2532
  %2976 = vadd.xlane.f32.xlu0 %v2975
  %v2977 = vpop.xlane.xlu0 %2976
  %v2978 = vadd.f32 %v2533, %v2534
  %2979 = vadd.xlane.f32.xlu0 %v2978
  %v2980 = vpop.xlane.xlu0 %2979
  %v2981 = vadd.f32 %v2535, %v2536
  %2982 = vadd.xlane.f32.xlu0 %v2981
  %v2983 = vpop.xlane.xlu0 %2982
  %v2984 = vadd.f32 %v2537, %v2538
  %2985 = vadd.xlane.f32.xlu0 %v2984
  %v2986 = vpop.xlane.xlu0 %2985
  %v2987 = vadd.f32 %v2539, %v2540
  %2988 = vadd.xlane.f32.xlu0 %v2987
  %v2989 = vpop.xlane.xlu0 %2988
  %v2990 = vadd.f32 %v2541, %v2542
  %2991 = vadd.xlane.f32.xlu0 %v2990
  %v2992 = vpop.xlane.xlu0 %2991
  %v2993 = vmul.f32 %v2545, 0.0051020407
  %v2994 = vmul.f32 %v2548, 0.0051020407
  %v2995 = vmul.f32 %v2551, 0.0051020407
  %v2996 = vmul.f32 %v2554, 0.0051020407
  %v2997 = vmul.f32 %v2557, 0.0051020407
  %v2998 = vmul.f32 %v2560, 0.0051020407
  %v2999 = vmul.f32 %v2563, 0.0051020407
  %v3000 = vmul.f32 %v2566, 0.0051020407
  %v3001 = vmul.f32 %v2569, 0.0051020407
  %v3002 = vmul.f32 %v2572, 0.0051020407
  %v3003 = vmul.f32 %v2575, 0.0051020407
  %v3004 = vmul.f32 %v2578, 0.0051020407
  %v3005 = vmul.f32 %v2581, 0.0051020407
  %v3006 = vmul.f32 %v2584, 0.0051020407
  %v3007 = vmul.f32 %v2587, 0.0051020407
  %v3008 = vmul.f32 %v2590, 0.0051020407
  %v3009 = vmul.f32 %v2593, 0.0051020407
  %v3010 = vmul.f32 %v2596, 0.0051020407
  %v3011 = vmul.f32 %v2599, 0.0051020407
  %v3012 = vmul.f32 %v2602, 0.0051020407
  %v3013 = vmul.f32 %v2605, 0.0051020407
  %v3014 = vmul.f32 %v2608, 0.0051020407
  %v3015 = vmul.f32 %v2611, 0.0051020407
  %v3016 = vmul.f32 %v2614, 0.0051020407
  %v3017 = vmul.f32 %v2617, 0.0051020407
  %v3018 = vmul.f32 %v2620, 0.0051020407
  %v3019 = vmul.f32 %v2623, 0.0051020407
  %v3020 = vmul.f32 %v2626, 0.0051020407
  %v3021 = vmul.f32 %v2629, 0.0051020407
  %v3022 = vmul.f32 %v2632, 0.0051020407
  %v3023 = vmul.f32 %v2635, 0.0051020407
  %v3024 = vmul.f32 %v2638, 0.0051020407
  %v3025 = vmul.f32 %v2641, 0.0051020407
  %v3026 = vmul.f32 %v2644, 0.0051020407
  %v3027 = vmul.f32 %v2647, 0.0051020407
  %v3028 = vmul.f32 %v2650, 0.0051020407
  %v3029 = vmul.f32 %v2653, 0.0051020407
  %v3030 = vmul.f32 %v2656, 0.0051020407
  %v3031 = vmul.f32 %v2659, 0.0051020407
  %v3032 = vmul.f32 %v2662, 0.0051020407
  %v3033 = vmul.f32 %v2665, 0.0051020407
  %v3034 = vmul.f32 %v2668, 0.0051020407
  %v3035 = vmul.f32 %v2671, 0.0051020407
  %v3036 = vmul.f32 %v2674, 0.0051020407
  %v3037 = vmul.f32 %v2677, 0.0051020407
  %v3038 = vmul.f32 %v2680, 0.0051020407
  %v3039 = vmul.f32 %v2683, 0.0051020407
  %v3040 = vmul.f32 %v2686, 0.0051020407
  %v3041 = vmul.f32 %v2689, 0.0051020407
  %v3042 = vmul.f32 %v2692, 0.0051020407
  %v3043 = vmul.f32 %v2695, 0.0051020407
  %v3044 = vmul.f32 %v2698, 0.0051020407
  %v3045 = vmul.f32 %v2701, 0.0051020407
  %v3046 = vmul.f32 %v2704, 0.0051020407
  %v3047 = vmul.f32 %v2707, 0.0051020407
  %v3048 = vmul.f32 %v2710, 0.0051020407
  %v3049 = vmul.f32 %v2713, 0.0051020407
  %v3050 = vmul.f32 %v2716, 0.0051020407
  %v3051 = vmul.f32 %v2719, 0.0051020407
  %v3052 = vmul.f32 %v2722, 0.0051020407
  %v3053 = vmul.f32 %v2725, 0.0051020407
  %v3054 = vmul.f32 %v2728, 0.0051020407
  %v3055 = vmul.f32 %v2731, 0.0051020407
  %v3056 = vmul.f32 %v2734, 0.0051020407
  %v3057 = vmul.f32 %v2737, 0.0051020407
  %v3058 = vmul.f32 %v2740, 0.0051020407
  %v3059 = vmul.f32 %v2743, 0.0051020407
  %v3060 = vmul.f32 %v2746, 0.0051020407
  %v3061 = vmul.f32 %v2749, 0.0051020407
  %v3062 = vmul.f32 %v2752, 0.0051020407
  %v3063 = vmul.f32 %v2755, 0.0051020407
  %v3064 = vmul.f32 %v2758, 0.0051020407
  %v3065 = vmul.f32 %v2761, 0.0051020407
  %v3066 = vmul.f32 %v2764, 0.0051020407
  %v3067 = vmul.f32 %v2767, 0.0051020407
  %v3068 = vmul.f32 %v2770, 0.0051020407
  %v3069 = vmul.f32 %v2773, 0.0051020407
  %v3070 = vmul.f32 %v2776, 0.0051020407
  %v3071 = vmul.f32 %v2779, 0.0051020407
  %v3072 = vmul.f32 %v2782, 0.0051020407
  %v3073 = vmul.f32 %v2785, 0.0051020407
  %v3074 = vmul.f32 %v2788, 0.0051020407
  %v3075 = vmul.f32 %v2791, 0.0051020407
  %v3076 = vmul.f32 %v2794, 0.0051020407
  %v3077 = vmul.f32 %v2797, 0.0051020407
  %v3078 = vmul.f32 %v2800, 0.0051020407
  %v3079 = vmul.f32 %v2803, 0.0051020407
  %v3080 = vmul.f32 %v2806, 0.0051020407
  %v3081 = vmul.f32 %v2809, 0.0051020407
  %v3082 = vmul.f32 %v2812, 0.0051020407
  %v3083 = vmul.f32 %v2815, 0.0051020407
  %v3084 = vmul.f32 %v2818, 0.0051020407
  %v3085 = vmul.f32 %v2821, 0.0051020407
  %v3086 = vmul.f32 %v2824, 0.0051020407
  %v3087 = vmul.f32 %v2827, 0.0051020407
  %v3088 = vmul.f32 %v2830, 0.0051020407
  %v3089 = vmul.f32 %v2833, 0.0051020407
  %v3090 = vmul.f32 %v2836, 0.0051020407
  %v3091 = vmul.f32 %v2839, 0.0051020407
  %v3092 = vmul.f32 %v2842, 0.0051020407
  %v3093 = vmul.f32 %v2845, 0.0051020407
  %v3094 = vmul.f32 %v2848, 0.0051020407
  %v3095 = vmul.f32 %v2851, 0.0051020407
  %v3096 = vmul.f32 %v2854, 0.0051020407
  %v3097 = vmul.f32 %v2857, 0.0051020407
  %v3098 = vmul.f32 %v2860, 0.0051020407
  %v3099 = vmul.f32 %v2863, 0.0051020407
  %v3100 = vmul.f32 %v2866, 0.0051020407
  %v3101 = vmul.f32 %v2869, 0.0051020407
  %v3102 = vmul.f32 %v2872, 0.0051020407
  %v3103 = vmul.f32 %v2875, 0.0051020407
  %v3104 = vmul.f32 %v2878, 0.0051020407
  %v3105 = vmul.f32 %v2881, 0.0051020407
  %v3106 = vmul.f32 %v2884, 0.0051020407
  %v3107 = vmul.f32 %v2887, 0.0051020407
  %v3108 = vmul.f32 %v2890, 0.0051020407
  %v3109 = vmul.f32 %v2893, 0.0051020407
  %v3110 = vmul.f32 %v2896, 0.0051020407
  %v3111 = vmul.f32 %v2899, 0.0051020407
  %v3112 = vmul.f32 %v2902, 0.0051020407
  %v3113 = vmul.f32 %v2905, 0.0051020407
  %v3114 = vmul.f32 %v2908, 0.0051020407
  %v3115 = vmul.f32 %v2911, 0.0051020407
  %v3116 = vmul.f32 %v2914, 0.0051020407
  %v3117 = vmul.f32 %v2917, 0.0051020407
  %v3118 = vmul.f32 %v2920, 0.0051020407
  %v3119 = vmul.f32 %v2923, 0.0051020407
  %v3120 = vmul.f32 %v2926, 0.0051020407
  %v3121 = vmul.f32 %v2929, 0.0051020407
  %v3122 = vmul.f32 %v2932, 0.0051020407
  %v3123 = vmul.f32 %v2935, 0.0051020407
  %v3124 = vmul.f32 %v2938, 0.0051020407
  %v3125 = vmul.f32 %v2941, 0.0051020407
  %v3126 = vmul.f32 %v2944, 0.0051020407
  %v3127 = vmul.f32 %v2947, 0.0051020407
  %v3128 = vmul.f32 %v2950, 0.0051020407
  %v3129 = vmul.f32 %v2953, 0.0051020407
  %v3130 = vmul.f32 %v2956, 0.0051020407
  %v3131 = vmul.f32 %v2959, 0.0051020407
  %v3132 = vmul.f32 %v2962, 0.0051020407
  %v3133 = vmul.f32 %v2965, 0.0051020407
  %v3134 = vmul.f32 %v2968, 0.0051020407
  %v3135 = vmul.f32 %v2971, 0.0051020407
  %v3136 = vmul.f32 %v2974, 0.0051020407
  %v3137 = vmul.f32 %v2977, 0.0051020407
  %v3138 = vmul.f32 %v2980, 0.0051020407
  %v3139 = vmul.f32 %v2983, 0.0051020407
  %v3140 = vmul.f32 %v2986, 0.0051020407
  %v3141 = vmul.f32 %v2989, 0.0051020407
  %v3142 = vmul.f32 %v2992, 0.0051020407
  %v3143 = vadd.f32 %v2993, 1e-05
  %v3144 = vadd.f32 %v2994, 1e-05
  %v3145 = vadd.f32 %v2995, 1e-05
  %v3146 = vadd.f32 %v2996, 1e-05
  %v3147 = vadd.f32 %v2997, 1e-05
  %v3148 = vadd.f32 %v2998, 1e-05
  %v3149 = vadd.f32 %v2999, 1e-05
  %v3150 = vadd.f32 %v3000, 1e-05
  %v3151 = vadd.f32 %v3001, 1e-05
  %v3152 = vadd.f32 %v3002, 1e-05
  %v3153 = vadd.f32 %v3003, 1e-05
  %v3154 = vadd.f32 %v3004, 1e-05
  %v3155 = vadd.f32 %v3005, 1e-05
  %v3156 = vadd.f32 %v3006, 1e-05
  %v3157 = vadd.f32 %v3007, 1e-05
  %v3158 = vadd.f32 %v3008, 1e-05
  %v3159 = vadd.f32 %v3009, 1e-05
  %v3160 = vadd.f32 %v3010, 1e-05
  %v3161 = vadd.f32 %v3011, 1e-05
  %v3162 = vadd.f32 %v3012, 1e-05
  %v3163 = vadd.f32 %v3013, 1e-05
  %v3164 = vadd.f32 %v3014, 1e-05
  %v3165 = vadd.f32 %v3015, 1e-05
  %v3166 = vadd.f32 %v3016, 1e-05
  %v3167 = vadd.f32 %v3017, 1e-05
  %v3168 = vadd.f32 %v3018, 1e-05
  %v3169 = vadd.f32 %v3019, 1e-05
  %v3170 = vadd.f32 %v3020, 1e-05
  %v3171 = vadd.f32 %v3021, 1e-05
  %v3172 = vadd.f32 %v3022, 1e-05
  %v3173 = vadd.f32 %v3023, 1e-05
  %v3174 = vadd.f32 %v3024, 1e-05
  %v3175 = vadd.f32 %v3025, 1e-05
  %v3176 = vadd.f32 %v3026, 1e-05
  %v3177 = vadd.f32 %v3027, 1e-05
  %v3178 = vadd.f32 %v3028, 1e-05
  %v3179 = vadd.f32 %v3029, 1e-05
  %v3180 = vadd.f32 %v3030, 1e-05
  %v3181 = vadd.f32 %v3031, 1e-05
  %v3182 = vadd.f32 %v3032, 1e-05
  %v3183 = vadd.f32 %v3033, 1e-05
  %v3184 = vadd.f32 %v3034, 1e-05
  %v3185 = vadd.f32 %v3035, 1e-05
  %v3186 = vadd.f32 %v3036, 1e-05
  %v3187 = vadd.f32 %v3037, 1e-05
  %v3188 = vadd.f32 %v3038, 1e-05
  %v3189 = vadd.f32 %v3039, 1e-05
  %v3190 = vadd.f32 %v3040, 1e-05
  %v3191 = vadd.f32 %v3041, 1e-05
  %v3192 = vadd.f32 %v3042, 1e-05
  %v3193 = vadd.f32 %v3043, 1e-05
  %v3194 = vadd.f32 %v3044, 1e-05
  %v3195 = vadd.f32 %v3045, 1e-05
  %v3196 = vadd.f32 %v3046, 1e-05
  %v3197 = vadd.f32 %v3047, 1e-05
  %v3198 = vadd.f32 %v3048, 1e-05
  %v3199 = vadd.f32 %v3049, 1e-05
  %v3200 = vadd.f32 %v3050, 1e-05
  %v3201 = vadd.f32 %v3051, 1e-05
  %v3202 = vadd.f32 %v3052, 1e-05
  %v3203 = vadd.f32 %v3053, 1e-05
  %v3204 = vadd.f32 %v3054, 1e-05
  %v3205 = vadd.f32 %v3055, 1e-05
  %v3206 = vadd.f32 %v3056, 1e-05
  %v3207 = vadd.f32 %v3057, 1e-05
  %v3208 = vadd.f32 %v3058, 1e-05
  %v3209 = vadd.f32 %v3059, 1e-05
  %v3210 = vadd.f32 %v3060, 1e-05
  %v3211 = vadd.f32 %v3061, 1e-05
  %v3212 = vadd.f32 %v3062, 1e-05
  %v3213 = vadd.f32 %v3063, 1e-05
  %v3214 = vadd.f32 %v3064, 1e-05
  %v3215 = vadd.f32 %v3065, 1e-05
  %v3216 = vadd.f32 %v3066, 1e-05
  %v3217 = vadd.f32 %v3067, 1e-05
  %v3218 = vadd.f32 %v3068, 1e-05
  %v3219 = vadd.f32 %v3069, 1e-05
  %v3220 = vadd.f32 %v3070, 1e-05
  %v3221 = vadd.f32 %v3071, 1e-05
  %v3222 = vadd.f32 %v3072, 1e-05
  %v3223 = vadd.f32 %v3073, 1e-05
  %v3224 = vadd.f32 %v3074, 1e-05
  %v3225 = vadd.f32 %v3075, 1e-05
  %v3226 = vadd.f32 %v3076, 1e-05
  %v3227 = vadd.f32 %v3077, 1e-05
  %v3228 = vadd.f32 %v3078, 1e-05
  %v3229 = vadd.f32 %v3079, 1e-05
  %v3230 = vadd.f32 %v3080, 1e-05
  %v3231 = vadd.f32 %v3081, 1e-05
  %v3232 = vadd.f32 %v3082, 1e-05
  %v3233 = vadd.f32 %v3083, 1e-05
  %v3234 = vadd.f32 %v3084, 1e-05
  %v3235 = vadd.f32 %v3085, 1e-05
  %v3236 = vadd.f32 %v3086, 1e-05
  %v3237 = vadd.f32 %v3087, 1e-05
  %v3238 = vadd.f32 %v3088, 1e-05
  %v3239 = vadd.f32 %v3089, 1e-05
  %v3240 = vadd.f32 %v3090, 1e-05
  %v3241 = vadd.f32 %v3091, 1e-05
  %v3242 = vadd.f32 %v3092, 1e-05
  %v3243 = vadd.f32 %v3093, 1e-05
  %v3244 = vadd.f32 %v3094, 1e-05
  %v3245 = vadd.f32 %v3095, 1e-05
  %v3246 = vadd.f32 %v3096, 1e-05
  %v3247 = vadd.f32 %v3097, 1e-05
  %v3248 = vadd.f32 %v3098, 1e-05
  %v3249 = vadd.f32 %v3099, 1e-05
  %v3250 = vadd.f32 %v3100, 1e-05
  %v3251 = vadd.f32 %v3101, 1e-05
  %v3252 = vadd.f32 %v3102, 1e-05
  %v3253 = vadd.f32 %v3103, 1e-05
  %v3254 = vadd.f32 %v3104, 1e-05
  %v3255 = vadd.f32 %v3105, 1e-05
  %v3256 = vadd.f32 %v3106, 1e-05
  %v3257 = vadd.f32 %v3107, 1e-05
  %v3258 = vadd.f32 %v3108, 1e-05
  %v3259 = vadd.f32 %v3109, 1e-05
  %v3260 = vadd.f32 %v3110, 1e-05
  %v3261 = vadd.f32 %v3111, 1e-05
  %v3262 = vadd.f32 %v3112, 1e-05
  %v3263 = vadd.f32 %v3113, 1e-05
  %v3264 = vadd.f32 %v3114, 1e-05
  %v3265 = vadd.f32 %v3115, 1e-05
  %v3266 = vadd.f32 %v3116, 1e-05
  %v3267 = vadd.f32 %v3117, 1e-05
  %v3268 = vadd.f32 %v3118, 1e-05
  %v3269 = vadd.f32 %v3119, 1e-05
  %v3270 = vadd.f32 %v3120, 1e-05
  %v3271 = vadd.f32 %v3121, 1e-05
  %v3272 = vadd.f32 %v3122, 1e-05
  %v3273 = vadd.f32 %v3123, 1e-05
  %v3274 = vadd.f32 %v3124, 1e-05
  %v3275 = vadd.f32 %v3125, 1e-05
  %v3276 = vadd.f32 %v3126, 1e-05
  %v3277 = vadd.f32 %v3127, 1e-05
  %v3278 = vadd.f32 %v3128, 1e-05
  %v3279 = vadd.f32 %v3129, 1e-05
  %v3280 = vadd.f32 %v3130, 1e-05
  %v3281 = vadd.f32 %v3131, 1e-05
  %v3282 = vadd.f32 %v3132, 1e-05
  %v3283 = vadd.f32 %v3133, 1e-05
  %v3284 = vadd.f32 %v3134, 1e-05
  %v3285 = vadd.f32 %v3135, 1e-05
  %v3286 = vadd.f32 %v3136, 1e-05
  %v3287 = vadd.f32 %v3137, 1e-05
  %v3288 = vadd.f32 %v3138, 1e-05
  %v3289 = vadd.f32 %v3139, 1e-05
  %v3290 = vadd.f32 %v3140, 1e-05
  %v3291 = vadd.f32 %v3141, 1e-05
  %v3292 = vadd.f32 %v3142, 1e-05
  %v3293 = vrsqrt.pop %v3143
  %v3294 = vrsqrt.pop %v3144
  %v3295 = vrsqrt.pop %v3145
  %v3296 = vrsqrt.pop %v3146
  %v3297 = vrsqrt.pop %v3147
  %v3298 = vrsqrt.pop %v3148
  %v3299 = vrsqrt.pop %v3149
  %v3300 = vrsqrt.pop %v3150
  %v3301 = vrsqrt.pop %v3151
  %v3302 = vrsqrt.pop %v3152
  %v3303 = vrsqrt.pop %v3153
  %v3304 = vrsqrt.pop %v3154
  %v3305 = vrsqrt.pop %v3155
  %v3306 = vrsqrt.pop %v3156
  %v3307 = vrsqrt.pop %v3157
  %v3308 = vrsqrt.pop %v3158
  %v3309 = vrsqrt.pop %v3159
  %v3310 = vrsqrt.pop %v3160
  %v3311 = vrsqrt.pop %v3161
  %v3312 = vrsqrt.pop %v3162
  %v3313 = vrsqrt.pop %v3163
  %v3314 = vrsqrt.pop %v3164
  %v3315 = vrsqrt.pop %v3165
  %v3316 = vrsqrt.pop %v3166
  %v3317 = vrsqrt.pop %v3167
  %v3318 = vrsqrt.pop %v3168
  %v3319 = vrsqrt.pop %v3169
  %v3320 = vrsqrt.pop %v3170
  %v3321 = vrsqrt.pop %v3171
  %v3322 = vrsqrt.pop %v3172
  %v3323 = vrsqrt.pop %v3173
  %v3324 = vrsqrt.pop %v3174
  %v3325 = vrsqrt.pop %v3175
  %v3326 = vrsqrt.pop %v3176
  %v3327 = vrsqrt.pop %v3177
  %v3328 = vrsqrt.pop %v3178
  %v3329 = vrsqrt.pop %v3179
  %v3330 = vrsqrt.pop %v3180
  %v3331 = vrsqrt.pop %v3181
  %v3332 = vrsqrt.pop %v3182
  %v3333 = vrsqrt.pop %v3183
  %v3334 = vrsqrt.pop %v3184
  %v3335 = vrsqrt.pop %v3185
  %v3336 = vrsqrt.pop %v3186
  %v3337 = vrsqrt.pop %v3187
  %v3338 = vrsqrt.pop %v3188
  %v3339 = vrsqrt.pop %v3189
  %v3340 = vrsqrt.pop %v3190
  %v3341 = vrsqrt.pop %v3191
  %v3342 = vrsqrt.pop %v3192
  %v3343 = vrsqrt.pop %v3193
  %v3344 = vrsqrt.pop %v3194
  %v3345 = vrsqrt.pop %v3195
  %v3346 = vrsqrt.pop %v3196
  %v3347 = vrsqrt.pop %v3197
  %v3348 = vrsqrt.pop %v3198
  %v3349 = vrsqrt.pop %v3199
  %v3350 = vrsqrt.pop %v3200
  %v3351 = vrsqrt.pop %v3201
  %v3352 = vrsqrt.pop %v3202
  %v3353 = vrsqrt.pop %v3203
  %v3354 = vrsqrt.pop %v3204
  %v3355 = vrsqrt.pop %v3205
  %v3356 = vrsqrt.pop %v3206
  %v3357 = vrsqrt.pop %v3207
  %v3358 = vrsqrt.pop %v3208
  %v3359 = vrsqrt.pop %v3209
  %v3360 = vrsqrt.pop %v3210
  %v3361 = vrsqrt.pop %v3211
  %v3362 = vrsqrt.pop %v3212
  %v3363 = vrsqrt.pop %v3213
  %v3364 = vrsqrt.pop %v3214
  %v3365 = vrsqrt.pop %v3215
  %v3366 = vrsqrt.pop %v3216
  %v3367 = vrsqrt.pop %v3217
  %v3368 = vrsqrt.pop %v3218
  %v3369 = vrsqrt.pop %v3219
  %v3370 = vrsqrt.pop %v3220
  %v3371 = vrsqrt.pop %v3221
  %v3372 = vrsqrt.pop %v3222
  %v3373 = vrsqrt.pop %v3223
  %v3374 = vrsqrt.pop %v3224
  %v3375 = vrsqrt.pop %v3225
  %v3376 = vrsqrt.pop %v3226
  %v3377 = vrsqrt.pop %v3227
  %v3378 = vrsqrt.pop %v3228
  %v3379 = vrsqrt.pop %v3229
  %v3380 = vrsqrt.pop %v3230
  %v3381 = vrsqrt.pop %v3231
  %v3382 = vrsqrt.pop %v3232
  %v3383 = vrsqrt.pop %v3233
  %v3384 = vrsqrt.pop %v3234
  %v3385 = vrsqrt.pop %v3235
  %v3386 = vrsqrt.pop %v3236
  %v3387 = vrsqrt.pop %v3237
  %v3388 = vrsqrt.pop %v3238
  %v3389 = vrsqrt.pop %v3239
  %v3390 = vrsqrt.pop %v3240
  %v3391 = vrsqrt.pop %v3241
  %v3392 = vrsqrt.pop %v3242
  %v3393 = vrsqrt.pop %v3243
  %v3394 = vrsqrt.pop %v3244
  %v3395 = vrsqrt.pop %v3245
  %v3396 = vrsqrt.pop %v3246
  %v3397 = vrsqrt.pop %v3247
  %v3398 = vrsqrt.pop %v3248
  %v3399 = vrsqrt.pop %v3249
  %v3400 = vrsqrt.pop %v3250
  %v3401 = vrsqrt.pop %v3251
  %v3402 = vrsqrt.pop %v3252
  %v3403 = vrsqrt.pop %v3253
  %v3404 = vrsqrt.pop %v3254
  %v3405 = vrsqrt.pop %v3255
  %v3406 = vrsqrt.pop %v3256
  %v3407 = vrsqrt.pop %v3257
  %v3408 = vrsqrt.pop %v3258
  %v3409 = vrsqrt.pop %v3259
  %v3410 = vrsqrt.pop %v3260
  %v3411 = vrsqrt.pop %v3261
  %v3412 = vrsqrt.pop %v3262
  %v3413 = vrsqrt.pop %v3263
  %v3414 = vrsqrt.pop %v3264
  %v3415 = vrsqrt.pop %v3265
  %v3416 = vrsqrt.pop %v3266
  %v3417 = vrsqrt.pop %v3267
  %v3418 = vrsqrt.pop %v3268
  %v3419 = vrsqrt.pop %v3269
  %v3420 = vrsqrt.pop %v3270
  %v3421 = vrsqrt.pop %v3271
  %v3422 = vrsqrt.pop %v3272
  %v3423 = vrsqrt.pop %v3273
  %v3424 = vrsqrt.pop %v3274
  %v3425 = vrsqrt.pop %v3275
  %v3426 = vrsqrt.pop %v3276
  %v3427 = vrsqrt.pop %v3277
  %v3428 = vrsqrt.pop %v3278
  %v3429 = vrsqrt.pop %v3279
  %v3430 = vrsqrt.pop %v3280
  %v3431 = vrsqrt.pop %v3281
  %v3432 = vrsqrt.pop %v3282
  %v3433 = vrsqrt.pop %v3283
  %v3434 = vrsqrt.pop %v3284
  %v3435 = vrsqrt.pop %v3285
  %v3436 = vrsqrt.pop %v3286
  %v3437 = vrsqrt.pop %v3287
  %v3438 = vrsqrt.pop %v3288
  %v3439 = vrsqrt.pop %v3289
  %v3440 = vrsqrt.pop %v3290
  %v3441 = vrsqrt.pop %v3291
  %v3442 = vrsqrt.pop %v3292
  %v3443 = vld [vmem:[%s3] sm:$0xff]
  %v3444 = vld [vmem:[%s3 + $0x8] sm:$0xff]
  %v3445 = vld [vmem:[%s3 + $0x10] sm:$0xff]
  %v3446 = vld [vmem:[%s3 + $0x18] sm:$0xff]
  %v3447 = vld [vmem:[%s3 + $0x20] sm:$0xff]
  %v3448 = vld [vmem:[%s3 + $0x28] sm:$0xff]
  %v3449 = vld [vmem:[%s3 + $0x30] sm:$0xff]
  %v3450 = vld [vmem:[%s3 + $0x38] sm:$0xff]
  %v3451 = vld [vmem:[%s3 + $0x40] sm:$0xff]
  %v3452 = vld [vmem:[%s3 + $0x48] sm:$0xff]
  %v3453 = vld [vmem:[%s3 + $0x50] sm:$0xff]
  %v3454 = vld [vmem:[%s3 + $0x58] sm:$0xff]
  %v3455 = vld [vmem:[%s3 + $0x60] sm:$0xff]
  %v3456 = vld [vmem:[%s3 + $0x68] sm:$0xff]
  %v3457 = vld [vmem:[%s3 + $0x70] sm:$0xff]
  %v3458 = vld [vmem:[%s3 + $0x78] sm:$0xff]
  %v3459 = vld [vmem:[%s3 + $0x80] sm:$0xff]
  %v3460 = vld [vmem:[%s3 + $0x88] sm:$0xff]
  %v3461 = vld [vmem:[%s3 + $0x90] sm:$0xff]
  %v3462 = vld [vmem:[%s3 + $0x98] sm:$0xff]
  %v3463 = vld [vmem:[%s3 + $0xa0] sm:$0xff]
  %v3464 = vld [vmem:[%s3 + $0xa8] sm:$0xff]
  %v3465 = vld [vmem:[%s3 + $0xb0] sm:$0xff]
  %v3466 = vld [vmem:[%s3 + $0xb8] sm:$0xff]
  %v3467 = vld [vmem:[%s3 + $0xc0] sm:$0xff]
  %v3468 = vld [vmem:[%s3 + $0xc8] sm:$0xff]
  %v3469 = vld [vmem:[%s3 + $0xd0] sm:$0xff]
  %v3470 = vld [vmem:[%s3 + $0xd8] sm:$0xff]
  %v3471 = vld [vmem:[%s3 + $0xe0] sm:$0xff]
  %v3472 = vld [vmem:[%s3 + $0xe8] sm:$0xff]
  %v3473 = vld [vmem:[%s3 + $0xf0] sm:$0xff]
  %v3474 = vld [vmem:[%s3 + $0xf8] sm:$0xff]
  %v3475 = vld [vmem:[%s3 + $0x100] sm:$0xff]
  %v3476 = vld [vmem:[%s3 + $0x108] sm:$0xff]
  %v3477 = vld [vmem:[%s3 + $0x110] sm:$0xff]
  %v3478 = vld [vmem:[%s3 + $0x118] sm:$0xff]
  %v3479 = vld [vmem:[%s3 + $0x120] sm:$0xff]
  %v3480 = vld [vmem:[%s3 + $0x128] sm:$0xff]
  %v3481 = vld [vmem:[%s3 + $0x130] sm:$0xff]
  %v3482 = vld [vmem:[%s3 + $0x138] sm:$0xff]
  %v3483 = vld [vmem:[%s3 + $0x140] sm:$0xff]
  %v3484 = vld [vmem:[%s3 + $0x148] sm:$0xff]
  %v3485 = vld [vmem:[%s3 + $0x150] sm:$0xff]
  %v3486 = vld [vmem:[%s3 + $0x158] sm:$0xff]
  %v3487 = vld [vmem:[%s3 + $0x160] sm:$0xff]
  %v3488 = vld [vmem:[%s3 + $0x168] sm:$0xff]
  %v3489 = vld [vmem:[%s3 + $0x170] sm:$0xff]
  %v3490 = vld [vmem:[%s3 + $0x178] sm:$0xff]
  %v3491 = vld [vmem:[%s3 + $0x180] sm:$0xff]
  %v3492 = vld [vmem:[%s3 + $0x188] sm:$0xff]
  %v3493 = vld [vmem:[%s3 + $0x190] sm:$0xff]
  %v3494 = vld [vmem:[%s3 + $0x198] sm:$0xff]
  %v3495 = vld [vmem:[%s3 + $0x1a0] sm:$0xff]
  %v3496 = vld [vmem:[%s3 + $0x1a8] sm:$0xff]
  %v3497 = vld [vmem:[%s3 + $0x1b0] sm:$0xff]
  %v3498 = vld [vmem:[%s3 + $0x1b8] sm:$0xff]
  %v3499 = vld [vmem:[%s3 + $0x1c0] sm:$0xff]
  %v3500 = vld [vmem:[%s3 + $0x1c8] sm:$0xff]
  %v3501 = vld [vmem:[%s3 + $0x1d0] sm:$0xff]
  %v3502 = vld [vmem:[%s3 + $0x1d8] sm:$0xff]
  %v3503 = vld [vmem:[%s3 + $0x1e0] sm:$0xff]
  %v3504 = vld [vmem:[%s3 + $0x1e8] sm:$0xff]
  %v3505 = vld [vmem:[%s3 + $0x1f0] sm:$0xff]
  %v3506 = vld [vmem:[%s3 + $0x1f8] sm:$0xff]
  %v3507 = vld [vmem:[%s3 + $0x200] sm:$0xff]
  %v3508 = vld [vmem:[%s3 + $0x208] sm:$0xff]
  %v3509 = vld [vmem:[%s3 + $0x210] sm:$0xff]
  %v3510 = vld [vmem:[%s3 + $0x218] sm:$0xff]
  %v3511 = vld [vmem:[%s3 + $0x220] sm:$0xff]
  %v3512 = vld [vmem:[%s3 + $0x228] sm:$0xff]
  %v3513 = vld [vmem:[%s3 + $0x230] sm:$0xff]
  %v3514 = vld [vmem:[%s3 + $0x238] sm:$0xff]
  %v3515 = vld [vmem:[%s3 + $0x240] sm:$0xff]
  %v3516 = vld [vmem:[%s3 + $0x248] sm:$0xff]
  %v3517 = vld [vmem:[%s3 + $0x250] sm:$0xff]
  %v3518 = vld [vmem:[%s3 + $0x258] sm:$0xff]
  %v3519 = vld [vmem:[%s3 + $0x260] sm:$0xff]
  %v3520 = vld [vmem:[%s3 + $0x268] sm:$0xff]
  %v3521 = vld [vmem:[%s3 + $0x270] sm:$0xff]
  %v3522 = vld [vmem:[%s3 + $0x278] sm:$0xff]
  %v3523 = vld [vmem:[%s3 + $0x280] sm:$0xff]
  %v3524 = vld [vmem:[%s3 + $0x288] sm:$0xff]
  %v3525 = vld [vmem:[%s3 + $0x290] sm:$0xff]
  %v3526 = vld [vmem:[%s3 + $0x298] sm:$0xff]
  %v3527 = vld [vmem:[%s3 + $0x2a0] sm:$0xff]
  %v3528 = vld [vmem:[%s3 + $0x2a8] sm:$0xff]
  %v3529 = vld [vmem:[%s3 + $0x2b0] sm:$0xff]
  %v3530 = vld [vmem:[%s3 + $0x2b8] sm:$0xff]
  %v3531 = vld [vmem:[%s3 + $0x2c0] sm:$0xff]
  %v3532 = vld [vmem:[%s3 + $0x2c8] sm:$0xff]
  %v3533 = vld [vmem:[%s3 + $0x2d0] sm:$0xff]
  %v3534 = vld [vmem:[%s3 + $0x2d8] sm:$0xff]
  %v3535 = vld [vmem:[%s3 + $0x2e0] sm:$0xff]
  %v3536 = vld [vmem:[%s3 + $0x2e8] sm:$0xff]
  %v3537 = vld [vmem:[%s3 + $0x2f0] sm:$0xff]
  %v3538 = vld [vmem:[%s3 + $0x2f8] sm:$0xff]
  %v3539 = vld [vmem:[%s3 + $0x300] sm:$0xff]
  %v3540 = vld [vmem:[%s3 + $0x308] sm:$0xff]
  %v3541 = vld [vmem:[%s3 + $0x310] sm:$0xff]
  %v3542 = vld [vmem:[%s3 + $0x318] sm:$0xff]
  %v3543 = vld [vmem:[%s3 + $0x320] sm:$0xff]
  %v3544 = vld [vmem:[%s3 + $0x328] sm:$0xff]
  %v3545 = vld [vmem:[%s3 + $0x330] sm:$0xff]
  %v3546 = vld [vmem:[%s3 + $0x338] sm:$0xff]
  %v3547 = vld [vmem:[%s3 + $0x340] sm:$0xff]
  %v3548 = vld [vmem:[%s3 + $0x348] sm:$0xff]
  %v3549 = vld [vmem:[%s3 + $0x350] sm:$0xff]
  %v3550 = vld [vmem:[%s3 + $0x358] sm:$0xff]
  %v3551 = vld [vmem:[%s3 + $0x360] sm:$0xff]
  %v3552 = vld [vmem:[%s3 + $0x368] sm:$0xff]
  %v3553 = vld [vmem:[%s3 + $0x370] sm:$0xff]
  %v3554 = vld [vmem:[%s3 + $0x378] sm:$0xff]
  %v3555 = vld [vmem:[%s3 + $0x380] sm:$0xff]
  %v3556 = vld [vmem:[%s3 + $0x388] sm:$0xff]
  %v3557 = vld [vmem:[%s3 + $0x390] sm:$0xff]
  %v3558 = vld [vmem:[%s3 + $0x398] sm:$0xff]
  %v3559 = vld [vmem:[%s3 + $0x3a0] sm:$0xff]
  %v3560 = vld [vmem:[%s3 + $0x3a8] sm:$0xff]
  %v3561 = vld [vmem:[%s3 + $0x3b0] sm:$0xff]
  %v3562 = vld [vmem:[%s3 + $0x3b8] sm:$0xff]
  %v3563 = vld [vmem:[%s3 + $0x3c0] sm:$0xff]
  %v3564 = vld [vmem:[%s3 + $0x3c8] sm:$0xff]
  %v3565 = vld [vmem:[%s3 + $0x3d0] sm:$0xff]
  %v3566 = vld [vmem:[%s3 + $0x3d8] sm:$0xff]
  %v3567 = vld [vmem:[%s3 + $0x3e0] sm:$0xff]
  %v3568 = vld [vmem:[%s3 + $0x3e8] sm:$0xff]
  %v3569 = vld [vmem:[%s3 + $0x3f0] sm:$0xff]
  %v3570 = vld [vmem:[%s3 + $0x3f8] sm:$0xff]
  %v3571 = vld [vmem:[%s3 + $0x400] sm:$0xff]
  %v3572 = vld [vmem:[%s3 + $0x408] sm:$0xff]
  %v3573 = vld [vmem:[%s3 + $0x410] sm:$0xff]
  %v3574 = vld [vmem:[%s3 + $0x418] sm:$0xff]
  %v3575 = vld [vmem:[%s3 + $0x420] sm:$0xff]
  %v3576 = vld [vmem:[%s3 + $0x428] sm:$0xff]
  %v3577 = vld [vmem:[%s3 + $0x430] sm:$0xff]
  %v3578 = vld [vmem:[%s3 + $0x438] sm:$0xff]
  %v3579 = vld [vmem:[%s3 + $0x440] sm:$0xff]
  %v3580 = vld [vmem:[%s3 + $0x448] sm:$0xff]
  %v3581 = vld [vmem:[%s3 + $0x450] sm:$0xff]
  %v3582 = vld [vmem:[%s3 + $0x458] sm:$0xff]
  %v3583 = vld [vmem:[%s3 + $0x460] sm:$0xff]
  %v3584 = vld [vmem:[%s3 + $0x468] sm:$0xff]
  %v3585 = vld [vmem:[%s3 + $0x470] sm:$0xff]
  %v3586 = vld [vmem:[%s3 + $0x478] sm:$0xff]
  %v3587 = vld [vmem:[%s3 + $0x480] sm:$0xff]
  %v3588 = vld [vmem:[%s3 + $0x488] sm:$0xff]
  %v3589 = vld [vmem:[%s3 + $0x490] sm:$0xff]
  %v3590 = vld [vmem:[%s3 + $0x498] sm:$0xff]
  %v3591 = vld [vmem:[%s3 + $0x4a0] sm:$0xff]
  %v3592 = vld [vmem:[%s3 + $0x4a8] sm:$0xff]
  %v3593 = vmul.f32 %v3293, %v3443
  %v3594 = vmul.f32 %v3294, %v3444
  %v3595 = vmul.f32 %v3295, %v3445
  %v3596 = vmul.f32 %v3296, %v3446
  %v3597 = vmul.f32 %v3297, %v3447
  %v3598 = vmul.f32 %v3298, %v3448
  %v3599 = vmul.f32 %v3299, %v3449
  %v3600 = vmul.f32 %v3300, %v3450
  %v3601 = vmul.f32 %v3301, %v3451
  %v3602 = vmul.f32 %v3302, %v3452
  %v3603 = vmul.f32 %v3303, %v3453
  %v3604 = vmul.f32 %v3304, %v3454
  %v3605 = vmul.f32 %v3305, %v3455
  %v3606 = vmul.f32 %v3306, %v3456
  %v3607 = vmul.f32 %v3307, %v3457
  %v3608 = vmul.f32 %v3308, %v3458
  %v3609 = vmul.f32 %v3309, %v3459
  %v3610 = vmul.f32 %v3310, %v3460
  %v3611 = vmul.f32 %v3311, %v3461
  %v3612 = vmul.f32 %v3312, %v3462
  %v3613 = vmul.f32 %v3313, %v3463
  %v3614 = vmul.f32 %v3314, %v3464
  %v3615 = vmul.f32 %v3315, %v3465
  %v3616 = vmul.f32 %v3316, %v3466
  %v3617 = vmul.f32 %v3317, %v3467
  %v3618 = vmul.f32 %v3318, %v3468
  %v3619 = vmul.f32 %v3319, %v3469
  %v3620 = vmul.f32 %v3320, %v3470
  %v3621 = vmul.f32 %v3321, %v3471
  %v3622 = vmul.f32 %v3322, %v3472
  %v3623 = vmul.f32 %v3323, %v3473
  %v3624 = vmul.f32 %v3324, %v3474
  %v3625 = vmul.f32 %v3325, %v3475
  %v3626 = vmul.f32 %v3326, %v3476
  %v3627 = vmul.f32 %v3327, %v3477
  %v3628 = vmul.f32 %v3328, %v3478
  %v3629 = vmul.f32 %v3329, %v3479
  %v3630 = vmul.f32 %v3330, %v3480
  %v3631 = vmul.f32 %v3331, %v3481
  %v3632 = vmul.f32 %v3332, %v3482
  %v3633 = vmul.f32 %v3333, %v3483
  %v3634 = vmul.f32 %v3334, %v3484
  %v3635 = vmul.f32 %v3335, %v3485
  %v3636 = vmul.f32 %v3336, %v3486
  %v3637 = vmul.f32 %v3337, %v3487
  %v3638 = vmul.f32 %v3338, %v3488
  %v3639 = vmul.f32 %v3339, %v3489
  %v3640 = vmul.f32 %v3340, %v3490
  %v3641 = vmul.f32 %v3341, %v3491
  %v3642 = vmul.f32 %v3342, %v3492
  %v3643 = vmul.f32 %v3343, %v3493
  %v3644 = vmul.f32 %v3344, %v3494
  %v3645 = vmul.f32 %v3345, %v3495
  %v3646 = vmul.f32 %v3346, %v3496
  %v3647 = vmul.f32 %v3347, %v3497
  %v3648 = vmul.f32 %v3348, %v3498
  %v3649 = vmul.f32 %v3349, %v3499
  %v3650 = vmul.f32 %v3350, %v3500
  %v3651 = vmul.f32 %v3351, %v3501
  %v3652 = vmul.f32 %v3352, %v3502
  %v3653 = vmul.f32 %v3353, %v3503
  %v3654 = vmul.f32 %v3354, %v3504
  %v3655 = vmul.f32 %v3355, %v3505
  %v3656 = vmul.f32 %v3356, %v3506
  %v3657 = vmul.f32 %v3357, %v3507
  %v3658 = vmul.f32 %v3358, %v3508
  %v3659 = vmul.f32 %v3359, %v3509
  %v3660 = vmul.f32 %v3360, %v3510
  %v3661 = vmul.f32 %v3361, %v3511
  %v3662 = vmul.f32 %v3362, %v3512
  %v3663 = vmul.f32 %v3363, %v3513
  %v3664 = vmul.f32 %v3364, %v3514
  %v3665 = vmul.f32 %v3365, %v3515
  %v3666 = vmul.f32 %v3366, %v3516
  %v3667 = vmul.f32 %v3367, %v3517
  %v3668 = vmul.f32 %v3368, %v3518
  %v3669 = vmul.f32 %v3369, %v3519
  %v3670 = vmul.f32 %v3370, %v3520
  %v3671 = vmul.f32 %v3371, %v3521
  %v3672 = vmul.f32 %v3372, %v3522
  %v3673 = vmul.f32 %v3373, %v3523
  %v3674 = vmul.f32 %v3374, %v3524
  %v3675 = vmul.f32 %v3375, %v3525
  %v3676 = vmul.f32 %v3376, %v3526
  %v3677 = vmul.f32 %v3377, %v3527
  %v3678 = vmul.f32 %v3378, %v3528
  %v3679 = vmul.f32 %v3379, %v3529
  %v3680 = vmul.f32 %v3380, %v3530
  %v3681 = vmul.f32 %v3381, %v3531
  %v3682 = vmul.f32 %v3382, %v3532
  %v3683 = vmul.f32 %v3383, %v3533
  %v3684 = vmul.f32 %v3384, %v3534
  %v3685 = vmul.f32 %v3385, %v3535
  %v3686 = vmul.f32 %v3386, %v3536
  %v3687 = vmul.f32 %v3387, %v3537
  %v3688 = vmul.f32 %v3388, %v3538
  %v3689 = vmul.f32 %v3389, %v3539
  %v3690 = vmul.f32 %v3390, %v3540
  %v3691 = vmul.f32 %v3391, %v3541
  %v3692 = vmul.f32 %v3392, %v3542
  %v3693 = vmul.f32 %v3393, %v3543
  %v3694 = vmul.f32 %v3394, %v3544
  %v3695 = vmul.f32 %v3395, %v3545
  %v3696 = vmul.f32 %v3396, %v3546
  %v3697 = vmul.f32 %v3397, %v3547
  %v3698 = vmul.f32 %v3398, %v3548
  %v3699 = vmul.f32 %v3399, %v3549
  %v3700 = vmul.f32 %v3400, %v3550
  %v3701 = vmul.f32 %v3401, %v3551
  %v3702 = vmul.f32 %v3402, %v3552
  %v3703 = vmul.f32 %v3403, %v3553
  %v3704 = vmul.f32 %v3404, %v3554
  %v3705 = vmul.f32 %v3405, %v3555
  %v3706 = vmul.f32 %v3406, %v3556
  %v3707 = vmul.f32 %v3407, %v3557
  %v3708 = vmul.f32 %v3408, %v3558
  %v3709 = vmul.f32 %v3409, %v3559
  %v3710 = vmul.f32 %v3410, %v3560
  %v3711 = vmul.f32 %v3411, %v3561
  %v3712 = vmul.f32 %v3412, %v3562
  %v3713 = vmul.f32 %v3413, %v3563
  %v3714 = vmul.f32 %v3414, %v3564
  %v3715 = vmul.f32 %v3415, %v3565
  %v3716 = vmul.f32 %v3416, %v3566
  %v3717 = vmul.f32 %v3417, %v3567
  %v3718 = vmul.f32 %v3418, %v3568
  %v3719 = vmul.f32 %v3419, %v3569
  %v3720 = vmul.f32 %v3420, %v3570
  %v3721 = vmul.f32 %v3421, %v3571
  %v3722 = vmul.f32 %v3422, %v3572
  %v3723 = vmul.f32 %v3423, %v3573
  %v3724 = vmul.f32 %v3424, %v3574
  %v3725 = vmul.f32 %v3425, %v3575
  %v3726 = vmul.f32 %v3426, %v3576
  %v3727 = vmul.f32 %v3427, %v3577
  %v3728 = vmul.f32 %v3428, %v3578
  %v3729 = vmul.f32 %v3429, %v3579
  %v3730 = vmul.f32 %v3430, %v3580
  %v3731 = vmul.f32 %v3431, %v3581
  %v3732 = vmul.f32 %v3432, %v3582
  %v3733 = vmul.f32 %v3433, %v3583
  %v3734 = vmul.f32 %v3434, %v3584
  %v3735 = vmul.f32 %v3435, %v3585
  %v3736 = vmul.f32 %v3436, %v3586
  %v3737 = vmul.f32 %v3437, %v3587
  %v3738 = vmul.f32 %v3438, %v3588
  %v3739 = vmul.f32 %v3439, %v3589
  %v3740 = vmul.f32 %v3440, %v3590
  %v3741 = vmul.f32 %v3441, %v3591
  %v3742 = vmul.f32 %v3442, %v3592
  %3744 = vset.pattern.permute.xlu0 0
  %3745 = vperm.xlu0 %3744, %v3593
  %v3746 = vpop.permute.xlu0 %3745
  %3749 = vset.pattern.permute.xlu0 0
  %3750 = vperm.xlu0 %3749, %v3594
  %v3751 = vpop.permute.xlu0 %3750
  %3754 = vset.pattern.permute.xlu0 0
  %3755 = vperm.xlu0 %3754, %v3595
  %v3756 = vpop.permute.xlu0 %3755
  %3759 = vset.pattern.permute.xlu0 0
  %3760 = vperm.xlu0 %3759, %v3596
  %v3761 = vpop.permute.xlu0 %3760
  %3764 = vset.pattern.permute.xlu0 0
  %3765 = vperm.xlu0 %3764, %v3597
  %v3766 = vpop.permute.xlu0 %3765
  %3769 = vset.pattern.permute.xlu0 0
  %3770 = vperm.xlu0 %3769, %v3598
  %v3771 = vpop.permute.xlu0 %3770
  %3774 = vset.pattern.permute.xlu0 0
  %3775 = vperm.xlu0 %3774, %v3599
  %v3776 = vpop.permute.xlu0 %3775
  %3779 = vset.pattern.permute.xlu0 0
  %3780 = vperm.xlu0 %3779, %v3600
  %v3781 = vpop.permute.xlu0 %3780
  %3784 = vset.pattern.permute.xlu0 0
  %3785 = vperm.xlu0 %3784, %v3601
  %v3786 = vpop.permute.xlu0 %3785
  %3789 = vset.pattern.permute.xlu0 0
  %3790 = vperm.xlu0 %3789, %v3602
  %v3791 = vpop.permute.xlu0 %3790
  %3794 = vset.pattern.permute.xlu0 0
  %3795 = vperm.xlu0 %3794, %v3603
  %v3796 = vpop.permute.xlu0 %3795
  %3799 = vset.pattern.permute.xlu0 0
  %3800 = vperm.xlu0 %3799, %v3604
  %v3801 = vpop.permute.xlu0 %3800
  %3804 = vset.pattern.permute.xlu0 0
  %3805 = vperm.xlu0 %3804, %v3605
  %v3806 = vpop.permute.xlu0 %3805
  %3809 = vset.pattern.permute.xlu0 0
  %3810 = vperm.xlu0 %3809, %v3606
  %v3811 = vpop.permute.xlu0 %3810
  %3814 = vset.pattern.permute.xlu0 0
  %3815 = vperm.xlu0 %3814, %v3607
  %v3816 = vpop.permute.xlu0 %3815
  %3819 = vset.pattern.permute.xlu0 0
  %3820 = vperm.xlu0 %3819, %v3608
  %v3821 = vpop.permute.xlu0 %3820
  %3824 = vset.pattern.permute.xlu0 0
  %3825 = vperm.xlu0 %3824, %v3609
  %v3826 = vpop.permute.xlu0 %3825
  %3829 = vset.pattern.permute.xlu0 0
  %3830 = vperm.xlu0 %3829, %v3610
  %v3831 = vpop.permute.xlu0 %3830
  %3834 = vset.pattern.permute.xlu0 0
  %3835 = vperm.xlu0 %3834, %v3611
  %v3836 = vpop.permute.xlu0 %3835
  %3839 = vset.pattern.permute.xlu0 0
  %3840 = vperm.xlu0 %3839, %v3612
  %v3841 = vpop.permute.xlu0 %3840
  %3844 = vset.pattern.permute.xlu0 0
  %3845 = vperm.xlu0 %3844, %v3613
  %v3846 = vpop.permute.xlu0 %3845
  %3849 = vset.pattern.permute.xlu0 0
  %3850 = vperm.xlu0 %3849, %v3614
  %v3851 = vpop.permute.xlu0 %3850
  %3854 = vset.pattern.permute.xlu0 0
  %3855 = vperm.xlu0 %3854, %v3615
  %v3856 = vpop.permute.xlu0 %3855
  %3859 = vset.pattern.permute.xlu0 0
  %3860 = vperm.xlu0 %3859, %v3616
  %v3861 = vpop.permute.xlu0 %3860
  %3864 = vset.pattern.permute.xlu0 0
  %3865 = vperm.xlu0 %3864, %v3617
  %v3866 = vpop.permute.xlu0 %3865
  %3869 = vset.pattern.permute.xlu0 0
  %3870 = vperm.xlu0 %3869, %v3618
  %v3871 = vpop.permute.xlu0 %3870
  %3874 = vset.pattern.permute.xlu0 0
  %3875 = vperm.xlu0 %3874, %v3619
  %v3876 = vpop.permute.xlu0 %3875
  %3879 = vset.pattern.permute.xlu0 0
  %3880 = vperm.xlu0 %3879, %v3620
  %v3881 = vpop.permute.xlu0 %3880
  %3884 = vset.pattern.permute.xlu0 0
  %3885 = vperm.xlu0 %3884, %v3621
  %v3886 = vpop.permute.xlu0 %3885
  %3889 = vset.pattern.permute.xlu0 0
  %3890 = vperm.xlu0 %3889, %v3622
  %v3891 = vpop.permute.xlu0 %3890
  %3894 = vset.pattern.permute.xlu0 0
  %3895 = vperm.xlu0 %3894, %v3623
  %v3896 = vpop.permute.xlu0 %3895
  %3899 = vset.pattern.permute.xlu0 0
  %3900 = vperm.xlu0 %3899, %v3624
  %v3901 = vpop.permute.xlu0 %3900
  %3904 = vset.pattern.permute.xlu0 0
  %3905 = vperm.xlu0 %3904, %v3625
  %v3906 = vpop.permute.xlu0 %3905
  %3909 = vset.pattern.permute.xlu0 0
  %3910 = vperm.xlu0 %3909, %v3626
  %v3911 = vpop.permute.xlu0 %3910
  %3914 = vset.pattern.permute.xlu0 0
  %3915 = vperm.xlu0 %3914, %v3627
  %v3916 = vpop.permute.xlu0 %3915
  %3919 = vset.pattern.permute.xlu0 0
  %3920 = vperm.xlu0 %3919, %v3628
  %v3921 = vpop.permute.xlu0 %3920
  %3924 = vset.pattern.permute.xlu0 0
  %3925 = vperm.xlu0 %3924, %v3629
  %v3926 = vpop.permute.xlu0 %3925
  %3929 = vset.pattern.permute.xlu0 0
  %3930 = vperm.xlu0 %3929, %v3630
  %v3931 = vpop.permute.xlu0 %3930
  %3934 = vset.pattern.permute.xlu0 0
  %3935 = vperm.xlu0 %3934, %v3631
  %v3936 = vpop.permute.xlu0 %3935
  %3939 = vset.pattern.permute.xlu0 0
  %3940 = vperm.xlu0 %3939, %v3632
  %v3941 = vpop.permute.xlu0 %3940
  %3944 = vset.pattern.permute.xlu0 0
  %3945 = vperm.xlu0 %3944, %v3633
  %v3946 = vpop.permute.xlu0 %3945
  %3949 = vset.pattern.permute.xlu0 0
  %3950 = vperm.xlu0 %3949, %v3634
  %v3951 = vpop.permute.xlu0 %3950
  %3954 = vset.pattern.permute.xlu0 0
  %3955 = vperm.xlu0 %3954, %v3635
  %v3956 = vpop.permute.xlu0 %3955
  %3959 = vset.pattern.permute.xlu0 0
  %3960 = vperm.xlu0 %3959, %v3636
  %v3961 = vpop.permute.xlu0 %3960
  %3964 = vset.pattern.permute.xlu0 0
  %3965 = vperm.xlu0 %3964, %v3637
  %v3966 = vpop.permute.xlu0 %3965
  %3969 = vset.pattern.permute.xlu0 0
  %3970 = vperm.xlu0 %3969, %v3638
  %v3971 = vpop.permute.xlu0 %3970
  %3974 = vset.pattern.permute.xlu0 0
  %3975 = vperm.xlu0 %3974, %v3639
  %v3976 = vpop.permute.xlu0 %3975
  %3979 = vset.pattern.permute.xlu0 0
  %3980 = vperm.xlu0 %3979, %v3640
  %v3981 = vpop.permute.xlu0 %3980
  %3984 = vset.pattern.permute.xlu0 0
  %3985 = vperm.xlu0 %3984, %v3641
  %v3986 = vpop.permute.xlu0 %3985
  %3989 = vset.pattern.permute.xlu0 0
  %3990 = vperm.xlu0 %3989, %v3642
  %v3991 = vpop.permute.xlu0 %3990
  %3994 = vset.pattern.permute.xlu0 0
  %3995 = vperm.xlu0 %3994, %v3643
  %v3996 = vpop.permute.xlu0 %3995
  %3999 = vset.pattern.permute.xlu0 0
  %4000 = vperm.xlu0 %3999, %v3644
  %v4001 = vpop.permute.xlu0 %4000
  %4004 = vset.pattern.permute.xlu0 0
  %4005 = vperm.xlu0 %4004, %v3645
  %v4006 = vpop.permute.xlu0 %4005
  %4009 = vset.pattern.permute.xlu0 0
  %4010 = vperm.xlu0 %4009, %v3646
  %v4011 = vpop.permute.xlu0 %4010
  %4014 = vset.pattern.permute.xlu0 0
  %4015 = vperm.xlu0 %4014, %v3647
  %v4016 = vpop.permute.xlu0 %4015
  %4019 = vset.pattern.permute.xlu0 0
  %4020 = vperm.xlu0 %4019, %v3648
  %v4021 = vpop.permute.xlu0 %4020
  %4024 = vset.pattern.permute.xlu0 0
  %4025 = vperm.xlu0 %4024, %v3649
  %v4026 = vpop.permute.xlu0 %4025
  %4029 = vset.pattern.permute.xlu0 0
  %4030 = vperm.xlu0 %4029, %v3650
  %v4031 = vpop.permute.xlu0 %4030
  %4034 = vset.pattern.permute.xlu0 0
  %4035 = vperm.xlu0 %4034, %v3651
  %v4036 = vpop.permute.xlu0 %4035
  %4039 = vset.pattern.permute.xlu0 0
  %4040 = vperm.xlu0 %4039, %v3652
  %v4041 = vpop.permute.xlu0 %4040
  %4044 = vset.pattern.permute.xlu0 0
  %4045 = vperm.xlu0 %4044, %v3653
  %v4046 = vpop.permute.xlu0 %4045
  %4049 = vset.pattern.permute.xlu0 0
  %4050 = vperm.xlu0 %4049, %v3654
  %v4051 = vpop.permute.xlu0 %4050
  %4054 = vset.pattern.permute.xlu0 0
  %4055 = vperm.xlu0 %4054, %v3655
  %v4056 = vpop.permute.xlu0 %4055
  %4059 = vset.pattern.permute.xlu0 0
  %4060 = vperm.xlu0 %4059, %v3656
  %v4061 = vpop.permute.xlu0 %4060
  %4064 = vset.pattern.permute.xlu0 0
  %4065 = vperm.xlu0 %4064, %v3657
  %v4066 = vpop.permute.xlu0 %4065
  %4069 = vset.pattern.permute.xlu0 0
  %4070 = vperm.xlu0 %4069, %v3658
  %v4071 = vpop.permute.xlu0 %4070
  %4074 = vset.pattern.permute.xlu0 0
  %4075 = vperm.xlu0 %4074, %v3659
  %v4076 = vpop.permute.xlu0 %4075
  %4079 = vset.pattern.permute.xlu0 0
  %4080 = vperm.xlu0 %4079, %v3660
  %v4081 = vpop.permute.xlu0 %4080
  %4084 = vset.pattern.permute.xlu0 0
  %4085 = vperm.xlu0 %4084, %v3661
  %v4086 = vpop.permute.xlu0 %4085
  %4089 = vset.pattern.permute.xlu0 0
  %4090 = vperm.xlu0 %4089, %v3662
  %v4091 = vpop.permute.xlu0 %4090
  %4094 = vset.pattern.permute.xlu0 0
  %4095 = vperm.xlu0 %4094, %v3663
  %v4096 = vpop.permute.xlu0 %4095
  %4099 = vset.pattern.permute.xlu0 0
  %4100 = vperm.xlu0 %4099, %v3664
  %v4101 = vpop.permute.xlu0 %4100
  %4104 = vset.pattern.permute.xlu0 0
  %4105 = vperm.xlu0 %4104, %v3665
  %v4106 = vpop.permute.xlu0 %4105
  %4109 = vset.pattern.permute.xlu0 0
  %4110 = vperm.xlu0 %4109, %v3666
  %v4111 = vpop.permute.xlu0 %4110
  %4114 = vset.pattern.permute.xlu0 0
  %4115 = vperm.xlu0 %4114, %v3667
  %v4116 = vpop.permute.xlu0 %4115
  %4119 = vset.pattern.permute.xlu0 0
  %4120 = vperm.xlu0 %4119, %v3668
  %v4121 = vpop.permute.xlu0 %4120
  %4124 = vset.pattern.permute.xlu0 0
  %4125 = vperm.xlu0 %4124, %v3669
  %v4126 = vpop.permute.xlu0 %4125
  %4129 = vset.pattern.permute.xlu0 0
  %4130 = vperm.xlu0 %4129, %v3670
  %v4131 = vpop.permute.xlu0 %4130
  %4134 = vset.pattern.permute.xlu0 0
  %4135 = vperm.xlu0 %4134, %v3671
  %v4136 = vpop.permute.xlu0 %4135
  %4139 = vset.pattern.permute.xlu0 0
  %4140 = vperm.xlu0 %4139, %v3672
  %v4141 = vpop.permute.xlu0 %4140
  %4144 = vset.pattern.permute.xlu0 0
  %4145 = vperm.xlu0 %4144, %v3673
  %v4146 = vpop.permute.xlu0 %4145
  %4149 = vset.pattern.permute.xlu0 0
  %4150 = vperm.xlu0 %4149, %v3674
  %v4151 = vpop.permute.xlu0 %4150
  %4154 = vset.pattern.permute.xlu0 0
  %4155 = vperm.xlu0 %4154, %v3675
  %v4156 = vpop.permute.xlu0 %4155
  %4159 = vset.pattern.permute.xlu0 0
  %4160 = vperm.xlu0 %4159, %v3676
  %v4161 = vpop.permute.xlu0 %4160
  %4164 = vset.pattern.permute.xlu0 0
  %4165 = vperm.xlu0 %4164, %v3677
  %v4166 = vpop.permute.xlu0 %4165
  %4169 = vset.pattern.permute.xlu0 0
  %4170 = vperm.xlu0 %4169, %v3678
  %v4171 = vpop.permute.xlu0 %4170
  %4174 = vset.pattern.permute.xlu0 0
  %4175 = vperm.xlu0 %4174, %v3679
  %v4176 = vpop.permute.xlu0 %4175
  %4179 = vset.pattern.permute.xlu0 0
  %4180 = vperm.xlu0 %4179, %v3680
  %v4181 = vpop.permute.xlu0 %4180
  %4184 = vset.pattern.permute.xlu0 0
  %4185 = vperm.xlu0 %4184, %v3681
  %v4186 = vpop.permute.xlu0 %4185
  %4189 = vset.pattern.permute.xlu0 0
  %4190 = vperm.xlu0 %4189, %v3682
  %v4191 = vpop.permute.xlu0 %4190
  %4194 = vset.pattern.permute.xlu0 0
  %4195 = vperm.xlu0 %4194, %v3683
  %v4196 = vpop.permute.xlu0 %4195
  %4199 = vset.pattern.permute.xlu0 0
  %4200 = vperm.xlu0 %4199, %v3684
  %v4201 = vpop.permute.xlu0 %4200
  %4204 = vset.pattern.permute.xlu0 0
  %4205 = vperm.xlu0 %4204, %v3685
  %v4206 = vpop.permute.xlu0 %4205
  %4209 = vset.pattern.permute.xlu0 0
  %4210 = vperm.xlu0 %4209, %v3686
  %v4211 = vpop.permute.xlu0 %4210
  %4214 = vset.pattern.permute.xlu0 0
  %4215 = vperm.xlu0 %4214, %v3687
  %v4216 = vpop.permute.xlu0 %4215
  %4219 = vset.pattern.permute.xlu0 0
  %4220 = vperm.xlu0 %4219, %v3688
  %v4221 = vpop.permute.xlu0 %4220
  %4224 = vset.pattern.permute.xlu0 0
  %4225 = vperm.xlu0 %4224, %v3689
  %v4226 = vpop.permute.xlu0 %4225
  %4229 = vset.pattern.permute.xlu0 0
  %4230 = vperm.xlu0 %4229, %v3690
  %v4231 = vpop.permute.xlu0 %4230
  %4234 = vset.pattern.permute.xlu0 0
  %4235 = vperm.xlu0 %4234, %v3691
  %v4236 = vpop.permute.xlu0 %4235
  %4239 = vset.pattern.permute.xlu0 0
  %4240 = vperm.xlu0 %4239, %v3692
  %v4241 = vpop.permute.xlu0 %4240
  %4244 = vset.pattern.permute.xlu0 0
  %4245 = vperm.xlu0 %4244, %v3693
  %v4246 = vpop.permute.xlu0 %4245
  %4249 = vset.pattern.permute.xlu0 0
  %4250 = vperm.xlu0 %4249, %v3694
  %v4251 = vpop.permute.xlu0 %4250
  %4254 = vset.pattern.permute.xlu0 0
  %4255 = vperm.xlu0 %4254, %v3695
  %v4256 = vpop.permute.xlu0 %4255
  %4259 = vset.pattern.permute.xlu0 0
  %4260 = vperm.xlu0 %4259, %v3696
  %v4261 = vpop.permute.xlu0 %4260
  %4264 = vset.pattern.permute.xlu0 0
  %4265 = vperm.xlu0 %4264, %v3697
  %v4266 = vpop.permute.xlu0 %4265
  %4269 = vset.pattern.permute.xlu0 0
  %4270 = vperm.xlu0 %4269, %v3698
  %v4271 = vpop.permute.xlu0 %4270
  %4274 = vset.pattern.permute.xlu0 0
  %4275 = vperm.xlu0 %4274, %v3699
  %v4276 = vpop.permute.xlu0 %4275
  %4279 = vset.pattern.permute.xlu0 0
  %4280 = vperm.xlu0 %4279, %v3700
  %v4281 = vpop.permute.xlu0 %4280
  %4284 = vset.pattern.permute.xlu0 0
  %4285 = vperm.xlu0 %4284, %v3701
  %v4286 = vpop.permute.xlu0 %4285
  %4289 = vset.pattern.permute.xlu0 0
  %4290 = vperm.xlu0 %4289, %v3702
  %v4291 = vpop.permute.xlu0 %4290
  %4294 = vset.pattern.permute.xlu0 0
  %4295 = vperm.xlu0 %4294, %v3703
  %v4296 = vpop.permute.xlu0 %4295
  %4299 = vset.pattern.permute.xlu0 0
  %4300 = vperm.xlu0 %4299, %v3704
  %v4301 = vpop.permute.xlu0 %4300
  %4304 = vset.pattern.permute.xlu0 0
  %4305 = vperm.xlu0 %4304, %v3705
  %v4306 = vpop.permute.xlu0 %4305
  %4309 = vset.pattern.permute.xlu0 0
  %4310 = vperm.xlu0 %4309, %v3706
  %v4311 = vpop.permute.xlu0 %4310
  %4314 = vset.pattern.permute.xlu0 0
  %4315 = vperm.xlu0 %4314, %v3707
  %v4316 = vpop.permute.xlu0 %4315
  %4319 = vset.pattern.permute.xlu0 0
  %4320 = vperm.xlu0 %4319, %v3708
  %v4321 = vpop.permute.xlu0 %4320
  %4324 = vset.pattern.permute.xlu0 0
  %4325 = vperm.xlu0 %4324, %v3709
  %v4326 = vpop.permute.xlu0 %4325
  %4329 = vset.pattern.permute.xlu0 0
  %4330 = vperm.xlu0 %4329, %v3710
  %v4331 = vpop.permute.xlu0 %4330
  %4334 = vset.pattern.permute.xlu0 0
  %4335 = vperm.xlu0 %4334, %v3711
  %v4336 = vpop.permute.xlu0 %4335
  %4339 = vset.pattern.permute.xlu0 0
  %4340 = vperm.xlu0 %4339, %v3712
  %v4341 = vpop.permute.xlu0 %4340
  %4344 = vset.pattern.permute.xlu0 0
  %4345 = vperm.xlu0 %4344, %v3713
  %v4346 = vpop.permute.xlu0 %4345
  %4349 = vset.pattern.permute.xlu0 0
  %4350 = vperm.xlu0 %4349, %v3714
  %v4351 = vpop.permute.xlu0 %4350
  %4354 = vset.pattern.permute.xlu0 0
  %4355 = vperm.xlu0 %4354, %v3715
  %v4356 = vpop.permute.xlu0 %4355
  %4359 = vset.pattern.permute.xlu0 0
  %4360 = vperm.xlu0 %4359, %v3716
  %v4361 = vpop.permute.xlu0 %4360
  %4364 = vset.pattern.permute.xlu0 0
  %4365 = vperm.xlu0 %4364, %v3717
  %v4366 = vpop.permute.xlu0 %4365
  %4369 = vset.pattern.permute.xlu0 0
  %4370 = vperm.xlu0 %4369, %v3718
  %v4371 = vpop.permute.xlu0 %4370
  %4374 = vset.pattern.permute.xlu0 0
  %4375 = vperm.xlu0 %4374, %v3719
  %v4376 = vpop.permute.xlu0 %4375
  %4379 = vset.pattern.permute.xlu0 0
  %4380 = vperm.xlu0 %4379, %v3720
  %v4381 = vpop.permute.xlu0 %4380
  %4384 = vset.pattern.permute.xlu0 0
  %4385 = vperm.xlu0 %4384, %v3721
  %v4386 = vpop.permute.xlu0 %4385
  %4389 = vset.pattern.permute.xlu0 0
  %4390 = vperm.xlu0 %4389, %v3722
  %v4391 = vpop.permute.xlu0 %4390
  %4394 = vset.pattern.permute.xlu0 0
  %4395 = vperm.xlu0 %4394, %v3723
  %v4396 = vpop.permute.xlu0 %4395
  %4399 = vset.pattern.permute.xlu0 0
  %4400 = vperm.xlu0 %4399, %v3724
  %v4401 = vpop.permute.xlu0 %4400
  %4404 = vset.pattern.permute.xlu0 0
  %4405 = vperm.xlu0 %4404, %v3725
  %v4406 = vpop.permute.xlu0 %4405
  %4409 = vset.pattern.permute.xlu0 0
  %4410 = vperm.xlu0 %4409, %v3726
  %v4411 = vpop.permute.xlu0 %4410
  %4414 = vset.pattern.permute.xlu0 0
  %4415 = vperm.xlu0 %4414, %v3727
  %v4416 = vpop.permute.xlu0 %4415
  %4419 = vset.pattern.permute.xlu0 0
  %4420 = vperm.xlu0 %4419, %v3728
  %v4421 = vpop.permute.xlu0 %4420
  %4424 = vset.pattern.permute.xlu0 0
  %4425 = vperm.xlu0 %4424, %v3729
  %v4426 = vpop.permute.xlu0 %4425
  %4429 = vset.pattern.permute.xlu0 0
  %4430 = vperm.xlu0 %4429, %v3730
  %v4431 = vpop.permute.xlu0 %4430
  %4434 = vset.pattern.permute.xlu0 0
  %4435 = vperm.xlu0 %4434, %v3731
  %v4436 = vpop.permute.xlu0 %4435
  %4439 = vset.pattern.permute.xlu0 0
  %4440 = vperm.xlu0 %4439, %v3732
  %v4441 = vpop.permute.xlu0 %4440
  %4444 = vset.pattern.permute.xlu0 0
  %4445 = vperm.xlu0 %4444, %v3733
  %v4446 = vpop.permute.xlu0 %4445
  %4449 = vset.pattern.permute.xlu0 0
  %4450 = vperm.xlu0 %4449, %v3734
  %v4451 = vpop.permute.xlu0 %4450
  %4454 = vset.pattern.permute.xlu0 0
  %4455 = vperm.xlu0 %4454, %v3735
  %v4456 = vpop.permute.xlu0 %4455
  %4459 = vset.pattern.permute.xlu0 0
  %4460 = vperm.xlu0 %4459, %v3736
  %v4461 = vpop.permute.xlu0 %4460
  %4464 = vset.pattern.permute.xlu0 0
  %4465 = vperm.xlu0 %4464, %v3737
  %v4466 = vpop.permute.xlu0 %4465
  %4469 = vset.pattern.permute.xlu0 0
  %4470 = vperm.xlu0 %4469, %v3738
  %v4471 = vpop.permute.xlu0 %4470
  %4474 = vset.pattern.permute.xlu0 0
  %4475 = vperm.xlu0 %4474, %v3739
  %v4476 = vpop.permute.xlu0 %4475
  %4479 = vset.pattern.permute.xlu0 0
  %4480 = vperm.xlu0 %4479, %v3740
  %v4481 = vpop.permute.xlu0 %4480
  %4484 = vset.pattern.permute.xlu0 0
  %4485 = vperm.xlu0 %4484, %v3741
  %v4486 = vpop.permute.xlu0 %4485
  %4489 = vset.pattern.permute.xlu0 0
  %4490 = vperm.xlu0 %4489, %v3742
  %v4491 = vpop.permute.xlu0 %4490
  %v4493 = vmul.f32 %v1495, %v3746
  %v4494 = vmul.f32 %v1497, %v3746
  %v4495 = vmul.f32 %v1499, %v3751
  %v4496 = vmul.f32 %v1501, %v3751
  %v4497 = vmul.f32 %v1505, %v3756
  %v4498 = vmul.f32 %v1507, %v3756
  %v4499 = vmul.f32 %v1509, %v3761
  %v4500 = vmul.f32 %v1511, %v3761
  %v4501 = vmul.f32 %v1515, %v3766
  %v4502 = vmul.f32 %v1517, %v3766
  %v4503 = vmul.f32 %v1519, %v3771
  %v4504 = vmul.f32 %v1521, %v3771
  %v4505 = vmul.f32 %v1525, %v3776
  %v4506 = vmul.f32 %v1527, %v3776
  %v4507 = vmul.f32 %v1529, %v3781
  %v4508 = vmul.f32 %v1531, %v3781
  %v4509 = vmul.f32 %v1535, %v3786
  %v4510 = vmul.f32 %v1537, %v3786
  %v4511 = vmul.f32 %v1539, %v3791
  %v4512 = vmul.f32 %v1541, %v3791
  %v4513 = vmul.f32 %v1545, %v3796
  %v4514 = vmul.f32 %v1547, %v3796
  %v4515 = vmul.f32 %v1549, %v3801
  %v4516 = vmul.f32 %v1551, %v3801
  %v4517 = vmul.f32 %v1555, %v3806
  %v4518 = vmul.f32 %v1557, %v3806
  %v4519 = vmul.f32 %v1559, %v3811
  %v4520 = vmul.f32 %v1561, %v3811
  %v4521 = vmul.f32 %v1565, %v3816
  %v4522 = vmul.f32 %v1567, %v3816
  %v4523 = vmul.f32 %v1569, %v3821
  %v4524 = vmul.f32 %v1571, %v3821
  %v4525 = vmul.f32 %v1575, %v3826
  %v4526 = vmul.f32 %v1577, %v3826
  %v4527 = vmul.f32 %v1579, %v3831
  %v4528 = vmul.f32 %v1581, %v3831
  %v4529 = vmul.f32 %v1585, %v3836
  %v4530 = vmul.f32 %v1587, %v3836
  %v4531 = vmul.f32 %v1589, %v3841
  %v4532 = vmul.f32 %v1591, %v3841
  %v4533 = vmul.f32 %v1595, %v3846
  %v4534 = vmul.f32 %v1597, %v3846
  %v4535 = vmul.f32 %v1599, %v3851
  %v4536 = vmul.f32 %v1601, %v3851
  %v4537 = vmul.f32 %v1605, %v3856
  %v4538 = vmul.f32 %v1607, %v3856
  %v4539 = vmul.f32 %v1609, %v3861
  %v4540 = vmul.f32 %v1611, %v3861
  %v4541 = vmul.f32 %v1615, %v3866
  %v4542 = vmul.f32 %v1617, %v3866
  %v4543 = vmul.f32 %v1619, %v3871
  %v4544 = vmul.f32 %v1621, %v3871
  %v4545 = vmul.f32 %v1625, %v3876
  %v4546 = vmul.f32 %v1627, %v3876
  %v4547 = vmul.f32 %v1629, %v3881
  %v4548 = vmul.f32 %v1631, %v3881
  %v4549 = vmul.f32 %v1635, %v3886
  %v4550 = vmul.f32 %v1637, %v3886
  %v4551 = vmul.f32 %v1639, %v3891
  %v4552 = vmul.f32 %v1641, %v3891
  %v4553 = vmul.f32 %v1645, %v3896
  %v4554 = vmul.f32 %v1647, %v3896
  %v4555 = vmul.f32 %v1649, %v3901
  %v4556 = vmul.f32 %v1651, %v3901
  %v4557 = vmul.f32 %v1655, %v3906
  %v4558 = vmul.f32 %v1657, %v3906
  %v4559 = vmul.f32 %v1659, %v3911
  %v4560 = vmul.f32 %v1661, %v3911
  %v4561 = vmul.f32 %v1665, %v3916
  %v4562 = vmul.f32 %v1667, %v3916
  %v4563 = vmul.f32 %v1669, %v3921
  %v4564 = vmul.f32 %v1671, %v3921
  %v4565 = vmul.f32 %v1675, %v3926
  %v4566 = vmul.f32 %v1677, %v3926
  %v4567 = vmul.f32 %v1679, %v3931
  %v4568 = vmul.f32 %v1681, %v3931
  %v4569 = vmul.f32 %v1685, %v3936
  %v4570 = vmul.f32 %v1687, %v3936
  %v4571 = vmul.f32 %v1689, %v3941
  %v4572 = vmul.f32 %v1691, %v3941
  %v4573 = vmul.f32 %v1695, %v3946
  %v4574 = vmul.f32 %v1697, %v3946
  %v4575 = vmul.f32 %v1699, %v3951
  %v4576 = vmul.f32 %v1701, %v3951
  %v4577 = vmul.f32 %v1705, %v3956
  %v4578 = vmul.f32 %v1707, %v3956
  %v4579 = vmul.f32 %v1709, %v3961
  %v4580 = vmul.f32 %v1711, %v3961
  %v4581 = vmul.f32 %v1715, %v3966
  %v4582 = vmul.f32 %v1717, %v3966
  %v4583 = vmul.f32 %v1719, %v3971
  %v4584 = vmul.f32 %v1721, %v3971
  %v4585 = vmul.f32 %v1725, %v3976
  %v4586 = vmul.f32 %v1727, %v3976
  %v4587 = vmul.f32 %v1729, %v3981
  %v4588 = vmul.f32 %v1731, %v3981
  %v4589 = vmul.f32 %v1735, %v3986
  %v4590 = vmul.f32 %v1737, %v3986
  %v4591 = vmul.f32 %v1739, %v3991
  %v4592 = vmul.f32 %v1741, %v3991
  %v4593 = vmul.f32 %v1745, %v3996
  %v4594 = vmul.f32 %v1747, %v3996
  %v4595 = vmul.f32 %v1749, %v4001
  %v4596 = vmul.f32 %v1751, %v4001
  %v4597 = vmul.f32 %v1755, %v4006
  %v4598 = vmul.f32 %v1757, %v4006
  %v4599 = vmul.f32 %v1759, %v4011
  %v4600 = vmul.f32 %v1761, %v4011
  %v4601 = vmul.f32 %v1765, %v4016
  %v4602 = vmul.f32 %v1767, %v4016
  %v4603 = vmul.f32 %v1769, %v4021
  %v4604 = vmul.f32 %v1771, %v4021
  %v4605 = vmul.f32 %v1775, %v4026
  %v4606 = vmul.f32 %v1777, %v4026
  %v4607 = vmul.f32 %v1779, %v4031
  %v4608 = vmul.f32 %v1781, %v4031
  %v4609 = vmul.f32 %v1785, %v4036
  %v4610 = vmul.f32 %v1787, %v4036
  %v4611 = vmul.f32 %v1789, %v4041
  %v4612 = vmul.f32 %v1791, %v4041
  %v4613 = vmul.f32 %v1795, %v4046
  %v4614 = vmul.f32 %v1797, %v4046
  %v4615 = vmul.f32 %v1799, %v4051
  %v4616 = vmul.f32 %v1801, %v4051
  %v4617 = vmul.f32 %v1805, %v4056
  %v4618 = vmul.f32 %v1807, %v4056
  %v4619 = vmul.f32 %v1809, %v4061
  %v4620 = vmul.f32 %v1811, %v4061
  %v4621 = vmul.f32 %v1815, %v4066
  %v4622 = vmul.f32 %v1817, %v4066
  %v4623 = vmul.f32 %v1819, %v4071
  %v4624 = vmul.f32 %v1821, %v4071
  %v4625 = vmul.f32 %v1825, %v4076
  %v4626 = vmul.f32 %v1827, %v4076
  %v4627 = vmul.f32 %v1829, %v4081
  %v4628 = vmul.f32 %v1831, %v4081
  %v4629 = vmul.f32 %v1835, %v4086
  %v4630 = vmul.f32 %v1837, %v4086
  %v4631 = vmul.f32 %v1839, %v4091
  %v4632 = vmul.f32 %v1841, %v4091
  %v4633 = vmul.f32 %v1845, %v4096
  %v4634 = vmul.f32 %v1847, %v4096
  %v4635 = vmul.f32 %v1849, %v4101
  %v4636 = vmul.f32 %v1851, %v4101
  %v4637 = vmul.f32 %v1855, %v4106
  %v4638 = vmul.f32 %v1857, %v4106
  %v4639 = vmul.f32 %v1859, %v4111
  %v4640 = vmul.f32 %v1861, %v4111
  %v4641 = vmul.f32 %v1865, %v4116
  %v4642 = vmul.f32 %v1867, %v4116
  %v4643 = vmul.f32 %v1869, %v4121
  %v4644 = vmul.f32 %v1871, %v4121
  %v4645 = vmul.f32 %v1875, %v4126
  %v4646 = vmul.f32 %v1877, %v4126
  %v4647 = vmul.f32 %v1879, %v4131
  %v4648 = vmul.f32 %v1881, %v4131
  %v4649 = vmul.f32 %v1885, %v4136
  %v4650 = vmul.f32 %v1887, %v4136
  %v4651 = vmul.f32 %v1889, %v4141
  %v4652 = vmul.f32 %v1891, %v4141
  %v4653 = vmul.f32 %v1895, %v4146
  %v4654 = vmul.f32 %v1897, %v4146
  %v4655 = vmul.f32 %v1899, %v4151
  %v4656 = vmul.f32 %v1901, %v4151
  %v4657 = vmul.f32 %v1905, %v4156
  %v4658 = vmul.f32 %v1907, %v4156
  %v4659 = vmul.f32 %v1909, %v4161
  %v4660 = vmul.f32 %v1911, %v4161
  %v4661 = vmul.f32 %v1915, %v4166
  %v4662 = vmul.f32 %v1917, %v4166
  %v4663 = vmul.f32 %v1919, %v4171
  %v4664 = vmul.f32 %v1921, %v4171
  %v4665 = vmul.f32 %v1925, %v4176
  %v4666 = vmul.f32 %v1927, %v4176
  %v4667 = vmul.f32 %v1929, %v4181
  %v4668 = vmul.f32 %v1931, %v4181
  %v4669 = vmul.f32 %v1935, %v4186
  %v4670 = vmul.f32 %v1937, %v4186
  %v4671 = vmul.f32 %v1939, %v4191
  %v4672 = vmul.f32 %v1941, %v4191
  %v4673 = vmul.f32 %v1945, %v4196
  %v4674 = vmul.f32 %v1947, %v4196
  %v4675 = vmul.f32 %v1949, %v4201
  %v4676 = vmul.f32 %v1951, %v4201
  %v4677 = vmul.f32 %v1955, %v4206
  %v4678 = vmul.f32 %v1957, %v4206
  %v4679 = vmul.f32 %v1959, %v4211
  %v4680 = vmul.f32 %v1961, %v4211
  %v4681 = vmul.f32 %v1965, %v4216
  %v4682 = vmul.f32 %v1967, %v4216
  %v4683 = vmul.f32 %v1969, %v4221
  %v4684 = vmul.f32 %v1971, %v4221
  %v4685 = vmul.f32 %v1975, %v4226
  %v4686 = vmul.f32 %v1977, %v4226
  %v4687 = vmul.f32 %v1979, %v4231
  %v4688 = vmul.f32 %v1981, %v4231
  %v4689 = vmul.f32 %v1985, %v4236
  %v4690 = vmul.f32 %v1987, %v4236
  %v4691 = vmul.f32 %v1989, %v4241
  %v4692 = vmul.f32 %v1991, %v4241
  %v4693 = vmul.f32 %v1995, %v4246
  %v4694 = vmul.f32 %v1997, %v4246
  %v4695 = vmul.f32 %v1999, %v4251
  %v4696 = vmul.f32 %v2001, %v4251
  %v4697 = vmul.f32 %v2005, %v4256
  %v4698 = vmul.f32 %v2007, %v4256
  %v4699 = vmul.f32 %v2009, %v4261
  %v4700 = vmul.f32 %v2011, %v4261
  %v4701 = vmul.f32 %v2015, %v4266
  %v4702 = vmul.f32 %v2017, %v4266
  %v4703 = vmul.f32 %v2019, %v4271
  %v4704 = vmul.f32 %v2021, %v4271
  %v4705 = vmul.f32 %v2025, %v4276
  %v4706 = vmul.f32 %v2027, %v4276
  %v4707 = vmul.f32 %v2029, %v4281
  %v4708 = vmul.f32 %v2031, %v4281
  %v4709 = vmul.f32 %v2035, %v4286
  %v4710 = vmul.f32 %v2037, %v4286
  %v4711 = vmul.f32 %v2039, %v4291
  %v4712 = vmul.f32 %v2041, %v4291
  %v4713 = vmul.f32 %v2045, %v4296
  %v4714 = vmul.f32 %v2047, %v4296
  %v4715 = vmul.f32 %v2049, %v4301
  %v4716 = vmul.f32 %v2051, %v4301
  %v4717 = vmul.f32 %v2055, %v4306
  %v4718 = vmul.f32 %v2057, %v4306
  %v4719 = vmul.f32 %v2059, %v4311
  %v4720 = vmul.f32 %v2061, %v4311
  %v4721 = vmul.f32 %v2065, %v4316
  %v4722 = vmul.f32 %v2067, %v4316
  %v4723 = vmul.f32 %v2069, %v4321
  %v4724 = vmul.f32 %v2071, %v4321
  %v4725 = vmul.f32 %v2075, %v4326
  %v4726 = vmul.f32 %v2077, %v4326
  %v4727 = vmul.f32 %v2079, %v4331
  %v4728 = vmul.f32 %v2081, %v4331
  %v4729 = vmul.f32 %v2085, %v4336
  %v4730 = vmul.f32 %v2087, %v4336
  %v4731 = vmul.f32 %v2089, %v4341
  %v4732 = vmul.f32 %v2091, %v4341
  %v4733 = vmul.f32 %v2095, %v4346
  %v4734 = vmul.f32 %v2097, %v4346
  %v4735 = vmul.f32 %v2099, %v4351
  %v4736 = vmul.f32 %v2101, %v4351
  %v4737 = vmul.f32 %v2105, %v4356
  %v4738 = vmul.f32 %v2107, %v4356
  %v4739 = vmul.f32 %v2109, %v4361
  %v4740 = vmul.f32 %v2111, %v4361
  %v4741 = vmul.f32 %v2115, %v4366
  %v4742 = vmul.f32 %v2117, %v4366
  %v4743 = vmul.f32 %v2119, %v4371
  %v4744 = vmul.f32 %v2121, %v4371
  %v4745 = vmul.f32 %v2125, %v4376
  %v4746 = vmul.f32 %v2127, %v4376
  %v4747 = vmul.f32 %v2129, %v4381
  %v4748 = vmul.f32 %v2131, %v4381
  %v4749 = vmul.f32 %v2135, %v4386
  %v4750 = vmul.f32 %v2137, %v4386
  %v4751 = vmul.f32 %v2139, %v4391
  %v4752 = vmul.f32 %v2141, %v4391
  %v4753 = vmul.f32 %v2145, %v4396
  %v4754 = vmul.f32 %v2147, %v4396
  %v4755 = vmul.f32 %v2149, %v4401
  %v4756 = vmul.f32 %v2151, %v4401
  %v4757 = vmul.f32 %v2155, %v4406
  %v4758 = vmul.f32 %v2157, %v4406
  %v4759 = vmul.f32 %v2159, %v4411
  %v4760 = vmul.f32 %v2161, %v4411
  %v4761 = vmul.f32 %v2165, %v4416
  %v4762 = vmul.f32 %v2167, %v4416
  %v4763 = vmul.f32 %v2169, %v4421
  %v4764 = vmul.f32 %v2171, %v4421
  %v4765 = vmul.f32 %v2175, %v4426
  %v4766 = vmul.f32 %v2177, %v4426
  %v4767 = vmul.f32 %v2179, %v4431
  %v4768 = vmul.f32 %v2181, %v4431
  %v4769 = vmul.f32 %v2185, %v4436
  %v4770 = vmul.f32 %v2187, %v4436
  %v4771 = vmul.f32 %v2189, %v4441
  %v4772 = vmul.f32 %v2191, %v4441
  %v4773 = vmul.f32 %v2195, %v4446
  %v4774 = vmul.f32 %v2197, %v4446
  %v4775 = vmul.f32 %v2199, %v4451
  %v4776 = vmul.f32 %v2201, %v4451
  %v4777 = vmul.f32 %v2205, %v4456
  %v4778 = vmul.f32 %v2207, %v4456
  %v4779 = vmul.f32 %v2209, %v4461
  %v4780 = vmul.f32 %v2211, %v4461
  %v4781 = vmul.f32 %v2215, %v4466
  %v4782 = vmul.f32 %v2217, %v4466
  %v4783 = vmul.f32 %v2219, %v4471
  %v4784 = vmul.f32 %v2221, %v4471
  %v4785 = vmul.f32 %v2225, %v4476
  %v4786 = vmul.f32 %v2227, %v4476
  %v4787 = vmul.f32 %v2229, %v4481
  %v4788 = vmul.f32 %v2231, %v4481
  %v4789 = vmul.f32 %v2235, %v4486
  %v4790 = vmul.f32 %v2237, %v4486
  %v4791 = vmul.f32 %v2239, %v4491
  %v4792 = vmul.f32 %v2241, %v4491
  %v4793 = vld [vmem:[%s4] sm:$0xff]
  %v4794 = vld [vmem:[%s4 + $0x8] sm:$0xff]
  %v4795 = vld [vmem:[%s4 + $0x10] sm:$0xff]
  %v4796 = vld [vmem:[%s4 + $0x18] sm:$0xff]
  %v4797 = vld [vmem:[%s4 + $0x20] sm:$0xff]
  %v4798 = vld [vmem:[%s4 + $0x28] sm:$0xff]
  %v4799 = vld [vmem:[%s4 + $0x30] sm:$0xff]
  %v4800 = vld [vmem:[%s4 + $0x38] sm:$0xff]
  %v4801 = vld [vmem:[%s4 + $0x40] sm:$0xff]
  %v4802 = vld [vmem:[%s4 + $0x48] sm:$0xff]
  %v4803 = vld [vmem:[%s4 + $0x50] sm:$0xff]
  %v4804 = vld [vmem:[%s4 + $0x58] sm:$0xff]
  %v4805 = vld [vmem:[%s4 + $0x60] sm:$0xff]
  %v4806 = vld [vmem:[%s4 + $0x68] sm:$0xff]
  %v4807 = vld [vmem:[%s4 + $0x70] sm:$0xff]
  %v4808 = vld [vmem:[%s4 + $0x78] sm:$0xff]
  %v4809 = vld [vmem:[%s4 + $0x80] sm:$0xff]
  %v4810 = vld [vmem:[%s4 + $0x88] sm:$0xff]
  %v4811 = vld [vmem:[%s4 + $0x90] sm:$0xff]
  %v4812 = vld [vmem:[%s4 + $0x98] sm:$0xff]
  %v4813 = vld [vmem:[%s4 + $0xa0] sm:$0xff]
  %v4814 = vld [vmem:[%s4 + $0xa8] sm:$0xff]
  %v4815 = vld [vmem:[%s4 + $0xb0] sm:$0xff]
  %v4816 = vld [vmem:[%s4 + $0xb8] sm:$0xff]
  %v4817 = vld [vmem:[%s4 + $0xc0] sm:$0xff]
  %v4818 = vld [vmem:[%s4 + $0xc8] sm:$0xff]
  %v4819 = vld [vmem:[%s4 + $0xd0] sm:$0xff]
  %v4820 = vld [vmem:[%s4 + $0xd8] sm:$0xff]
  %v4821 = vld [vmem:[%s4 + $0xe0] sm:$0xff]
  %v4822 = vld [vmem:[%s4 + $0xe8] sm:$0xff]
  %v4823 = vld [vmem:[%s4 + $0xf0] sm:$0xff]
  %v4824 = vld [vmem:[%s4 + $0xf8] sm:$0xff]
  %v4825 = vld [vmem:[%s4 + $0x100] sm:$0xff]
  %v4826 = vld [vmem:[%s4 + $0x108] sm:$0xff]
  %v4827 = vld [vmem:[%s4 + $0x110] sm:$0xff]
  %v4828 = vld [vmem:[%s4 + $0x118] sm:$0xff]
  %v4829 = vld [vmem:[%s4 + $0x120] sm:$0xff]
  %v4830 = vld [vmem:[%s4 + $0x128] sm:$0xff]
  %v4831 = vld [vmem:[%s4 + $0x130] sm:$0xff]
  %v4832 = vld [vmem:[%s4 + $0x138] sm:$0xff]
  %v4833 = vld [vmem:[%s4 + $0x140] sm:$0xff]
  %v4834 = vld [vmem:[%s4 + $0x148] sm:$0xff]
  %v4835 = vld [vmem:[%s4 + $0x150] sm:$0xff]
  %v4836 = vld [vmem:[%s4 + $0x158] sm:$0xff]
  %v4837 = vld [vmem:[%s4 + $0x160] sm:$0xff]
  %v4838 = vld [vmem:[%s4 + $0x168] sm:$0xff]
  %v4839 = vld [vmem:[%s4 + $0x170] sm:$0xff]
  %v4840 = vld [vmem:[%s4 + $0x178] sm:$0xff]
  %v4841 = vld [vmem:[%s4 + $0x180] sm:$0xff]
  %v4842 = vld [vmem:[%s4 + $0x188] sm:$0xff]
  %v4843 = vld [vmem:[%s4 + $0x190] sm:$0xff]
  %v4844 = vld [vmem:[%s4 + $0x198] sm:$0xff]
  %v4845 = vld [vmem:[%s4 + $0x1a0] sm:$0xff]
  %v4846 = vld [vmem:[%s4 + $0x1a8] sm:$0xff]
  %v4847 = vld [vmem:[%s4 + $0x1b0] sm:$0xff]
  %v4848 = vld [vmem:[%s4 + $0x1b8] sm:$0xff]
  %v4849 = vld [vmem:[%s4 + $0x1c0] sm:$0xff]
  %v4850 = vld [vmem:[%s4 + $0x1c8] sm:$0xff]
  %v4851 = vld [vmem:[%s4 + $0x1d0] sm:$0xff]
  %v4852 = vld [vmem:[%s4 + $0x1d8] sm:$0xff]
  %v4853 = vld [vmem:[%s4 + $0x1e0] sm:$0xff]
  %v4854 = vld [vmem:[%s4 + $0x1e8] sm:$0xff]
  %v4855 = vld [vmem:[%s4 + $0x1f0] sm:$0xff]
  %v4856 = vld [vmem:[%s4 + $0x1f8] sm:$0xff]
  %v4857 = vld [vmem:[%s4 + $0x200] sm:$0xff]
  %v4858 = vld [vmem:[%s4 + $0x208] sm:$0xff]
  %v4859 = vld [vmem:[%s4 + $0x210] sm:$0xff]
  %v4860 = vld [vmem:[%s4 + $0x218] sm:$0xff]
  %v4861 = vld [vmem:[%s4 + $0x220] sm:$0xff]
  %v4862 = vld [vmem:[%s4 + $0x228] sm:$0xff]
  %v4863 = vld [vmem:[%s4 + $0x230] sm:$0xff]
  %v4864 = vld [vmem:[%s4 + $0x238] sm:$0xff]
  %v4865 = vld [vmem:[%s4 + $0x240] sm:$0xff]
  %v4866 = vld [vmem:[%s4 + $0x248] sm:$0xff]
  %v4867 = vld [vmem:[%s4 + $0x250] sm:$0xff]
  %v4868 = vld [vmem:[%s4 + $0x258] sm:$0xff]
  %v4869 = vld [vmem:[%s4 + $0x260] sm:$0xff]
  %v4870 = vld [vmem:[%s4 + $0x268] sm:$0xff]
  %v4871 = vld [vmem:[%s4 + $0x270] sm:$0xff]
  %v4872 = vld [vmem:[%s4 + $0x278] sm:$0xff]
  %v4873 = vld [vmem:[%s4 + $0x280] sm:$0xff]
  %v4874 = vld [vmem:[%s4 + $0x288] sm:$0xff]
  %v4875 = vld [vmem:[%s4 + $0x290] sm:$0xff]
  %v4876 = vld [vmem:[%s4 + $0x298] sm:$0xff]
  %v4877 = vld [vmem:[%s4 + $0x2a0] sm:$0xff]
  %v4878 = vld [vmem:[%s4 + $0x2a8] sm:$0xff]
  %v4879 = vld [vmem:[%s4 + $0x2b0] sm:$0xff]
  %v4880 = vld [vmem:[%s4 + $0x2b8] sm:$0xff]
  %v4881 = vld [vmem:[%s4 + $0x2c0] sm:$0xff]
  %v4882 = vld [vmem:[%s4 + $0x2c8] sm:$0xff]
  %v4883 = vld [vmem:[%s4 + $0x2d0] sm:$0xff]
  %v4884 = vld [vmem:[%s4 + $0x2d8] sm:$0xff]
  %v4885 = vld [vmem:[%s4 + $0x2e0] sm:$0xff]
  %v4886 = vld [vmem:[%s4 + $0x2e8] sm:$0xff]
  %v4887 = vld [vmem:[%s4 + $0x2f0] sm:$0xff]
  %v4888 = vld [vmem:[%s4 + $0x2f8] sm:$0xff]
  %v4889 = vld [vmem:[%s4 + $0x300] sm:$0xff]
  %v4890 = vld [vmem:[%s4 + $0x308] sm:$0xff]
  %v4891 = vld [vmem:[%s4 + $0x310] sm:$0xff]
  %v4892 = vld [vmem:[%s4 + $0x318] sm:$0xff]
  %v4893 = vld [vmem:[%s4 + $0x320] sm:$0xff]
  %v4894 = vld [vmem:[%s4 + $0x328] sm:$0xff]
  %v4895 = vld [vmem:[%s4 + $0x330] sm:$0xff]
  %v4896 = vld [vmem:[%s4 + $0x338] sm:$0xff]
  %v4897 = vld [vmem:[%s4 + $0x340] sm:$0xff]
  %v4898 = vld [vmem:[%s4 + $0x348] sm:$0xff]
  %v4899 = vld [vmem:[%s4 + $0x350] sm:$0xff]
  %v4900 = vld [vmem:[%s4 + $0x358] sm:$0xff]
  %v4901 = vld [vmem:[%s4 + $0x360] sm:$0xff]
  %v4902 = vld [vmem:[%s4 + $0x368] sm:$0xff]
  %v4903 = vld [vmem:[%s4 + $0x370] sm:$0xff]
  %v4904 = vld [vmem:[%s4 + $0x378] sm:$0xff]
  %v4905 = vld [vmem:[%s4 + $0x380] sm:$0xff]
  %v4906 = vld [vmem:[%s4 + $0x388] sm:$0xff]
  %v4907 = vld [vmem:[%s4 + $0x390] sm:$0xff]
  %v4908 = vld [vmem:[%s4 + $0x398] sm:$0xff]
  %v4909 = vld [vmem:[%s4 + $0x3a0] sm:$0xff]
  %v4910 = vld [vmem:[%s4 + $0x3a8] sm:$0xff]
  %v4911 = vld [vmem:[%s4 + $0x3b0] sm:$0xff]
  %v4912 = vld [vmem:[%s4 + $0x3b8] sm:$0xff]
  %v4913 = vld [vmem:[%s4 + $0x3c0] sm:$0xff]
  %v4914 = vld [vmem:[%s4 + $0x3c8] sm:$0xff]
  %v4915 = vld [vmem:[%s4 + $0x3d0] sm:$0xff]
  %v4916 = vld [vmem:[%s4 + $0x3d8] sm:$0xff]
  %v4917 = vld [vmem:[%s4 + $0x3e0] sm:$0xff]
  %v4918 = vld [vmem:[%s4 + $0x3e8] sm:$0xff]
  %v4919 = vld [vmem:[%s4 + $0x3f0] sm:$0xff]
  %v4920 = vld [vmem:[%s4 + $0x3f8] sm:$0xff]
  %v4921 = vld [vmem:[%s4 + $0x400] sm:$0xff]
  %v4922 = vld [vmem:[%s4 + $0x408] sm:$0xff]
  %v4923 = vld [vmem:[%s4 + $0x410] sm:$0xff]
  %v4924 = vld [vmem:[%s4 + $0x418] sm:$0xff]
  %v4925 = vld [vmem:[%s4 + $0x420] sm:$0xff]
  %v4926 = vld [vmem:[%s4 + $0x428] sm:$0xff]
  %v4927 = vld [vmem:[%s4 + $0x430] sm:$0xff]
  %v4928 = vld [vmem:[%s4 + $0x438] sm:$0xff]
  %v4929 = vld [vmem:[%s4 + $0x440] sm:$0xff]
  %v4930 = vld [vmem:[%s4 + $0x448] sm:$0xff]
  %v4931 = vld [vmem:[%s4 + $0x450] sm:$0xff]
  %v4932 = vld [vmem:[%s4 + $0x458] sm:$0xff]
  %v4933 = vld [vmem:[%s4 + $0x460] sm:$0xff]
  %v4934 = vld [vmem:[%s4 + $0x468] sm:$0xff]
  %v4935 = vld [vmem:[%s4 + $0x470] sm:$0xff]
  %v4936 = vld [vmem:[%s4 + $0x478] sm:$0xff]
  %v4937 = vld [vmem:[%s4 + $0x480] sm:$0xff]
  %v4938 = vld [vmem:[%s4 + $0x488] sm:$0xff]
  %v4939 = vld [vmem:[%s4 + $0x490] sm:$0xff]
  %v4940 = vld [vmem:[%s4 + $0x498] sm:$0xff]
  %v4941 = vld [vmem:[%s4 + $0x4a0] sm:$0xff]
  %v4942 = vld [vmem:[%s4 + $0x4a8] sm:$0xff]
  %4944 = vset.pattern.permute.xlu0 0
  %4945 = vperm.xlu0 %4944, %v4793
  %v4946 = vpop.permute.xlu0 %4945
  %4949 = vset.pattern.permute.xlu0 0
  %4950 = vperm.xlu0 %4949, %v4794
  %v4951 = vpop.permute.xlu0 %4950
  %4954 = vset.pattern.permute.xlu0 0
  %4955 = vperm.xlu0 %4954, %v4795
  %v4956 = vpop.permute.xlu0 %4955
  %4959 = vset.pattern.permute.xlu0 0
  %4960 = vperm.xlu0 %4959, %v4796
  %v4961 = vpop.permute.xlu0 %4960
  %4964 = vset.pattern.permute.xlu0 0
  %4965 = vperm.xlu0 %4964, %v4797
  %v4966 = vpop.permute.xlu0 %4965
  %4969 = vset.pattern.permute.xlu0 0
  %4970 = vperm.xlu0 %4969, %v4798
  %v4971 = vpop.permute.xlu0 %4970
  %4974 = vset.pattern.permute.xlu0 0
  %4975 = vperm.xlu0 %4974, %v4799
  %v4976 = vpop.permute.xlu0 %4975
  %4979 = vset.pattern.permute.xlu0 0
  %4980 = vperm.xlu0 %4979, %v4800
  %v4981 = vpop.permute.xlu0 %4980
  %4984 = vset.pattern.permute.xlu0 0
  %4985 = vperm.xlu0 %4984, %v4801
  %v4986 = vpop.permute.xlu0 %4985
  %4989 = vset.pattern.permute.xlu0 0
  %4990 = vperm.xlu0 %4989, %v4802
  %v4991 = vpop.permute.xlu0 %4990
  %4994 = vset.pattern.permute.xlu0 0
  %4995 = vperm.xlu0 %4994, %v4803
  %v4996 = vpop.permute.xlu0 %4995
  %4999 = vset.pattern.permute.xlu0 0
  %5000 = vperm.xlu0 %4999, %v4804
  %v5001 = vpop.permute.xlu0 %5000
  %5004 = vset.pattern.permute.xlu0 0
  %5005 = vperm.xlu0 %5004, %v4805
  %v5006 = vpop.permute.xlu0 %5005
  %5009 = vset.pattern.permute.xlu0 0
  %5010 = vperm.xlu0 %5009, %v4806
  %v5011 = vpop.permute.xlu0 %5010
  %5014 = vset.pattern.permute.xlu0 0
  %5015 = vperm.xlu0 %5014, %v4807
  %v5016 = vpop.permute.xlu0 %5015
  %5019 = vset.pattern.permute.xlu0 0
  %5020 = vperm.xlu0 %5019, %v4808
  %v5021 = vpop.permute.xlu0 %5020
  %5024 = vset.pattern.permute.xlu0 0
  %5025 = vperm.xlu0 %5024, %v4809
  %v5026 = vpop.permute.xlu0 %5025
  %5029 = vset.pattern.permute.xlu0 0
  %5030 = vperm.xlu0 %5029, %v4810
  %v5031 = vpop.permute.xlu0 %5030
  %5034 = vset.pattern.permute.xlu0 0
  %5035 = vperm.xlu0 %5034, %v4811
  %v5036 = vpop.permute.xlu0 %5035
  %5039 = vset.pattern.permute.xlu0 0
  %5040 = vperm.xlu0 %5039, %v4812
  %v5041 = vpop.permute.xlu0 %5040
  %5044 = vset.pattern.permute.xlu0 0
  %5045 = vperm.xlu0 %5044, %v4813
  %v5046 = vpop.permute.xlu0 %5045
  %5049 = vset.pattern.permute.xlu0 0
  %5050 = vperm.xlu0 %5049, %v4814
  %v5051 = vpop.permute.xlu0 %5050
  %5054 = vset.pattern.permute.xlu0 0
  %5055 = vperm.xlu0 %5054, %v4815
  %v5056 = vpop.permute.xlu0 %5055
  %5059 = vset.pattern.permute.xlu0 0
  %5060 = vperm.xlu0 %5059, %v4816
  %v5061 = vpop.permute.xlu0 %5060
  %5064 = vset.pattern.permute.xlu0 0
  %5065 = vperm.xlu0 %5064, %v4817
  %v5066 = vpop.permute.xlu0 %5065
  %5069 = vset.pattern.permute.xlu0 0
  %5070 = vperm.xlu0 %5069, %v4818
  %v5071 = vpop.permute.xlu0 %5070
  %5074 = vset.pattern.permute.xlu0 0
  %5075 = vperm.xlu0 %5074, %v4819
  %v5076 = vpop.permute.xlu0 %5075
  %5079 = vset.pattern.permute.xlu0 0
  %5080 = vperm.xlu0 %5079, %v4820
  %v5081 = vpop.permute.xlu0 %5080
  %5084 = vset.pattern.permute.xlu0 0
  %5085 = vperm.xlu0 %5084, %v4821
  %v5086 = vpop.permute.xlu0 %5085
  %5089 = vset.pattern.permute.xlu0 0
  %5090 = vperm.xlu0 %5089, %v4822
  %v5091 = vpop.permute.xlu0 %5090
  %5094 = vset.pattern.permute.xlu0 0
  %5095 = vperm.xlu0 %5094, %v4823
  %v5096 = vpop.permute.xlu0 %5095
  %5099 = vset.pattern.permute.xlu0 0
  %5100 = vperm.xlu0 %5099, %v4824
  %v5101 = vpop.permute.xlu0 %5100
  %5104 = vset.pattern.permute.xlu0 0
  %5105 = vperm.xlu0 %5104, %v4825
  %v5106 = vpop.permute.xlu0 %5105
  %5109 = vset.pattern.permute.xlu0 0
  %5110 = vperm.xlu0 %5109, %v4826
  %v5111 = vpop.permute.xlu0 %5110
  %5114 = vset.pattern.permute.xlu0 0
  %5115 = vperm.xlu0 %5114, %v4827
  %v5116 = vpop.permute.xlu0 %5115
  %5119 = vset.pattern.permute.xlu0 0
  %5120 = vperm.xlu0 %5119, %v4828
  %v5121 = vpop.permute.xlu0 %5120
  %5124 = vset.pattern.permute.xlu0 0
  %5125 = vperm.xlu0 %5124, %v4829
  %v5126 = vpop.permute.xlu0 %5125
  %5129 = vset.pattern.permute.xlu0 0
  %5130 = vperm.xlu0 %5129, %v4830
  %v5131 = vpop.permute.xlu0 %5130
  %5134 = vset.pattern.permute.xlu0 0
  %5135 = vperm.xlu0 %5134, %v4831
  %v5136 = vpop.permute.xlu0 %5135
  %5139 = vset.pattern.permute.xlu0 0
  %5140 = vperm.xlu0 %5139, %v4832
  %v5141 = vpop.permute.xlu0 %5140
  %5144 = vset.pattern.permute.xlu0 0
  %5145 = vperm.xlu0 %5144, %v4833
  %v5146 = vpop.permute.xlu0 %5145
  %5149 = vset.pattern.permute.xlu0 0
  %5150 = vperm.xlu0 %5149, %v4834
  %v5151 = vpop.permute.xlu0 %5150
  %5154 = vset.pattern.permute.xlu0 0
  %5155 = vperm.xlu0 %5154, %v4835
  %v5156 = vpop.permute.xlu0 %5155
  %5159 = vset.pattern.permute.xlu0 0
  %5160 = vperm.xlu0 %5159, %v4836
  %v5161 = vpop.permute.xlu0 %5160
  %5164 = vset.pattern.permute.xlu0 0
  %5165 = vperm.xlu0 %5164, %v4837
  %v5166 = vpop.permute.xlu0 %5165
  %5169 = vset.pattern.permute.xlu0 0
  %5170 = vperm.xlu0 %5169, %v4838
  %v5171 = vpop.permute.xlu0 %5170
  %5174 = vset.pattern.permute.xlu0 0
  %5175 = vperm.xlu0 %5174, %v4839
  %v5176 = vpop.permute.xlu0 %5175
  %5179 = vset.pattern.permute.xlu0 0
  %5180 = vperm.xlu0 %5179, %v4840
  %v5181 = vpop.permute.xlu0 %5180
  %5184 = vset.pattern.permute.xlu0 0
  %5185 = vperm.xlu0 %5184, %v4841
  %v5186 = vpop.permute.xlu0 %5185
  %5189 = vset.pattern.permute.xlu0 0
  %5190 = vperm.xlu0 %5189, %v4842
  %v5191 = vpop.permute.xlu0 %5190
  %5194 = vset.pattern.permute.xlu0 0
  %5195 = vperm.xlu0 %5194, %v4843
  %v5196 = vpop.permute.xlu0 %5195
  %5199 = vset.pattern.permute.xlu0 0
  %5200 = vperm.xlu0 %5199, %v4844
  %v5201 = vpop.permute.xlu0 %5200
  %5204 = vset.pattern.permute.xlu0 0
  %5205 = vperm.xlu0 %5204, %v4845
  %v5206 = vpop.permute.xlu0 %5205
  %5209 = vset.pattern.permute.xlu0 0
  %5210 = vperm.xlu0 %5209, %v4846
  %v5211 = vpop.permute.xlu0 %5210
  %5214 = vset.pattern.permute.xlu0 0
  %5215 = vperm.xlu0 %5214, %v4847
  %v5216 = vpop.permute.xlu0 %5215
  %5219 = vset.pattern.permute.xlu0 0
  %5220 = vperm.xlu0 %5219, %v4848
  %v5221 = vpop.permute.xlu0 %5220
  %5224 = vset.pattern.permute.xlu0 0
  %5225 = vperm.xlu0 %5224, %v4849
  %v5226 = vpop.permute.xlu0 %5225
  %5229 = vset.pattern.permute.xlu0 0
  %5230 = vperm.xlu0 %5229, %v4850
  %v5231 = vpop.permute.xlu0 %5230
  %5234 = vset.pattern.permute.xlu0 0
  %5235 = vperm.xlu0 %5234, %v4851
  %v5236 = vpop.permute.xlu0 %5235
  %5239 = vset.pattern.permute.xlu0 0
  %5240 = vperm.xlu0 %5239, %v4852
  %v5241 = vpop.permute.xlu0 %5240
  %5244 = vset.pattern.permute.xlu0 0
  %5245 = vperm.xlu0 %5244, %v4853
  %v5246 = vpop.permute.xlu0 %5245
  %5249 = vset.pattern.permute.xlu0 0
  %5250 = vperm.xlu0 %5249, %v4854
  %v5251 = vpop.permute.xlu0 %5250
  %5254 = vset.pattern.permute.xlu0 0
  %5255 = vperm.xlu0 %5254, %v4855
  %v5256 = vpop.permute.xlu0 %5255
  %5259 = vset.pattern.permute.xlu0 0
  %5260 = vperm.xlu0 %5259, %v4856
  %v5261 = vpop.permute.xlu0 %5260
  %5264 = vset.pattern.permute.xlu0 0
  %5265 = vperm.xlu0 %5264, %v4857
  %v5266 = vpop.permute.xlu0 %5265
  %5269 = vset.pattern.permute.xlu0 0
  %5270 = vperm.xlu0 %5269, %v4858
  %v5271 = vpop.permute.xlu0 %5270
  %5274 = vset.pattern.permute.xlu0 0
  %5275 = vperm.xlu0 %5274, %v4859
  %v5276 = vpop.permute.xlu0 %5275
  %5279 = vset.pattern.permute.xlu0 0
  %5280 = vperm.xlu0 %5279, %v4860
  %v5281 = vpop.permute.xlu0 %5280
  %5284 = vset.pattern.permute.xlu0 0
  %5285 = vperm.xlu0 %5284, %v4861
  %v5286 = vpop.permute.xlu0 %5285
  %5289 = vset.pattern.permute.xlu0 0
  %5290 = vperm.xlu0 %5289, %v4862
  %v5291 = vpop.permute.xlu0 %5290
  %5294 = vset.pattern.permute.xlu0 0
  %5295 = vperm.xlu0 %5294, %v4863
  %v5296 = vpop.permute.xlu0 %5295
  %5299 = vset.pattern.permute.xlu0 0
  %5300 = vperm.xlu0 %5299, %v4864
  %v5301 = vpop.permute.xlu0 %5300
  %5304 = vset.pattern.permute.xlu0 0
  %5305 = vperm.xlu0 %5304, %v4865
  %v5306 = vpop.permute.xlu0 %5305
  %5309 = vset.pattern.permute.xlu0 0
  %5310 = vperm.xlu0 %5309, %v4866
  %v5311 = vpop.permute.xlu0 %5310
  %5314 = vset.pattern.permute.xlu0 0
  %5315 = vperm.xlu0 %5314, %v4867
  %v5316 = vpop.permute.xlu0 %5315
  %5319 = vset.pattern.permute.xlu0 0
  %5320 = vperm.xlu0 %5319, %v4868
  %v5321 = vpop.permute.xlu0 %5320
  %5324 = vset.pattern.permute.xlu0 0
  %5325 = vperm.xlu0 %5324, %v4869
  %v5326 = vpop.permute.xlu0 %5325
  %5329 = vset.pattern.permute.xlu0 0
  %5330 = vperm.xlu0 %5329, %v4870
  %v5331 = vpop.permute.xlu0 %5330
  %5334 = vset.pattern.permute.xlu0 0
  %5335 = vperm.xlu0 %5334, %v4871
  %v5336 = vpop.permute.xlu0 %5335
  %5339 = vset.pattern.permute.xlu0 0
  %5340 = vperm.xlu0 %5339, %v4872
  %v5341 = vpop.permute.xlu0 %5340
  %5344 = vset.pattern.permute.xlu0 0
  %5345 = vperm.xlu0 %5344, %v4873
  %v5346 = vpop.permute.xlu0 %5345
  %5349 = vset.pattern.permute.xlu0 0
  %5350 = vperm.xlu0 %5349, %v4874
  %v5351 = vpop.permute.xlu0 %5350
  %5354 = vset.pattern.permute.xlu0 0
  %5355 = vperm.xlu0 %5354, %v4875
  %v5356 = vpop.permute.xlu0 %5355
  %5359 = vset.pattern.permute.xlu0 0
  %5360 = vperm.xlu0 %5359, %v4876
  %v5361 = vpop.permute.xlu0 %5360
  %5364 = vset.pattern.permute.xlu0 0
  %5365 = vperm.xlu0 %5364, %v4877
  %v5366 = vpop.permute.xlu0 %5365
  %5369 = vset.pattern.permute.xlu0 0
  %5370 = vperm.xlu0 %5369, %v4878
  %v5371 = vpop.permute.xlu0 %5370
  %5374 = vset.pattern.permute.xlu0 0
  %5375 = vperm.xlu0 %5374, %v4879
  %v5376 = vpop.permute.xlu0 %5375
  %5379 = vset.pattern.permute.xlu0 0
  %5380 = vperm.xlu0 %5379, %v4880
  %v5381 = vpop.permute.xlu0 %5380
  %5384 = vset.pattern.permute.xlu0 0
  %5385 = vperm.xlu0 %5384, %v4881
  %v5386 = vpop.permute.xlu0 %5385
  %5389 = vset.pattern.permute.xlu0 0
  %5390 = vperm.xlu0 %5389, %v4882
  %v5391 = vpop.permute.xlu0 %5390
  %5394 = vset.pattern.permute.xlu0 0
  %5395 = vperm.xlu0 %5394, %v4883
  %v5396 = vpop.permute.xlu0 %5395
  %5399 = vset.pattern.permute.xlu0 0
  %5400 = vperm.xlu0 %5399, %v4884
  %v5401 = vpop.permute.xlu0 %5400
  %5404 = vset.pattern.permute.xlu0 0
  %5405 = vperm.xlu0 %5404, %v4885
  %v5406 = vpop.permute.xlu0 %5405
  %5409 = vset.pattern.permute.xlu0 0
  %5410 = vperm.xlu0 %5409, %v4886
  %v5411 = vpop.permute.xlu0 %5410
  %5414 = vset.pattern.permute.xlu0 0
  %5415 = vperm.xlu0 %5414, %v4887
  %v5416 = vpop.permute.xlu0 %5415
  %5419 = vset.pattern.permute.xlu0 0
  %5420 = vperm.xlu0 %5419, %v4888
  %v5421 = vpop.permute.xlu0 %5420
  %5424 = vset.pattern.permute.xlu0 0
  %5425 = vperm.xlu0 %5424, %v4889
  %v5426 = vpop.permute.xlu0 %5425
  %5429 = vset.pattern.permute.xlu0 0
  %5430 = vperm.xlu0 %5429, %v4890
  %v5431 = vpop.permute.xlu0 %5430
  %5434 = vset.pattern.permute.xlu0 0
  %5435 = vperm.xlu0 %5434, %v4891
  %v5436 = vpop.permute.xlu0 %5435
  %5439 = vset.pattern.permute.xlu0 0
  %5440 = vperm.xlu0 %5439, %v4892
  %v5441 = vpop.permute.xlu0 %5440
  %5444 = vset.pattern.permute.xlu0 0
  %5445 = vperm.xlu0 %5444, %v4893
  %v5446 = vpop.permute.xlu0 %5445
  %5449 = vset.pattern.permute.xlu0 0
  %5450 = vperm.xlu0 %5449, %v4894
  %v5451 = vpop.permute.xlu0 %5450
  %5454 = vset.pattern.permute.xlu0 0
  %5455 = vperm.xlu0 %5454, %v4895
  %v5456 = vpop.permute.xlu0 %5455
  %5459 = vset.pattern.permute.xlu0 0
  %5460 = vperm.xlu0 %5459, %v4896
  %v5461 = vpop.permute.xlu0 %5460
  %5464 = vset.pattern.permute.xlu0 0
  %5465 = vperm.xlu0 %5464, %v4897
  %v5466 = vpop.permute.xlu0 %5465
  %5469 = vset.pattern.permute.xlu0 0
  %5470 = vperm.xlu0 %5469, %v4898
  %v5471 = vpop.permute.xlu0 %5470
  %5474 = vset.pattern.permute.xlu0 0
  %5475 = vperm.xlu0 %5474, %v4899
  %v5476 = vpop.permute.xlu0 %5475
  %5479 = vset.pattern.permute.xlu0 0
  %5480 = vperm.xlu0 %5479, %v4900
  %v5481 = vpop.permute.xlu0 %5480
  %5484 = vset.pattern.permute.xlu0 0
  %5485 = vperm.xlu0 %5484, %v4901
  %v5486 = vpop.permute.xlu0 %5485
  %5489 = vset.pattern.permute.xlu0 0
  %5490 = vperm.xlu0 %5489, %v4902
  %v5491 = vpop.permute.xlu0 %5490
  %5494 = vset.pattern.permute.xlu0 0
  %5495 = vperm.xlu0 %5494, %v4903
  %v5496 = vpop.permute.xlu0 %5495
  %5499 = vset.pattern.permute.xlu0 0
  %5500 = vperm.xlu0 %5499, %v4904
  %v5501 = vpop.permute.xlu0 %5500
  %5504 = vset.pattern.permute.xlu0 0
  %5505 = vperm.xlu0 %5504, %v4905
  %v5506 = vpop.permute.xlu0 %5505
  %5509 = vset.pattern.permute.xlu0 0
  %5510 = vperm.xlu0 %5509, %v4906
  %v5511 = vpop.permute.xlu0 %5510
  %5514 = vset.pattern.permute.xlu0 0
  %5515 = vperm.xlu0 %5514, %v4907
  %v5516 = vpop.permute.xlu0 %5515
  %5519 = vset.pattern.permute.xlu0 0
  %5520 = vperm.xlu0 %5519, %v4908
  %v5521 = vpop.permute.xlu0 %5520
  %5524 = vset.pattern.permute.xlu0 0
  %5525 = vperm.xlu0 %5524, %v4909
  %v5526 = vpop.permute.xlu0 %5525
  %5529 = vset.pattern.permute.xlu0 0
  %5530 = vperm.xlu0 %5529, %v4910
  %v5531 = vpop.permute.xlu0 %5530
  %5534 = vset.pattern.permute.xlu0 0
  %5535 = vperm.xlu0 %5534, %v4911
  %v5536 = vpop.permute.xlu0 %5535
  %5539 = vset.pattern.permute.xlu0 0
  %5540 = vperm.xlu0 %5539, %v4912
  %v5541 = vpop.permute.xlu0 %5540
  %5544 = vset.pattern.permute.xlu0 0
  %5545 = vperm.xlu0 %5544, %v4913
  %v5546 = vpop.permute.xlu0 %5545
  %5549 = vset.pattern.permute.xlu0 0
  %5550 = vperm.xlu0 %5549, %v4914
  %v5551 = vpop.permute.xlu0 %5550
  %5554 = vset.pattern.permute.xlu0 0
  %5555 = vperm.xlu0 %5554, %v4915
  %v5556 = vpop.permute.xlu0 %5555
  %5559 = vset.pattern.permute.xlu0 0
  %5560 = vperm.xlu0 %5559, %v4916
  %v5561 = vpop.permute.xlu0 %5560
  %5564 = vset.pattern.permute.xlu0 0
  %5565 = vperm.xlu0 %5564, %v4917
  %v5566 = vpop.permute.xlu0 %5565
  %5569 = vset.pattern.permute.xlu0 0
  %5570 = vperm.xlu0 %5569, %v4918
  %v5571 = vpop.permute.xlu0 %5570
  %5574 = vset.pattern.permute.xlu0 0
  %5575 = vperm.xlu0 %5574, %v4919
  %v5576 = vpop.permute.xlu0 %5575
  %5579 = vset.pattern.permute.xlu0 0
  %5580 = vperm.xlu0 %5579, %v4920
  %v5581 = vpop.permute.xlu0 %5580
  %5584 = vset.pattern.permute.xlu0 0
  %5585 = vperm.xlu0 %5584, %v4921
  %v5586 = vpop.permute.xlu0 %5585
  %5589 = vset.pattern.permute.xlu0 0
  %5590 = vperm.xlu0 %5589, %v4922
  %v5591 = vpop.permute.xlu0 %5590
  %5594 = vset.pattern.permute.xlu0 0
  %5595 = vperm.xlu0 %5594, %v4923
  %v5596 = vpop.permute.xlu0 %5595
  %5599 = vset.pattern.permute.xlu0 0
  %5600 = vperm.xlu0 %5599, %v4924
  %v5601 = vpop.permute.xlu0 %5600
  %5604 = vset.pattern.permute.xlu0 0
  %5605 = vperm.xlu0 %5604, %v4925
  %v5606 = vpop.permute.xlu0 %5605
  %5609 = vset.pattern.permute.xlu0 0
  %5610 = vperm.xlu0 %5609, %v4926
  %v5611 = vpop.permute.xlu0 %5610
  %5614 = vset.pattern.permute.xlu0 0
  %5615 = vperm.xlu0 %5614, %v4927
  %v5616 = vpop.permute.xlu0 %5615
  %5619 = vset.pattern.permute.xlu0 0
  %5620 = vperm.xlu0 %5619, %v4928
  %v5621 = vpop.permute.xlu0 %5620
  %5624 = vset.pattern.permute.xlu0 0
  %5625 = vperm.xlu0 %5624, %v4929
  %v5626 = vpop.permute.xlu0 %5625
  %5629 = vset.pattern.permute.xlu0 0
  %5630 = vperm.xlu0 %5629, %v4930
  %v5631 = vpop.permute.xlu0 %5630
  %5634 = vset.pattern.permute.xlu0 0
  %5635 = vperm.xlu0 %5634, %v4931
  %v5636 = vpop.permute.xlu0 %5635
  %5639 = vset.pattern.permute.xlu0 0
  %5640 = vperm.xlu0 %5639, %v4932
  %v5641 = vpop.permute.xlu0 %5640
  %5644 = vset.pattern.permute.xlu0 0
  %5645 = vperm.xlu0 %5644, %v4933
  %v5646 = vpop.permute.xlu0 %5645
  %5649 = vset.pattern.permute.xlu0 0
  %5650 = vperm.xlu0 %5649, %v4934
  %v5651 = vpop.permute.xlu0 %5650
  %5654 = vset.pattern.permute.xlu0 0
  %5655 = vperm.xlu0 %5654, %v4935
  %v5656 = vpop.permute.xlu0 %5655
  %5659 = vset.pattern.permute.xlu0 0
  %5660 = vperm.xlu0 %5659, %v4936
  %v5661 = vpop.permute.xlu0 %5660
  %5664 = vset.pattern.permute.xlu0 0
  %5665 = vperm.xlu0 %5664, %v4937
  %v5666 = vpop.permute.xlu0 %5665
  %5669 = vset.pattern.permute.xlu0 0
  %5670 = vperm.xlu0 %5669, %v4938
  %v5671 = vpop.permute.xlu0 %5670
  %5674 = vset.pattern.permute.xlu0 0
  %5675 = vperm.xlu0 %5674, %v4939
  %v5676 = vpop.permute.xlu0 %5675
  %5679 = vset.pattern.permute.xlu0 0
  %5680 = vperm.xlu0 %5679, %v4940
  %v5681 = vpop.permute.xlu0 %5680
  %5684 = vset.pattern.permute.xlu0 0
  %5685 = vperm.xlu0 %5684, %v4941
  %v5686 = vpop.permute.xlu0 %5685
  %5689 = vset.pattern.permute.xlu0 0
  %5690 = vperm.xlu0 %5689, %v4942
  %v5691 = vpop.permute.xlu0 %5690
  %v5693 = vadd.f32 %v4493, %v4946
  %v5694 = vadd.f32 %v4494, %v4946
  %v5695 = vadd.f32 %v4495, %v4951
  %v5696 = vadd.f32 %v4496, %v4951
  %v5697 = vadd.f32 %v4497, %v4956
  %v5698 = vadd.f32 %v4498, %v4956
  %v5699 = vadd.f32 %v4499, %v4961
  %v5700 = vadd.f32 %v4500, %v4961
  %v5701 = vadd.f32 %v4501, %v4966
  %v5702 = vadd.f32 %v4502, %v4966
  %v5703 = vadd.f32 %v4503, %v4971
  %v5704 = vadd.f32 %v4504, %v4971
  %v5705 = vadd.f32 %v4505, %v4976
  %v5706 = vadd.f32 %v4506, %v4976
  %v5707 = vadd.f32 %v4507, %v4981
  %v5708 = vadd.f32 %v4508, %v4981
  %v5709 = vadd.f32 %v4509, %v4986
  %v5710 = vadd.f32 %v4510, %v4986
  %v5711 = vadd.f32 %v4511, %v4991
  %v5712 = vadd.f32 %v4512, %v4991
  %v5713 = vadd.f32 %v4513, %v4996
  %v5714 = vadd.f32 %v4514, %v4996
  %v5715 = vadd.f32 %v4515, %v5001
  %v5716 = vadd.f32 %v4516, %v5001
  %v5717 = vadd.f32 %v4517, %v5006
  %v5718 = vadd.f32 %v4518, %v5006
  %v5719 = vadd.f32 %v4519, %v5011
  %v5720 = vadd.f32 %v4520, %v5011
  %v5721 = vadd.f32 %v4521, %v5016
  %v5722 = vadd.f32 %v4522, %v5016
  %v5723 = vadd.f32 %v4523, %v5021
  %v5724 = vadd.f32 %v4524, %v5021
  %v5725 = vadd.f32 %v4525, %v5026
  %v5726 = vadd.f32 %v4526, %v5026
  %v5727 = vadd.f32 %v4527, %v5031
  %v5728 = vadd.f32 %v4528, %v5031
  %v5729 = vadd.f32 %v4529, %v5036
  %v5730 = vadd.f32 %v4530, %v5036
  %v5731 = vadd.f32 %v4531, %v5041
  %v5732 = vadd.f32 %v4532, %v5041
  %v5733 = vadd.f32 %v4533, %v5046
  %v5734 = vadd.f32 %v4534, %v5046
  %v5735 = vadd.f32 %v4535, %v5051
  %v5736 = vadd.f32 %v4536, %v5051
  %v5737 = vadd.f32 %v4537, %v5056
  %v5738 = vadd.f32 %v4538, %v5056
  %v5739 = vadd.f32 %v4539, %v5061
  %v5740 = vadd.f32 %v4540, %v5061
  %v5741 = vadd.f32 %v4541, %v5066
  %v5742 = vadd.f32 %v4542, %v5066
  %v5743 = vadd.f32 %v4543, %v5071
  %v5744 = vadd.f32 %v4544, %v5071
  %v5745 = vadd.f32 %v4545, %v5076
  %v5746 = vadd.f32 %v4546, %v5076
  %v5747 = vadd.f32 %v4547, %v5081
  %v5748 = vadd.f32 %v4548, %v5081
  %v5749 = vadd.f32 %v4549, %v5086
  %v5750 = vadd.f32 %v4550, %v5086
  %v5751 = vadd.f32 %v4551, %v5091
  %v5752 = vadd.f32 %v4552, %v5091
  %v5753 = vadd.f32 %v4553, %v5096
  %v5754 = vadd.f32 %v4554, %v5096
  %v5755 = vadd.f32 %v4555, %v5101
  %v5756 = vadd.f32 %v4556, %v5101
  %v5757 = vadd.f32 %v4557, %v5106
  %v5758 = vadd.f32 %v4558, %v5106
  %v5759 = vadd.f32 %v4559, %v5111
  %v5760 = vadd.f32 %v4560, %v5111
  %v5761 = vadd.f32 %v4561, %v5116
  %v5762 = vadd.f32 %v4562, %v5116
  %v5763 = vadd.f32 %v4563, %v5121
  %v5764 = vadd.f32 %v4564, %v5121
  %v5765 = vadd.f32 %v4565, %v5126
  %v5766 = vadd.f32 %v4566, %v5126
  %v5767 = vadd.f32 %v4567, %v5131
  %v5768 = vadd.f32 %v4568, %v5131
  %v5769 = vadd.f32 %v4569, %v5136
  %v5770 = vadd.f32 %v4570, %v5136
  %v5771 = vadd.f32 %v4571, %v5141
  %v5772 = vadd.f32 %v4572, %v5141
  %v5773 = vadd.f32 %v4573, %v5146
  %v5774 = vadd.f32 %v4574, %v5146
  %v5775 = vadd.f32 %v4575, %v5151
  %v5776 = vadd.f32 %v4576, %v5151
  %v5777 = vadd.f32 %v4577, %v5156
  %v5778 = vadd.f32 %v4578, %v5156
  %v5779 = vadd.f32 %v4579, %v5161
  %v5780 = vadd.f32 %v4580, %v5161
  %v5781 = vadd.f32 %v4581, %v5166
  %v5782 = vadd.f32 %v4582, %v5166
  %v5783 = vadd.f32 %v4583, %v5171
  %v5784 = vadd.f32 %v4584, %v5171
  %v5785 = vadd.f32 %v4585, %v5176
  %v5786 = vadd.f32 %v4586, %v5176
  %v5787 = vadd.f32 %v4587, %v5181
  %v5788 = vadd.f32 %v4588, %v5181
  %v5789 = vadd.f32 %v4589, %v5186
  %v5790 = vadd.f32 %v4590, %v5186
  %v5791 = vadd.f32 %v4591, %v5191
  %v5792 = vadd.f32 %v4592, %v5191
  %v5793 = vadd.f32 %v4593, %v5196
  %v5794 = vadd.f32 %v4594, %v5196
  %v5795 = vadd.f32 %v4595, %v5201
  %v5796 = vadd.f32 %v4596, %v5201
  %v5797 = vadd.f32 %v4597, %v5206
  %v5798 = vadd.f32 %v4598, %v5206
  %v5799 = vadd.f32 %v4599, %v5211
  %v5800 = vadd.f32 %v4600, %v5211
  %v5801 = vadd.f32 %v4601, %v5216
  %v5802 = vadd.f32 %v4602, %v5216
  %v5803 = vadd.f32 %v4603, %v5221
  %v5804 = vadd.f32 %v4604, %v5221
  %v5805 = vadd.f32 %v4605, %v5226
  %v5806 = vadd.f32 %v4606, %v5226
  %v5807 = vadd.f32 %v4607, %v5231
  %v5808 = vadd.f32 %v4608, %v5231
  %v5809 = vadd.f32 %v4609, %v5236
  %v5810 = vadd.f32 %v4610, %v5236
  %v5811 = vadd.f32 %v4611, %v5241
  %v5812 = vadd.f32 %v4612, %v5241
  %v5813 = vadd.f32 %v4613, %v5246
  %v5814 = vadd.f32 %v4614, %v5246
  %v5815 = vadd.f32 %v4615, %v5251
  %v5816 = vadd.f32 %v4616, %v5251
  %v5817 = vadd.f32 %v4617, %v5256
  %v5818 = vadd.f32 %v4618, %v5256
  %v5819 = vadd.f32 %v4619, %v5261
  %v5820 = vadd.f32 %v4620, %v5261
  %v5821 = vadd.f32 %v4621, %v5266
  %v5822 = vadd.f32 %v4622, %v5266
  %v5823 = vadd.f32 %v4623, %v5271
  %v5824 = vadd.f32 %v4624, %v5271
  %v5825 = vadd.f32 %v4625, %v5276
  %v5826 = vadd.f32 %v4626, %v5276
  %v5827 = vadd.f32 %v4627, %v5281
  %v5828 = vadd.f32 %v4628, %v5281
  %v5829 = vadd.f32 %v4629, %v5286
  %v5830 = vadd.f32 %v4630, %v5286
  %v5831 = vadd.f32 %v4631, %v5291
  %v5832 = vadd.f32 %v4632, %v5291
  %v5833 = vadd.f32 %v4633, %v5296
  %v5834 = vadd.f32 %v4634, %v5296
  %v5835 = vadd.f32 %v4635, %v5301
  %v5836 = vadd.f32 %v4636, %v5301
  %v5837 = vadd.f32 %v4637, %v5306
  %v5838 = vadd.f32 %v4638, %v5306
  %v5839 = vadd.f32 %v4639, %v5311
  %v5840 = vadd.f32 %v4640, %v5311
  %v5841 = vadd.f32 %v4641, %v5316
  %v5842 = vadd.f32 %v4642, %v5316
  %v5843 = vadd.f32 %v4643, %v5321
  %v5844 = vadd.f32 %v4644, %v5321
  %v5845 = vadd.f32 %v4645, %v5326
  %v5846 = vadd.f32 %v4646, %v5326
  %v5847 = vadd.f32 %v4647, %v5331
  %v5848 = vadd.f32 %v4648, %v5331
  %v5849 = vadd.f32 %v4649, %v5336
  %v5850 = vadd.f32 %v4650, %v5336
  %v5851 = vadd.f32 %v4651, %v5341
  %v5852 = vadd.f32 %v4652, %v5341
  %v5853 = vadd.f32 %v4653, %v5346
  %v5854 = vadd.f32 %v4654, %v5346
  %v5855 = vadd.f32 %v4655, %v5351
  %v5856 = vadd.f32 %v4656, %v5351
  %v5857 = vadd.f32 %v4657, %v5356
  %v5858 = vadd.f32 %v4658, %v5356
  %v5859 = vadd.f32 %v4659, %v5361
  %v5860 = vadd.f32 %v4660, %v5361
  %v5861 = vadd.f32 %v4661, %v5366
  %v5862 = vadd.f32 %v4662, %v5366
  %v5863 = vadd.f32 %v4663, %v5371
  %v5864 = vadd.f32 %v4664, %v5371
  %v5865 = vadd.f32 %v4665, %v5376
  %v5866 = vadd.f32 %v4666, %v5376
  %v5867 = vadd.f32 %v4667, %v5381
  %v5868 = vadd.f32 %v4668, %v5381
  %v5869 = vadd.f32 %v4669, %v5386
  %v5870 = vadd.f32 %v4670, %v5386
  %v5871 = vadd.f32 %v4671, %v5391
  %v5872 = vadd.f32 %v4672, %v5391
  %v5873 = vadd.f32 %v4673, %v5396
  %v5874 = vadd.f32 %v4674, %v5396
  %v5875 = vadd.f32 %v4675, %v5401
  %v5876 = vadd.f32 %v4676, %v5401
  %v5877 = vadd.f32 %v4677, %v5406
  %v5878 = vadd.f32 %v4678, %v5406
  %v5879 = vadd.f32 %v4679, %v5411
  %v5880 = vadd.f32 %v4680, %v5411
  %v5881 = vadd.f32 %v4681, %v5416
  %v5882 = vadd.f32 %v4682, %v5416
  %v5883 = vadd.f32 %v4683, %v5421
  %v5884 = vadd.f32 %v4684, %v5421
  %v5885 = vadd.f32 %v4685, %v5426
  %v5886 = vadd.f32 %v4686, %v5426
  %v5887 = vadd.f32 %v4687, %v5431
  %v5888 = vadd.f32 %v4688, %v5431
  %v5889 = vadd.f32 %v4689, %v5436
  %v5890 = vadd.f32 %v4690, %v5436
  %v5891 = vadd.f32 %v4691, %v5441
  %v5892 = vadd.f32 %v4692, %v5441
  %v5893 = vadd.f32 %v4693, %v5446
  %v5894 = vadd.f32 %v4694, %v5446
  %v5895 = vadd.f32 %v4695, %v5451
  %v5896 = vadd.f32 %v4696, %v5451
  %v5897 = vadd.f32 %v4697, %v5456
  %v5898 = vadd.f32 %v4698, %v5456
  %v5899 = vadd.f32 %v4699, %v5461
  %v5900 = vadd.f32 %v4700, %v5461
  %v5901 = vadd.f32 %v4701, %v5466
  %v5902 = vadd.f32 %v4702, %v5466
  %v5903 = vadd.f32 %v4703, %v5471
  %v5904 = vadd.f32 %v4704, %v5471
  %v5905 = vadd.f32 %v4705, %v5476
  %v5906 = vadd.f32 %v4706, %v5476
  %v5907 = vadd.f32 %v4707, %v5481
  %v5908 = vadd.f32 %v4708, %v5481
  %v5909 = vadd.f32 %v4709, %v5486
  %v5910 = vadd.f32 %v4710, %v5486
  %v5911 = vadd.f32 %v4711, %v5491
  %v5912 = vadd.f32 %v4712, %v5491
  %v5913 = vadd.f32 %v4713, %v5496
  %v5914 = vadd.f32 %v4714, %v5496
  %v5915 = vadd.f32 %v4715, %v5501
  %v5916 = vadd.f32 %v4716, %v5501
  %v5917 = vadd.f32 %v4717, %v5506
  %v5918 = vadd.f32 %v4718, %v5506
  %v5919 = vadd.f32 %v4719, %v5511
  %v5920 = vadd.f32 %v4720, %v5511
  %v5921 = vadd.f32 %v4721, %v5516
  %v5922 = vadd.f32 %v4722, %v5516
  %v5923 = vadd.f32 %v4723, %v5521
  %v5924 = vadd.f32 %v4724, %v5521
  %v5925 = vadd.f32 %v4725, %v5526
  %v5926 = vadd.f32 %v4726, %v5526
  %v5927 = vadd.f32 %v4727, %v5531
  %v5928 = vadd.f32 %v4728, %v5531
  %v5929 = vadd.f32 %v4729, %v5536
  %v5930 = vadd.f32 %v4730, %v5536
  %v5931 = vadd.f32 %v4731, %v5541
  %v5932 = vadd.f32 %v4732, %v5541
  %v5933 = vadd.f32 %v4733, %v5546
  %v5934 = vadd.f32 %v4734, %v5546
  %v5935 = vadd.f32 %v4735, %v5551
  %v5936 = vadd.f32 %v4736, %v5551
  %v5937 = vadd.f32 %v4737, %v5556
  %v5938 = vadd.f32 %v4738, %v5556
  %v5939 = vadd.f32 %v4739, %v5561
  %v5940 = vadd.f32 %v4740, %v5561
  %v5941 = vadd.f32 %v4741, %v5566
  %v5942 = vadd.f32 %v4742, %v5566
  %v5943 = vadd.f32 %v4743, %v5571
  %v5944 = vadd.f32 %v4744, %v5571
  %v5945 = vadd.f32 %v4745, %v5576
  %v5946 = vadd.f32 %v4746, %v5576
  %v5947 = vadd.f32 %v4747, %v5581
  %v5948 = vadd.f32 %v4748, %v5581
  %v5949 = vadd.f32 %v4749, %v5586
  %v5950 = vadd.f32 %v4750, %v5586
  %v5951 = vadd.f32 %v4751, %v5591
  %v5952 = vadd.f32 %v4752, %v5591
  %v5953 = vadd.f32 %v4753, %v5596
  %v5954 = vadd.f32 %v4754, %v5596
  %v5955 = vadd.f32 %v4755, %v5601
  %v5956 = vadd.f32 %v4756, %v5601
  %v5957 = vadd.f32 %v4757, %v5606
  %v5958 = vadd.f32 %v4758, %v5606
  %v5959 = vadd.f32 %v4759, %v5611
  %v5960 = vadd.f32 %v4760, %v5611
  %v5961 = vadd.f32 %v4761, %v5616
  %v5962 = vadd.f32 %v4762, %v5616
  %v5963 = vadd.f32 %v4763, %v5621
  %v5964 = vadd.f32 %v4764, %v5621
  %v5965 = vadd.f32 %v4765, %v5626
  %v5966 = vadd.f32 %v4766, %v5626
  %v5967 = vadd.f32 %v4767, %v5631
  %v5968 = vadd.f32 %v4768, %v5631
  %v5969 = vadd.f32 %v4769, %v5636
  %v5970 = vadd.f32 %v4770, %v5636
  %v5971 = vadd.f32 %v4771, %v5641
  %v5972 = vadd.f32 %v4772, %v5641
  %v5973 = vadd.f32 %v4773, %v5646
  %v5974 = vadd.f32 %v4774, %v5646
  %v5975 = vadd.f32 %v4775, %v5651
  %v5976 = vadd.f32 %v4776, %v5651
  %v5977 = vadd.f32 %v4777, %v5656
  %v5978 = vadd.f32 %v4778, %v5656
  %v5979 = vadd.f32 %v4779, %v5661
  %v5980 = vadd.f32 %v4780, %v5661
  %v5981 = vadd.f32 %v4781, %v5666
  %v5982 = vadd.f32 %v4782, %v5666
  %v5983 = vadd.f32 %v4783, %v5671
  %v5984 = vadd.f32 %v4784, %v5671
  %v5985 = vadd.f32 %v4785, %v5676
  %v5986 = vadd.f32 %v4786, %v5676
  %v5987 = vadd.f32 %v4787, %v5681
  %v5988 = vadd.f32 %v4788, %v5681
  %v5989 = vadd.f32 %v4789, %v5686
  %v5990 = vadd.f32 %v4790, %v5686
  %v5991 = vadd.f32 %v4791, %v5691
  %v5992 = vadd.f32 %v4792, %v5691
  %5993 = vst [vmem:[%s5] sm:$0xff] %v5693
  %5994 = vst [vmem:[%s5 + $0x8] sm:$0xff] %v5694
  %5995 = vst [vmem:[%s5 + $0x10] sm:$0xff] %v5695
  %5996 = vst [vmem:[%s5 + $0x18] sm:$0xff] %v5696
  %5997 = vst [vmem:[%s5 + $0x20] sm:$0xff] %v5697
  %5998 = vst [vmem:[%s5 + $0x28] sm:$0xff] %v5698
  %5999 = vst [vmem:[%s5 + $0x30] sm:$0xff] %v5699
  %6000 = vst [vmem:[%s5 + $0x38] sm:$0xff] %v5700
  %6001 = vst [vmem:[%s5 + $0x40] sm:$0xff] %v5701
  %6002 = vst [vmem:[%s5 + $0x48] sm:$0xff] %v5702
  %6003 = vst [vmem:[%s5 + $0x50] sm:$0xff] %v5703
  %6004 = vst [vmem:[%s5 + $0x58] sm:$0xff] %v5704
  %6005 = vst [vmem:[%s5 + $0x60] sm:$0xff] %v5705
  %6006 = vst [vmem:[%s5 + $0x68] sm:$0xff] %v5706
  %6007 = vst [vmem:[%s5 + $0x70] sm:$0xff] %v5707
  %6008 = vst [vmem:[%s5 + $0x78] sm:$0xff] %v5708
  %6009 = vst [vmem:[%s5 + $0x80] sm:$0xff] %v5709
  %6010 = vst [vmem:[%s5 + $0x88] sm:$0xff] %v5710
  %6011 = vst [vmem:[%s5 + $0x90] sm:$0xff] %v5711
  %6012 = vst [vmem:[%s5 + $0x98] sm:$0xff] %v5712
  %6013 = vst [vmem:[%s5 + $0xa0] sm:$0xff] %v5713
  %6014 = vst [vmem:[%s5 + $0xa8] sm:$0xff] %v5714
  %6015 = vst [vmem:[%s5 + $0xb0] sm:$0xff] %v5715
  %6016 = vst [vmem:[%s5 + $0xb8] sm:$0xff] %v5716
  %6017 = vst [vmem:[%s5 + $0xc0] sm:$0xff] %v5717
  %6018 = vst [vmem:[%s5 + $0xc8] sm:$0xff] %v5718
  %6019 = vst [vmem:[%s5 + $0xd0] sm:$0xff] %v5719
  %6020 = vst [vmem:[%s5 + $0xd8] sm:$0xff] %v5720
  %6021 = vst [vmem:[%s5 + $0xe0] sm:$0xff] %v5721
  %6022 = vst [vmem:[%s5 + $0xe8] sm:$0xff] %v5722
  %6023 = vst [vmem:[%s5 + $0xf0] sm:$0xff] %v5723
  %6024 = vst [vmem:[%s5 + $0xf8] sm:$0xff] %v5724
  %6025 = vst [vmem:[%s5 + $0x100] sm:$0xff] %v5725
  %6026 = vst [vmem:[%s5 + $0x108] sm:$0xff] %v5726
  %6027 = vst [vmem:[%s5 + $0x110] sm:$0xff] %v5727
  %6028 = vst [vmem:[%s5 + $0x118] sm:$0xff] %v5728
  %6029 = vst [vmem:[%s5 + $0x120] sm:$0xff] %v5729
  %6030 = vst [vmem:[%s5 + $0x128] sm:$0xff] %v5730
  %6031 = vst [vmem:[%s5 + $0x130] sm:$0xff] %v5731
  %6032 = vst [vmem:[%s5 + $0x138] sm:$0xff] %v5732
  %6033 = vst [vmem:[%s5 + $0x140] sm:$0xff] %v5733
  %6034 = vst [vmem:[%s5 + $0x148] sm:$0xff] %v5734
  %6035 = vst [vmem:[%s5 + $0x150] sm:$0xff] %v5735
  %6036 = vst [vmem:[%s5 + $0x158] sm:$0xff] %v5736
  %6037 = vst [vmem:[%s5 + $0x160] sm:$0xff] %v5737
  %6038 = vst [vmem:[%s5 + $0x168] sm:$0xff] %v5738
  %6039 = vst [vmem:[%s5 + $0x170] sm:$0xff] %v5739
  %6040 = vst [vmem:[%s5 + $0x178] sm:$0xff] %v5740
  %6041 = vst [vmem:[%s5 + $0x180] sm:$0xff] %v5741
  %6042 = vst [vmem:[%s5 + $0x188] sm:$0xff] %v5742
  %6043 = vst [vmem:[%s5 + $0x190] sm:$0xff] %v5743
  %6044 = vst [vmem:[%s5 + $0x198] sm:$0xff] %v5744
  %6045 = vst [vmem:[%s5 + $0x1a0] sm:$0xff] %v5745
  %6046 = vst [vmem:[%s5 + $0x1a8] sm:$0xff] %v5746
  %6047 = vst [vmem:[%s5 + $0x1b0] sm:$0xff] %v5747
  %6048 = vst [vmem:[%s5 + $0x1b8] sm:$0xff] %v5748
  %6049 = vst [vmem:[%s5 + $0x1c0] sm:$0xff] %v5749
  %6050 = vst [vmem:[%s5 + $0x1c8] sm:$0xff] %v5750
  %6051 = vst [vmem:[%s5 + $0x1d0] sm:$0xff] %v5751
  %6052 = vst [vmem:[%s5 + $0x1d8] sm:$0xff] %v5752
  %6053 = vst [vmem:[%s5 + $0x1e0] sm:$0xff] %v5753
  %6054 = vst [vmem:[%s5 + $0x1e8] sm:$0xff] %v5754
  %6055 = vst [vmem:[%s5 + $0x1f0] sm:$0xff] %v5755
  %6056 = vst [vmem:[%s5 + $0x1f8] sm:$0xff] %v5756
  %6057 = vst [vmem:[%s5 + $0x200] sm:$0xff] %v5757
  %6058 = vst [vmem:[%s5 + $0x208] sm:$0xff] %v5758
  %6059 = vst [vmem:[%s5 + $0x210] sm:$0xff] %v5759
  %6060 = vst [vmem:[%s5 + $0x218] sm:$0xff] %v5760
  %6061 = vst [vmem:[%s5 + $0x220] sm:$0xff] %v5761
  %6062 = vst [vmem:[%s5 + $0x228] sm:$0xff] %v5762
  %6063 = vst [vmem:[%s5 + $0x230] sm:$0xff] %v5763
  %6064 = vst [vmem:[%s5 + $0x238] sm:$0xff] %v5764
  %6065 = vst [vmem:[%s5 + $0x240] sm:$0xff] %v5765
  %6066 = vst [vmem:[%s5 + $0x248] sm:$0xff] %v5766
  %6067 = vst [vmem:[%s5 + $0x250] sm:$0xff] %v5767
  %6068 = vst [vmem:[%s5 + $0x258] sm:$0xff] %v5768
  %6069 = vst [vmem:[%s5 + $0x260] sm:$0xff] %v5769
  %6070 = vst [vmem:[%s5 + $0x268] sm:$0xff] %v5770
  %6071 = vst [vmem:[%s5 + $0x270] sm:$0xff] %v5771
  %6072 = vst [vmem:[%s5 + $0x278] sm:$0xff] %v5772
  %6073 = vst [vmem:[%s5 + $0x280] sm:$0xff] %v5773
  %6074 = vst [vmem:[%s5 + $0x288] sm:$0xff] %v5774
  %6075 = vst [vmem:[%s5 + $0x290] sm:$0xff] %v5775
  %6076 = vst [vmem:[%s5 + $0x298] sm:$0xff] %v5776
  %6077 = vst [vmem:[%s5 + $0x2a0] sm:$0xff] %v5777
  %6078 = vst [vmem:[%s5 + $0x2a8] sm:$0xff] %v5778
  %6079 = vst [vmem:[%s5 + $0x2b0] sm:$0xff] %v5779
  %6080 = vst [vmem:[%s5 + $0x2b8] sm:$0xff] %v5780
  %6081 = vst [vmem:[%s5 + $0x2c0] sm:$0xff] %v5781
  %6082 = vst [vmem:[%s5 + $0x2c8] sm:$0xff] %v5782
  %6083 = vst [vmem:[%s5 + $0x2d0] sm:$0xff] %v5783
  %6084 = vst [vmem:[%s5 + $0x2d8] sm:$0xff] %v5784
  %6085 = vst [vmem:[%s5 + $0x2e0] sm:$0xff] %v5785
  %6086 = vst [vmem:[%s5 + $0x2e8] sm:$0xff] %v5786
  %6087 = vst [vmem:[%s5 + $0x2f0] sm:$0xff] %v5787
  %6088 = vst [vmem:[%s5 + $0x2f8] sm:$0xff] %v5788
  %6089 = vst [vmem:[%s5 + $0x300] sm:$0xff] %v5789
  %6090 = vst [vmem:[%s5 + $0x308] sm:$0xff] %v5790
  %6091 = vst [vmem:[%s5 + $0x310] sm:$0xff] %v5791
  %6092 = vst [vmem:[%s5 + $0x318] sm:$0xff] %v5792
  %6093 = vst [vmem:[%s5 + $0x320] sm:$0xff] %v5793
  %6094 = vst [vmem:[%s5 + $0x328] sm:$0xff] %v5794
  %6095 = vst [vmem:[%s5 + $0x330] sm:$0xff] %v5795
  %6096 = vst [vmem:[%s5 + $0x338] sm:$0xff] %v5796
  %6097 = vst [vmem:[%s5 + $0x340] sm:$0xff] %v5797
  %6098 = vst [vmem:[%s5 + $0x348] sm:$0xff] %v5798
  %6099 = vst [vmem:[%s5 + $0x350] sm:$0xff] %v5799
  %6100 = vst [vmem:[%s5 + $0x358] sm:$0xff] %v5800
  %6101 = vst [vmem:[%s5 + $0x360] sm:$0xff] %v5801
  %6102 = vst [vmem:[%s5 + $0x368] sm:$0xff] %v5802
  %6103 = vst [vmem:[%s5 + $0x370] sm:$0xff] %v5803
  %6104 = vst [vmem:[%s5 + $0x378] sm:$0xff] %v5804
  %6105 = vst [vmem:[%s5 + $0x380] sm:$0xff] %v5805
  %6106 = vst [vmem:[%s5 + $0x388] sm:$0xff] %v5806
  %6107 = vst [vmem:[%s5 + $0x390] sm:$0xff] %v5807
  %6108 = vst [vmem:[%s5 + $0x398] sm:$0xff] %v5808
  %6109 = vst [vmem:[%s5 + $0x3a0] sm:$0xff] %v5809
  %6110 = vst [vmem:[%s5 + $0x3a8] sm:$0xff] %v5810
  %6111 = vst [vmem:[%s5 + $0x3b0] sm:$0xff] %v5811
  %6112 = vst [vmem:[%s5 + $0x3b8] sm:$0xff] %v5812
  %6113 = vst [vmem:[%s5 + $0x3c0] sm:$0xff] %v5813
  %6114 = vst [vmem:[%s5 + $0x3c8] sm:$0xff] %v5814
  %6115 = vst [vmem:[%s5 + $0x3d0] sm:$0xff] %v5815
  %6116 = vst [vmem:[%s5 + $0x3d8] sm:$0xff] %v5816
  %6117 = vst [vmem:[%s5 + $0x3e0] sm:$0xff] %v5817
  %6118 = vst [vmem:[%s5 + $0x3e8] sm:$0xff] %v5818
  %6119 = vst [vmem:[%s5 + $0x3f0] sm:$0xff] %v5819
  %6120 = vst [vmem:[%s5 + $0x3f8] sm:$0xff] %v5820
  %6121 = vst [vmem:[%s5 + $0x400] sm:$0xff] %v5821
  %6122 = vst [vmem:[%s5 + $0x408] sm:$0xff] %v5822
  %6123 = vst [vmem:[%s5 + $0x410] sm:$0xff] %v5823
  %6124 = vst [vmem:[%s5 + $0x418] sm:$0xff] %v5824
  %6125 = vst [vmem:[%s5 + $0x420] sm:$0xff] %v5825
  %6126 = vst [vmem:[%s5 + $0x428] sm:$0xff] %v5826
  %6127 = vst [vmem:[%s5 + $0x430] sm:$0xff] %v5827
  %6128 = vst [vmem:[%s5 + $0x438] sm:$0xff] %v5828
  %6129 = vst [vmem:[%s5 + $0x440] sm:$0xff] %v5829
  %6130 = vst [vmem:[%s5 + $0x448] sm:$0xff] %v5830
  %6131 = vst [vmem:[%s5 + $0x450] sm:$0xff] %v5831
  %6132 = vst [vmem:[%s5 + $0x458] sm:$0xff] %v5832
  %6133 = vst [vmem:[%s5 + $0x460] sm:$0xff] %v5833
  %6134 = vst [vmem:[%s5 + $0x468] sm:$0xff] %v5834
  %6135 = vst [vmem:[%s5 + $0x470] sm:$0xff] %v5835
  %6136 = vst [vmem:[%s5 + $0x478] sm:$0xff] %v5836
  %6137 = vst [vmem:[%s5 + $0x480] sm:$0xff] %v5837
  %6138 = vst [vmem:[%s5 + $0x488] sm:$0xff] %v5838
  %6139 = vst [vmem:[%s5 + $0x490] sm:$0xff] %v5839
  %6140 = vst [vmem:[%s5 + $0x498] sm:$0xff] %v5840
  %6141 = vst [vmem:[%s5 + $0x4a0] sm:$0xff] %v5841
  %6142 = vst [vmem:[%s5 + $0x4a8] sm:$0xff] %v5842
  %6143 = vst [vmem:[%s5 + $0x4b0] sm:$0xff] %v5843
  %6144 = vst [vmem:[%s5 + $0x4b8] sm:$0xff] %v5844
  %6145 = vst [vmem:[%s5 + $0x4c0] sm:$0xff] %v5845
  %6146 = vst [vmem:[%s5 + $0x4c8] sm:$0xff] %v5846
  %6147 = vst [vmem:[%s5 + $0x4d0] sm:$0xff] %v5847
  %6148 = vst [vmem:[%s5 + $0x4d8] sm:$0xff] %v5848
  %6149 = vst [vmem:[%s5 + $0x4e0] sm:$0xff] %v5849
  %6150 = vst [vmem:[%s5 + $0x4e8] sm:$0xff] %v5850
  %6151 = vst [vmem:[%s5 + $0x4f0] sm:$0xff] %v5851
  %6152 = vst [vmem:[%s5 + $0x4f8] sm:$0xff] %v5852
  %6153 = vst [vmem:[%s5 + $0x500] sm:$0xff] %v5853
  %6154 = vst [vmem:[%s5 + $0x508] sm:$0xff] %v5854
  %6155 = vst [vmem:[%s5 + $0x510] sm:$0xff] %v5855
  %6156 = vst [vmem:[%s5 + $0x518] sm:$0xff] %v5856
  %6157 = vst [vmem:[%s5 + $0x520] sm:$0xff] %v5857
  %6158 = vst [vmem:[%s5 + $0x528] sm:$0xff] %v5858
  %6159 = vst [vmem:[%s5 + $0x530] sm:$0xff] %v5859
  %6160 = vst [vmem:[%s5 + $0x538] sm:$0xff] %v5860
  %6161 = vst [vmem:[%s5 + $0x540] sm:$0xff] %v5861
  %6162 = vst [vmem:[%s5 + $0x548] sm:$0xff] %v5862
  %6163 = vst [vmem:[%s5 + $0x550] sm:$0xff] %v5863
  %6164 = vst [vmem:[%s5 + $0x558] sm:$0xff] %v5864
  %6165 = vst [vmem:[%s5 + $0x560] sm:$0xff] %v5865
  %6166 = vst [vmem:[%s5 + $0x568] sm:$0xff] %v5866
  %6167 = vst [vmem:[%s5 + $0x570] sm:$0xff] %v5867
  %6168 = vst [vmem:[%s5 + $0x578] sm:$0xff] %v5868
  %6169 = vst [vmem:[%s5 + $0x580] sm:$0xff] %v5869
  %6170 = vst [vmem:[%s5 + $0x588] sm:$0xff] %v5870
  %6171 = vst [vmem:[%s5 + $0x590] sm:$0xff] %v5871
  %6172 = vst [vmem:[%s5 + $0x598] sm:$0xff] %v5872
  %6173 = vst [vmem:[%s5 + $0x5a0] sm:$0xff] %v5873
  %6174 = vst [vmem:[%s5 + $0x5a8] sm:$0xff] %v5874
  %6175 = vst [vmem:[%s5 + $0x5b0] sm:$0xff] %v5875
  %6176 = vst [vmem:[%s5 + $0x5b8] sm:$0xff] %v5876
  %6177 = vst [vmem:[%s5 + $0x5c0] sm:$0xff] %v5877
  %6178 = vst [vmem:[%s5 + $0x5c8] sm:$0xff] %v5878
  %6179 = vst [vmem:[%s5 + $0x5d0] sm:$0xff] %v5879
  %6180 = vst [vmem:[%s5 + $0x5d8] sm:$0xff] %v5880
  %6181 = vst [vmem:[%s5 + $0x5e0] sm:$0xff] %v5881
  %6182 = vst [vmem:[%s5 + $0x5e8] sm:$0xff] %v5882
  %6183 = vst [vmem:[%s5 + $0x5f0] sm:$0xff] %v5883
  %6184 = vst [vmem:[%s5 + $0x5f8] sm:$0xff] %v5884
  %6185 = vst [vmem:[%s5 + $0x600] sm:$0xff] %v5885
  %6186 = vst [vmem:[%s5 + $0x608] sm:$0xff] %v5886
  %6187 = vst [vmem:[%s5 + $0x610] sm:$0xff] %v5887
  %6188 = vst [vmem:[%s5 + $0x618] sm:$0xff] %v5888
  %6189 = vst [vmem:[%s5 + $0x620] sm:$0xff] %v5889
  %6190 = vst [vmem:[%s5 + $0x628] sm:$0xff] %v5890
  %6191 = vst [vmem:[%s5 + $0x630] sm:$0xff] %v5891
  %6192 = vst [vmem:[%s5 + $0x638] sm:$0xff] %v5892
  %6193 = vst [vmem:[%s5 + $0x640] sm:$0xff] %v5893
  %6194 = vst [vmem:[%s5 + $0x648] sm:$0xff] %v5894
  %6195 = vst [vmem:[%s5 + $0x650] sm:$0xff] %v5895
  %6196 = vst [vmem:[%s5 + $0x658] sm:$0xff] %v5896
  %6197 = vst [vmem:[%s5 + $0x660] sm:$0xff] %v5897
  %6198 = vst [vmem:[%s5 + $0x668] sm:$0xff] %v5898
  %6199 = vst [vmem:[%s5 + $0x670] sm:$0xff] %v5899
  %6200 = vst [vmem:[%s5 + $0x678] sm:$0xff] %v5900
  %6201 = vst [vmem:[%s5 + $0x680] sm:$0xff] %v5901
  %6202 = vst [vmem:[%s5 + $0x688] sm:$0xff] %v5902
  %6203 = vst [vmem:[%s5 + $0x690] sm:$0xff] %v5903
  %6204 = vst [vmem:[%s5 + $0x698] sm:$0xff] %v5904
  %6205 = vst [vmem:[%s5 + $0x6a0] sm:$0xff] %v5905
  %6206 = vst [vmem:[%s5 + $0x6a8] sm:$0xff] %v5906
  %6207 = vst [vmem:[%s5 + $0x6b0] sm:$0xff] %v5907
  %6208 = vst [vmem:[%s5 + $0x6b8] sm:$0xff] %v5908
  %6209 = vst [vmem:[%s5 + $0x6c0] sm:$0xff] %v5909
  %6210 = vst [vmem:[%s5 + $0x6c8] sm:$0xff] %v5910
  %6211 = vst [vmem:[%s5 + $0x6d0] sm:$0xff] %v5911
  %6212 = vst [vmem:[%s5 + $0x6d8] sm:$0xff] %v5912
  %6213 = vst [vmem:[%s5 + $0x6e0] sm:$0xff] %v5913
  %6214 = vst [vmem:[%s5 + $0x6e8] sm:$0xff] %v5914
  %6215 = vst [vmem:[%s5 + $0x6f0] sm:$0xff] %v5915
  %6216 = vst [vmem:[%s5 + $0x6f8] sm:$0xff] %v5916
  %6217 = vst [vmem:[%s5 + $0x700] sm:$0xff] %v5917
  %6218 = vst [vmem:[%s5 + $0x708] sm:$0xff] %v5918
  %6219 = vst [vmem:[%s5 + $0x710] sm:$0xff] %v5919
  %6220 = vst [vmem:[%s5 + $0x718] sm:$0xff] %v5920
  %6221 = vst [vmem:[%s5 + $0x720] sm:$0xff] %v5921
  %6222 = vst [vmem:[%s5 + $0x728] sm:$0xff] %v5922
  %6223 = vst [vmem:[%s5 + $0x730] sm:$0xff] %v5923
  %6224 = vst [vmem:[%s5 + $0x738] sm:$0xff] %v5924
  %6225 = vst [vmem:[%s5 + $0x740] sm:$0xff] %v5925
  %6226 = vst [vmem:[%s5 + $0x748] sm:$0xff] %v5926
  %6227 = vst [vmem:[%s5 + $0x750] sm:$0xff] %v5927
  %6228 = vst [vmem:[%s5 + $0x758] sm:$0xff] %v5928
  %6229 = vst [vmem:[%s5 + $0x760] sm:$0xff] %v5929
  %6230 = vst [vmem:[%s5 + $0x768] sm:$0xff] %v5930
  %6231 = vst [vmem:[%s5 + $0x770] sm:$0xff] %v5931
  %6232 = vst [vmem:[%s5 + $0x778] sm:$0xff] %v5932
  %6233 = vst [vmem:[%s5 + $0x780] sm:$0xff] %v5933
  %6234 = vst [vmem:[%s5 + $0x788] sm:$0xff] %v5934
  %6235 = vst [vmem:[%s5 + $0x790] sm:$0xff] %v5935
  %6236 = vst [vmem:[%s5 + $0x798] sm:$0xff] %v5936
  %6237 = vst [vmem:[%s5 + $0x7a0] sm:$0xff] %v5937
  %6238 = vst [vmem:[%s5 + $0x7a8] sm:$0xff] %v5938
  %6239 = vst [vmem:[%s5 + $0x7b0] sm:$0xff] %v5939
  %6240 = vst [vmem:[%s5 + $0x7b8] sm:$0xff] %v5940
  %6241 = vst [vmem:[%s5 + $0x7c0] sm:$0xff] %v5941
  %6242 = vst [vmem:[%s5 + $0x7c8] sm:$0xff] %v5942
  %6243 = vst [vmem:[%s5 + $0x7d0] sm:$0xff] %v5943
  %6244 = vst [vmem:[%s5 + $0x7d8] sm:$0xff] %v5944
  %6245 = vst [vmem:[%s5 + $0x7e0] sm:$0xff] %v5945
  %6246 = vst [vmem:[%s5 + $0x7e8] sm:$0xff] %v5946
  %6247 = vst [vmem:[%s5 + $0x7f0] sm:$0xff] %v5947
  %6248 = vst [vmem:[%s5 + $0x7f8] sm:$0xff] %v5948
  %6249 = vst [vmem:[%s5 + $0x800] sm:$0xff] %v5949
  %6250 = vst [vmem:[%s5 + $0x808] sm:$0xff] %v5950
  %6251 = vst [vmem:[%s5 + $0x810] sm:$0xff] %v5951
  %6252 = vst [vmem:[%s5 + $0x818] sm:$0xff] %v5952
  %6253 = vst [vmem:[%s5 + $0x820] sm:$0xff] %v5953
  %6254 = vst [vmem:[%s5 + $0x828] sm:$0xff] %v5954
  %6255 = vst [vmem:[%s5 + $0x830] sm:$0xff] %v5955
  %6256 = vst [vmem:[%s5 + $0x838] sm:$0xff] %v5956
  %6257 = vst [vmem:[%s5 + $0x840] sm:$0xff] %v5957
  %6258 = vst [vmem:[%s5 + $0x848] sm:$0xff] %v5958
  %6259 = vst [vmem:[%s5 + $0x850] sm:$0xff] %v5959
  %6260 = vst [vmem:[%s5 + $0x858] sm:$0xff] %v5960
  %6261 = vst [vmem:[%s5 + $0x860] sm:$0xff] %v5961
  %6262 = vst [vmem:[%s5 + $0x868] sm:$0xff] %v5962
  %6263 = vst [vmem:[%s5 + $0x870] sm:$0xff] %v5963
  %6264 = vst [vmem:[%s5 + $0x878] sm:$0xff] %v5964
  %6265 = vst [vmem:[%s5 + $0x880] sm:$0xff] %v5965
  %6266 = vst [vmem:[%s5 + $0x888] sm:$0xff] %v5966
  %6267 = vst [vmem:[%s5 + $0x890] sm:$0xff] %v5967
  %6268 = vst [vmem:[%s5 + $0x898] sm:$0xff] %v5968
  %6269 = vst [vmem:[%s5 + $0x8a0] sm:$0xff] %v5969
  %6270 = vst [vmem:[%s5 + $0x8a8] sm:$0xff] %v5970
  %6271 = vst [vmem:[%s5 + $0x8b0] sm:$0xff] %v5971
  %6272 = vst [vmem:[%s5 + $0x8b8] sm:$0xff] %v5972
  %6273 = vst [vmem:[%s5 + $0x8c0] sm:$0xff] %v5973
  %6274 = vst [vmem:[%s5 + $0x8c8] sm:$0xff] %v5974
  %6275 = vst [vmem:[%s5 + $0x8d0] sm:$0xff] %v5975
  %6276 = vst [vmem:[%s5 + $0x8d8] sm:$0xff] %v5976
  %6277 = vst [vmem:[%s5 + $0x8e0] sm:$0xff] %v5977
  %6278 = vst [vmem:[%s5 + $0x8e8] sm:$0xff] %v5978
  %6279 = vst [vmem:[%s5 + $0x8f0] sm:$0xff] %v5979
  %6280 = vst [vmem:[%s5 + $0x8f8] sm:$0xff] %v5980
  %6281 = vst [vmem:[%s5 + $0x900] sm:$0xff] %v5981
  %6282 = vst [vmem:[%s5 + $0x908] sm:$0xff] %v5982
  %6283 = vst [vmem:[%s5 + $0x910] sm:$0xff] %v5983
  %6284 = vst [vmem:[%s5 + $0x918] sm:$0xff] %v5984
  %6285 = vst [vmem:[%s5 + $0x920] sm:$0xff] %v5985
  %6286 = vst [vmem:[%s5 + $0x928] sm:$0xff] %v5986
  %6287 = vst [vmem:[%s5 + $0x930] sm:$0xff] %v5987
  %6288 = vst [vmem:[%s5 + $0x938] sm:$0xff] %v5988
  %6289 = vst [vmem:[%s5 + $0x940] sm:$0xff] %v5989
  %6290 = vst [vmem:[%s5 + $0x948] sm:$0xff] %v5990
  %6291 = vst [vmem:[%s5 + $0x950] sm:$0xff] %v5991
  %6292 = vst [vmem:[%s5 + $0x958] sm:$0xff] %v5992
  // Predicated region
  $region22: #{fused_add_conv1x1_bn.1} parent=0 // pred_check
    _
  $region23: #{fused_add_conv1x1_bn.1} parent=0 // pred_check_branch
    %6294 = sbr.rel (0) target = $region25
  $region24: #{fused_add_conv1x1_bn.1} parent=0 // pred_region
    _
  $region25: #{fused_add_conv1x1_bn.1} parent=0 // pred_fallthru
    _
  // Predicated region
  $region26: #{fused_add_conv1x1_bn.1} parent=0 // pred_check
    _
  $region27: #{fused_add_conv1x1_bn.1} parent=0 // pred_check_branch
    %6296 = sbr.rel (0) target = $region29
  $region28: #{fused_add_conv1x1_bn.1} parent=0 // pred_region
    _
  $region29: #{fused_add_conv1x1_bn.1} parent=0 // pred_fallthru
    _

</llo_original>
